<compile_context>
chip_gen: v7x
topology: tpu7x:2x2x1
jax: 0.10.0
libtpu: 0.0.40
codegen_flags: <defaults>
</compile_context>

<pallas_src>
import functools

import jax
import jax.numpy as jnp
from jax.experimental import pallas as pl
from jax.experimental.pallas import tpu as pltpu


# ----------------------------- small helpers --------------------------------

def _sigmoid(x):
    # logistic via tanh: single EUP transcendental, numerically stable.
    return 0.5 * jnp.tanh(0.5 * x) + 0.5


def _act(x, kind):
    if kind == "silu":
        return x * _sigmoid(x)
    if kind == "relu":
        return jnp.maximum(x, 0.0)
    if kind == "sigmoid":
        return _sigmoid(x)
    if kind == "none":
        return x
    raise ValueError(f"unknown activation {kind}")


def fold_bn(bn, eps=1e-3):
    """Fold inference-mode BatchNorm into per-channel scale/shift (f32)."""
    scale = bn["gamma"] * jax.lax.rsqrt(bn["var"] + eps)
    shift = bn["beta"] - bn["mean"] * scale
    return scale, shift


def _pick_tile(dim, cap):
    """Full dim if it fits under cap (block == full dim is always legal),
    otherwise the cap; ragged last block handled by Pallas masking."""
    return dim if dim <= cap else cap


def _itemsize(dt):
    return jnp.dtype(dt).itemsize


# ----------------------------- Pallas kernels --------------------------------

def _fused_matmul_kernel(a_ref, b_ref, vec_ref, o_ref, *, act):
    # o = act(a @ b + shift); bf16 operands, f32 accumulate/epilogue.
    acc = jnp.dot(a_ref[...], b_ref[...], preferred_element_type=jnp.float32)
    y = _act(acc + vec_ref[...], act)
    o_ref[...] = y.astype(o_ref.dtype)


def fused_matmul(a, b, *, shift=None, act="none", out_dtype=jnp.bfloat16,
                 tm_cap=256, tn_cap=256):
    """Tiled MXU matmul (operands in their given dtype — callers pass bf16 —
    f32 accumulate) with fused folded-BN shift + activation epilogue.
    Output dtype is configurable so activations stream to HBM in bf16."""
    M, K = a.shape
    K2, N = b.shape
    assert K == K2

    shift = (jnp.zeros((N,), jnp.float32) if shift is None
             else shift.astype(jnp.float32))
    vec = shift.reshape(1, N)

    tm = _pick_tile(M, tm_cap)
    tn = _pick_tile(N, tn_cap)
    grid = (pl.cdiv(M, tm), pl.cdiv(N, tn))

    cost = pl.CostEstimate(
        flops=2 * M * K * N,
        transcendentals=M * N if act in ("silu", "sigmoid") else 0,
        bytes_accessed=(a.size * _itemsize(a.dtype) + b.size * _itemsize(b.dtype)
                        + vec.size * 4 + M * N * _itemsize(out_dtype)))

    # TODO(synk): for real B7 widths add a K grid axis ('arbitrary') with an
    #             f32 VMEM accumulator (pl.when init/finalize), K chunks of 256,
    #             to stay inside v7x's 64 MiB VMEM and pipeline DMA behind MXU.
    return pl.pallas_call(
        functools.partial(_fused_matmul_kernel, act=act),
        out_shape=jax.ShapeDtypeStruct((M, N), out_dtype),
        grid=grid,
        in_specs=[
            pl.BlockSpec((tm, K), lambda i, j: (i, 0)),   # full-K (K small here)
            pl.BlockSpec((K, tn), lambda i, j: (0, j)),
            pl.BlockSpec((1, tn), lambda i, j: (0, j)),
        ],
        out_specs=pl.BlockSpec((tm, tn), lambda i, j: (i, j)),
        compiler_params=pltpu.CompilerParams(
            dimension_semantics=("parallel", "parallel")),
        cost_estimate=cost,
    )(a, b, vec)


def _mbconv_tail_kernel(t_ref, dw_ref, dsh_ref, w1_ref, b1_ref, w2_ref, b2_ref,
                        pw_ref, psh_ref, o_ref, *, kk):
    # One image: depthwise conv (tap-unrolled VPU MACs) + BN + SiLU
    #            -> SE (pool -> fc1+SiLU -> fc2+sigmoid -> gate)
    #            -> 1x1 projection conv + BN, all fused; only the projected
    #            (HW, C_proj) output is written to HBM.
    acc = t_ref[0, 0].astype(jnp.float32) * dw_ref[0]          # (HW, C)
    for t in range(1, kk):                                     # static unroll
        acc = acc + t_ref[0, t].astype(jnp.float32) * dw_ref[t]
    y = acc + dsh_ref[...]
    y = y * _sigmoid(y)                                        # dw + BN + SiLU

    pooled = jnp.mean(y, axis=0, keepdims=True)                # squeeze (1, C)
    s = jnp.dot(pooled.astype(jnp.bfloat16), w1_ref[...],
                preferred_element_type=jnp.float32) + b1_ref[...]
    s = s * _sigmoid(s)                                        # fc1 + SiLU
    g = jnp.dot(s.astype(jnp.bfloat16), w2_ref[...],
                preferred_element_type=jnp.float32) + b2_ref[...]
    g = _sigmoid(g)                                            # excite gate (1, C)
    gated = (y * g).astype(jnp.bfloat16)                       # (HW, C)

    p = jnp.dot(gated, pw_ref[...],
                preferred_element_type=jnp.float32)            # 1x1 projection
    o_ref[0] = (p + psh_ref[...]).astype(o_ref.dtype)          # BN, no act


def mbconv_tail(taps, dw_w_scaled, dw_shift, se_w1, se_b1, se_w2, se_b2,
                proj_w_scaled, proj_shift):
    """Fused depthwise conv + BN + SiLU + SE + 1x1 projection + BN.
    taps: (N, KK, HW, C) bf16, tap-major. One pallas_call, grid over N
    (>=2 parallel programs -> both v7x TensorCores)."""
    N, KK, HW, C = taps.shape
    SE = se_w1.shape[1]
    CP = proj_w_scaled.shape[1]
    return pl.pallas_call(
        functools.partial(_mbconv_tail_kernel, kk=KK),
        out_shape=jax.ShapeDtypeStruct((N, HW, CP), jnp.bfloat16),
        grid=(N,),
        in_specs=[
            pl.BlockSpec((1, KK, HW, C), lambda b: (b, 0, 0, 0)),
            pl.BlockSpec((KK, 1, C), lambda b: (0, 0, 0)),
            pl.BlockSpec((1, C), lambda b: (0, 0)),
            pl.BlockSpec((C, SE), lambda b: (0, 0)),
            pl.BlockSpec((1, SE), lambda b: (0, 0)),
            pl.BlockSpec((SE, C), lambda b: (0, 0)),
            pl.BlockSpec((1, C), lambda b: (0, 0)),
            pl.BlockSpec((C, CP), lambda b: (0, 0)),
            pl.BlockSpec((1, CP), lambda b: (0, 0)),
        ],
        out_specs=pl.BlockSpec((1, HW, CP), lambda b: (b, 0, 0)),
        compiler_params=pltpu.CompilerParams(dimension_semantics=("parallel",)),
    )(taps,
      dw_w_scaled.reshape(KK, 1, C).astype(jnp.float32),
      dw_shift.reshape(1, C).astype(jnp.float32),
      se_w1.astype(jnp.bfloat16), se_b1.reshape(1, SE).astype(jnp.float32),
      se_w2.astype(jnp.bfloat16), se_b2.reshape(1, C).astype(jnp.float32),
      proj_w_scaled.astype(jnp.bfloat16),
      proj_shift.reshape(1, CP).astype(jnp.float32))


def _head_pool_kernel(x_ref, w_ref, sh_ref, o_ref):
    # head 1x1 conv (BN scale pre-folded) + SiLU + global average pool,
    # without ever writing the [HW, 2560] activation to HBM.
    x = x_ref[0]                                               # (HW, Cin) bf16
    y = jnp.dot(x, w_ref[...],
                preferred_element_type=jnp.float32) + sh_ref[...]
    y = y * _sigmoid(y)                                        # SiLU
    o_ref[0] = jnp.mean(y, axis=0, keepdims=True).astype(o_ref.dtype)


def head_conv_pool(x3, w_scaled, shift, *, tn_cap=512):
    Nb, HW, Cin = x3.shape
    Cout = w_scaled.shape[1]
    tn = _pick_tile(Cout, tn_cap)
    cost = pl.CostEstimate(
        flops=2 * Nb * HW * Cin * Cout,
        transcendentals=Nb * HW * Cout,
        bytes_accessed=(x3.size * 2 + Cin * Cout * 2 + Cout * 4 + Nb * Cout * 2))
    out = pl.pallas_call(
        _head_pool_kernel,
        out_shape=jax.ShapeDtypeStruct((Nb, 1, Cout), jnp.bfloat16),
        grid=(Nb, pl.cdiv(Cout, tn)),
        in_specs=[
            pl.BlockSpec((1, HW, Cin), lambda b, j: (b, 0, 0)),
            pl.BlockSpec((Cin, tn), lambda b, j: (0, j)),
            pl.BlockSpec((1, tn), lambda b, j: (0, j)),
        ],
        out_specs=pl.BlockSpec((1, 1, tn), lambda b, j: (b, 0, j)),
        compiler_params=pltpu.CompilerParams(
            dimension_semantics=("parallel", "parallel")),
        cost_estimate=cost,
    )(x3, w_scaled.astype(jnp.bfloat16),
      shift.reshape(1, Cout).astype(jnp.float32))
    return out.reshape(Nb, Cout)


def _make_clf_kernel(meta, act):
    """Whole classifier in one kernel: per layer Linear (+bias) -> act -> BN1d
    affine (order matches the PyTorch block: Linear, act, BN); last layer is
    Linear -> log_softmax.  All math f32, matmul operands bf16."""
    n = len(meta)

    def kernel(*refs):
        x_ref, o_ref = refs[0], refs[-1]
        h = x_ref[...]                                         # (M, 2560) bf16
        for li in range(n):
            w_ref = refs[1 + 2 * li]
            v_ref = refs[2 + 2 * li]
            y = jnp.dot(h, w_ref[...],
                        preferred_element_type=jnp.float32) + v_ref[0:1, :]
            if li == n - 1:                                    # log-softmax head
                m = jnp.max(y, axis=1, keepdims=True)
                z = y - m
                o_ref[...] = z - jnp.log(jnp.sum(jnp.exp(z), axis=1,
                                                 keepdims=True))
            else:
                y = _act(y, act)
                if meta[li]:                                   # BN1d after act
                    y = y * v_ref[1:2, :] + v_ref[2:3, :]
                h = y.astype(jnp.bfloat16)

    return kernel


def fused_classifier(x, layers, *, act):
    """Single pallas_call for the whole classifier stack (M=2 -> launch-bound,
    all weights fit trivially in VMEM).  Dropout = identity at inference."""
    M = x.shape[0]
    n_classes = layers[-1]["w"].shape[1]
    args = [x]
    in_specs = [pl.BlockSpec(x.shape, lambda i: (0, 0))]
    meta = []
    for layer in layers:
        w = layer["w"].astype(jnp.bfloat16)
        fo = w.shape[1]
        b = layer["b"].astype(jnp.float32)
        if "bn" in layer:
            sc, sh = fold_bn(layer["bn"], eps=1e-5)
            vec = jnp.stack([b, sc, sh], axis=0)               # (3, fo)
            meta.append(True)
        else:
            vec = b.reshape(1, fo)                             # (1, fo)
            meta.append(False)
        args += [w, vec]
        in_specs += [pl.BlockSpec(w.shape, lambda i: (0, 0)),
                     pl.BlockSpec(vec.shape, lambda i: (0, 0))]
    return pl.pallas_call(
        _make_clf_kernel(tuple(meta), act),
        out_shape=jax.ShapeDtypeStruct((M, n_classes), jnp.float32),
        grid=(1,),
        in_specs=in_specs,
        out_specs=pl.BlockSpec((M, n_classes), lambda i: (0, 0)),
    )(*args)


# ----------------------------- JAX glue (layout only) ------------------------

def im2col_mat(x, kh, kw, stride, pad):
    """x: [N,H,W,C] (bf16) -> flat patches [N*OH*OW, KK*C] for a dense-conv
    matmul.  TODO(synk): move in-kernel (halo slab DMA) at real B7 resolutions."""
    N, H, W, C = x.shape
    xp = jnp.pad(x, ((0, 0), (pad, pad), (pad, pad), (0, 0)))
    OH = (H + 2 * pad - kh) // stride + 1
    OW = (W + 2 * pad - kw) // stride + 1
    taps = [xp[:, i:i + stride * OH:stride, j:j + stride * OW:stride, :]
            for i in range(kh) for j in range(kw)]
    patches = jnp.stack(taps, axis=3)                          # (N,OH,OW,KK,C)
    return patches.reshape(N * OH * OW, kh * kw * C), (N, OH, OW)


def im2col_taps(x, kh, kw, stride, pad):
    """x: [N,H,W,C] (bf16) -> tap-major patches [N, KK, OH*OW, C], built
    directly in the target layout (no transpose pass).
    TODO(synk): replace with in-kernel halo/stride-phase extraction at real
                B7 resolutions to avoid the KKx patch tensor in HBM."""
    N, H, W, C = x.shape
    xp = jnp.pad(x, ((0, 0), (pad, pad), (pad, pad), (0, 0)))
    OH = (H + 2 * pad - kh) // stride + 1
    OW = (W + 2 * pad - kw) // stride + 1
    taps = [xp[:, i:i + stride * OH:stride, j:j + stride * OW:stride, :]
            .reshape(N, OH * OW, C)
            for i in range(kh) for j in range(kw)]
    return jnp.stack(taps, axis=1), (N, OH, OW)                # (N,KK,HW,C)


def conv_bn_act(x, w_mat, bn, *, kh, kw, stride, pad, act):
    """Dense conv (bias-free, as in EfficientNet) + folded BN + activation as an
    im2col matmul on the MXU.  BN scale folded into weight columns at trace
    time; 1x1 convs skip im2col entirely (plain reshape).  bf16 in / bf16 out."""
    scale, shift = fold_bn(bn)
    w_folded = (w_mat * scale[None, :]).astype(jnp.bfloat16)
    if kh == 1 and kw == 1 and stride == 1 and pad == 0:
        N, H, W, _ = x.shape
        flat = x.reshape(N * H * W, -1)
        OH, OW = H, W
    else:
        flat, (N, OH, OW) = im2col_mat(x, kh, kw, stride, pad)
    out = fused_matmul(flat, w_folded, shift=shift, act=act)
    return out.reshape(N, OH, OW, -1)


# ----------------------------- model ----------------------------------------

# representative scaled-down backbone widths (head width 2560 matches B7).
# _C_EXP = 128 keeps the VPU-bound depthwise / SE path lane-dense (128 lanes).
_C_STEM, _C_EXP, _C_PROJ, _C_HEAD, _C_SE = 32, 128, 32, 2560, 8


def init_weights(key, cfg):
    it = iter(jax.random.split(key, 64))

    def dense(fan_in, fan_out):
        return jax.random.normal(next(it), (fan_in, fan_out), jnp.float32) * (fan_in ** -0.5)

    def vec(n, scale=0.05):
        return jax.random.normal(next(it), (n,), jnp.float32) * scale

    def bn(c):
        return dict(gamma=1.0 + vec(c), beta=vec(c),
                    mean=vec(c), var=1.0 + jnp.abs(vec(c)))

    wts = dict(
        stem_w=dense(3 * 3 * 3, _C_STEM), stem_bn=bn(_C_STEM),
        exp_w=dense(1 * 1 * _C_STEM, _C_EXP), exp_bn=bn(_C_EXP),
        dw_w=jax.random.normal(next(it), (9, _C_EXP), jnp.float32) * (9 ** -0.5),
        dw_bn=bn(_C_EXP),
        se_w1=dense(_C_EXP, _C_SE), se_b1=vec(_C_SE),
        se_w2=dense(_C_SE, _C_EXP), se_b2=vec(_C_EXP),
        proj_w=dense(1 * 1 * _C_EXP, _C_PROJ), proj_bn=bn(_C_PROJ),
        head_w=dense(1 * 1 * _C_PROJ, _C_HEAD), head_bn=bn(_C_HEAD),
    )
    # classifier exactly like make_clf_block: (Dropout, Linear, act[, BN1d]) x L,
    # last layer uses log_softmax and never BN.  BN is applied AFTER the act,
    # matching the PyTorch ordering (layer, no_linear, bn).
    layers_in = (_C_HEAD,) + tuple(cfg["clf_neurons"][:-1])
    layers_out = tuple(cfg["clf_neurons"])
    clf = []
    for i, (fi, fo) in enumerate(zip(layers_in, layers_out)):
        entry = dict(w=dense(fi, fo), b=vec(fo))
        if cfg["bn"] and i < len(layers_out) - 1:
            entry["bn"] = bn(fo)
        clf.append(entry)
    wts["clf"] = clf
    return wts


def effnet_b7_forward(weights, x_nchw, cfg):
    w = weights
    # NCHW -> NHWC once at the boundary; activations live in bf16 from here on.
    # TODO(synk): real PyTorch OIHW conv weights must be transposed to
    #             (kh, kw, I, O) before the im2col-matmul reshape.
    x = jnp.transpose(x_nchw, (0, 2, 3, 1)).astype(jnp.bfloat16)

    # --- features ---
    # stem: 3x3 conv stride 2 + BN + SiLU (im2col matmul on the MXU)
    x = conv_bn_act(x, w["stem_w"], w["stem_bn"], kh=3, kw=3, stride=2, pad=1, act="silu")
    # MBConv expand 1x1 + BN + SiLU
    x = conv_bn_act(x, w["exp_w"], w["exp_bn"], kh=1, kw=1, stride=1, pad=0, act="silu")
    # depthwise 3x3 stride 2 + BN + SiLU + SE + project 1x1 + BN: ONE fused
    # kernel per image (tap-major bf16 patches built directly, no transpose).
    taps, (N, OH, OW) = im2col_taps(x, 3, 3, 2, 1)
    dsc, dsh = fold_bn(w["dw_bn"])
    psc, psh = fold_bn(w["proj_bn"])
    x3 = mbconv_tail(taps,
                     w["dw_w"] * dsc[None, :], dsh,
                     w["se_w1"], w["se_b1"], w["se_w2"], w["se_b2"],
                     w["proj_w"] * psc[None, :], psh)           # (N, HW, C_PROJ)
    # head 1x1 conv to 2560 + BN + SiLU, fused with global average pool
    hsc, hsh = fold_bn(w["head_bn"])
    feat = head_conv_pool(x3, w["head_w"] * hsc[None, :], hsh)  # (N, 2560) bf16

    # --- classifier: single fused kernel (Dropout = identity at inference) ---
    return fused_classifier(feat, w["clf"], act=cfg["clf_no_linear_fun"])


# ----------------------------- driver ----------------------------------------

if __name__ == "__main__":
    cfg = dict(
        bn=True,
        unfreeze_layers=5,          # training-only flag; no effect on forward
        clf_neurons=(64, 10),
        dropout=0.3,                # identity at inference
        clf_no_linear_fun="relu",
        input_shape=(3, 32, 32),
    )
    key = jax.random.PRNGKey(0)
    kw, kx = jax.random.split(key)
    weights = init_weights(kw, cfg)

    x = jax.random.normal(kx, (2, 3, 32, 32), jnp.float32)   # NCHW like PyTorch

    fwd = jax.jit(lambda inp: effnet_b7_forward(weights, inp, cfg))
    out = jax.block_until_ready(fwd(x))

    assert out.shape == (2, cfg["clf_neurons"][-1]), out.shape
    assert bool(jnp.all(jnp.isfinite(out)))
    # log-probabilities: exp(out) rows sum to 1
    row_sums = jnp.exp(out).sum(axis=1)
    assert bool(jnp.allclose(row_sums, 1.0, atol=1e-4)), row_sums
    print("KERNEL_OK")
</pallas_src>

<mosaic_0001>
module attributes {stable_mosaic.version = 11 : i64} {
  func.func @_fused_matmul_kernel(%arg0: i32, %arg1: i32, %arg2: memref<256x27xbf16, #tpu.memory_space<vmem>>, %arg3: memref<27x32xbf16, #tpu.memory_space<vmem>>, %arg4: memref<1x32xf32, #tpu.memory_space<vmem>>, %arg5: memref<256x32xbf16, #tpu.memory_space<vmem>>) attributes {dimension_semantics = [#tpu.dimension_semantics<parallel>, #tpu.dimension_semantics<parallel>], iteration_bounds = array<i64: 2, 1>, scalar_prefetch = 0 : i64, scratch_operands = 0 : i64, tpu.core_type = #tpu.core_type<tc>, window_params = [{transform_indices = @transform_0, window_bounds = array<i64: 256, 27>}, {transform_indices = @transform_1, window_bounds = array<i64: 27, 32>}, {transform_indices = @transform_2, window_bounds = array<i64: 1, 32>}, {transform_indices = @transform_3, window_bounds = array<i64: 256, 32>}]} {
    %c0 = arith.constant 0 : index
    %c0_0 = arith.constant 0 : index
    %0 = vector.load %arg2[%c0, %c0_0] : memref<256x27xbf16, #tpu.memory_space<vmem>>, vector<256x27xbf16>
    %c0_1 = arith.constant 0 : index
    %c0_2 = arith.constant 0 : index
    %1 = vector.load %arg3[%c0_1, %c0_2] : memref<27x32xbf16, #tpu.memory_space<vmem>>, vector<27x32xbf16>
    %cst = arith.constant dense<0.000000e+00> : vector<256x32xf32>
    %2 = tpu.matmul %0, %1, %cst {dimension_numbers = #tpu.dot_dimension_numbers<[1], [0], [0], [1], [0, 0, 1, 1], [], []>} : vector<256x27xbf16>, vector<27x32xbf16>, vector<256x32xf32> -> vector<256x32xf32>
    %c0_3 = arith.constant 0 : index
    %c0_4 = arith.constant 0 : index
    %3 = vector.load %arg4[%c0_3, %c0_4] : memref<1x32xf32, #tpu.memory_space<vmem>>, vector<1x32xf32>
    %4 = vector.broadcast %3 : vector<1x32xf32> to vector<256x32xf32>
    %5 = arith.addf %2, %4 : vector<256x32xf32>
    %cst_5 = arith.constant 5.000000e-01 : f32
    %6 = vector.broadcast %cst_5 : f32 to vector<256x32xf32>
    %7 = arith.mulf %6, %5 : vector<256x32xf32>
    %8 = math.tanh %7 : vector<256x32xf32>
    %cst_6 = arith.constant 5.000000e-01 : f32
    %9 = vector.broadcast %cst_6 : f32 to vector<256x32xf32>
    %10 = arith.mulf %9, %8 : vector<256x32xf32>
    %cst_7 = arith.constant 5.000000e-01 : f32
    %11 = vector.broadcast %cst_7 : f32 to vector<256x32xf32>
    %12 = arith.addf %10, %11 : vector<256x32xf32>
    %13 = arith.mulf %5, %12 : vector<256x32xf32>
    %14 = arith.truncf %13 : vector<256x32xf32> to vector<256x32xbf16>
    %c0_8 = arith.constant 0 : index
    %c0_9 = arith.constant 0 : index
    %15 = vector.load %arg5[%c0_8, %c0_9] : memref<256x32xbf16, #tpu.memory_space<vmem>>, vector<256x32xbf16>
    tpu.vector_store %arg5[%c0_8, %c0_9], %14 {strides = array<i32>} : memref<256x32xbf16, #tpu.memory_space<vmem>>, vector<256x32xbf16>,
    return
  }
  func.func @transform_0(%arg0: i32, %arg1: i32) -> (i32, i32) {
    %c0_i32 = arith.constant 0 : i32
    %c0_i32_0 = arith.constant 0 : i32
    return %arg0, %c0_i32 : i32, i32
  }
  func.func @transform_1(%arg0: i32, %arg1: i32) -> (i32, i32) {
    %c0_i32 = arith.constant 0 : i32
    %c0_i32_0 = arith.constant 0 : i32
    return %c0_i32, %arg1 : i32, i32
  }
  func.func @transform_2(%arg0: i32, %arg1: i32) -> (i32, i32) {
    %c0_i32 = arith.constant 0 : i32
    %c0_i32_0 = arith.constant 0 : i32
    return %c0_i32, %arg1 : i32, i32
  }
  func.func @transform_3(%arg0: i32, %arg1: i32) -> (i32, i32) {
    %c0_i32 = arith.constant 0 : i32
    return %arg0, %arg1 : i32, i32
  }
}

module attributes {stable_mosaic.version = 11 : i64} {
  func.func @_fused_matmul_kernel(%arg0: i32, %arg1: i32, %arg2: memref<256x32xbf16, #tpu.memory_space<vmem>>, %arg3: memref<32x128xbf16, #tpu.memory_space<vmem>>, %arg4: memref<1x128xf32, #tpu.memory_space<vmem>>, %arg5: memref<256x128xbf16, #tpu.memory_space<vmem>>) attributes {dimension_semantics = [#tpu.dimension_semantics<parallel>, #tpu.dimension_semantics<parallel>], iteration_bounds = array<i64: 2, 1>, scalar_prefetch = 0 : i64, scratch_operands = 0 : i64, tpu.core_type = #tpu.core_type<tc>, window_params = [{transform_indices = @transform_0, window_bounds = array<i64: 256, 32>}, {transform_indices = @transform_1, window_bounds = array<i64: 32, 128>}, {transform_indices = @transform_2, window_bounds = array<i64: 1, 128>}, {transform_indices = @transform_3, window_bounds = array<i64: 256, 128>}]} {
    %c0 = arith.constant 0 : index
    %c0_0 = arith.constant 0 : index
    %0 = vector.load %arg2[%c0, %c0_0] : memref<256x32xbf16, #tpu.memory_space<vmem>>, vector<256x32xbf16>
    %c0_1 = arith.constant 0 : index
    %c0_2 = arith.constant 0 : index
    %1 = vector.load %arg3[%c0_1, %c0_2] : memref<32x128xbf16, #tpu.memory_space<vmem>>, vector<32x128xbf16>
    %cst = arith.constant dense<0.000000e+00> : vector<256x128xf32>
    %2 = tpu.matmul %0, %1, %cst {dimension_numbers = #tpu.dot_dimension_numbers<[1], [0], [0], [1], [0, 0, 1, 1], [], []>} : vector<256x32xbf16>, vector<32x128xbf16>, vector<256x128xf32> -> vector<256x128xf32>
    %c0_3 = arith.constant 0 : index
    %c0_4 = arith.constant 0 : index
    %3 = vector.load %arg4[%c0_3, %c0_4] : memref<1x128xf32, #tpu.memory_space<vmem>>, vector<1x128xf32>
    %4 = vector.broadcast %3 : vector<1x128xf32> to vector<256x128xf32>
    %5 = arith.addf %2, %4 : vector<256x128xf32>
    %cst_5 = arith.constant 5.000000e-01 : f32
    %6 = vector.broadcast %cst_5 : f32 to vector<256x128xf32>
    %7 = arith.mulf %6, %5 : vector<256x128xf32>
    %8 = math.tanh %7 : vector<256x128xf32>
    %cst_6 = arith.constant 5.000000e-01 : f32
    %9 = vector.broadcast %cst_6 : f32 to vector<256x128xf32>
    %10 = arith.mulf %9, %8 : vector<256x128xf32>
    %cst_7 = arith.constant 5.000000e-01 : f32
    %11 = vector.broadcast %cst_7 : f32 to vector<256x128xf32>
    %12 = arith.addf %10, %11 : vector<256x128xf32>
    %13 = arith.mulf %5, %12 : vector<256x128xf32>
    %14 = arith.truncf %13 : vector<256x128xf32> to vector<256x128xbf16>
    %c0_8 = arith.constant 0 : index
    %c0_9 = arith.constant 0 : index
    %15 = vector.load %arg5[%c0_8, %c0_9] : memref<256x128xbf16, #tpu.memory_space<vmem>>, vector<256x128xbf16>
    tpu.vector_store %arg5[%c0_8, %c0_9], %14 {strides = array<i32>} : memref<256x128xbf16, #tpu.memory_space<vmem>>, vector<256x128xbf16>,
    return
  }
  func.func @transform_0(%arg0: i32, %arg1: i32) -> (i32, i32) {
    %c0_i32 = arith.constant 0 : i32
    %c0_i32_0 = arith.constant 0 : i32
    return %arg0, %c0_i32 : i32, i32
  }
  func.func @transform_1(%arg0: i32, %arg1: i32) -> (i32, i32) {
    %c0_i32 = arith.constant 0 : i32
    %c0_i32_0 = arith.constant 0 : i32
    return %c0_i32, %arg1 : i32, i32
  }
  func.func @transform_2(%arg0: i32, %arg1: i32) -> (i32, i32) {
    %c0_i32 = arith.constant 0 : i32
    %c0_i32_0 = arith.constant 0 : i32
    return %c0_i32, %arg1 : i32, i32
  }
  func.func @transform_3(%arg0: i32, %arg1: i32) -> (i32, i32) {
    %c0_i32 = arith.constant 0 : i32
    return %arg0, %arg1 : i32, i32
  }
}

module attributes {stable_mosaic.version = 11 : i64} {
  func.func @_mbconv_tail_kernel(%arg0: i32, %arg1: memref<1x9x64x128xbf16, #tpu.memory_space<vmem>>, %arg2: memref<9x1x128xf32, #tpu.memory_space<vmem>>, %arg3: memref<1x128xf32, #tpu.memory_space<vmem>>, %arg4: memref<128x8xbf16, #tpu.memory_space<vmem>>, %arg5: memref<1x8xf32, #tpu.memory_space<vmem>>, %arg6: memref<8x128xbf16, #tpu.memory_space<vmem>>, %arg7: memref<1x128xf32, #tpu.memory_space<vmem>>, %arg8: memref<128x32xbf16, #tpu.memory_space<vmem>>, %arg9: memref<1x32xf32, #tpu.memory_space<vmem>>, %arg10: memref<1x64x32xbf16, #tpu.memory_space<vmem>>) attributes {dimension_semantics = [#tpu.dimension_semantics<parallel>], iteration_bounds = array<i64: 2>, scalar_prefetch = 0 : i64, scratch_operands = 0 : i64, tpu.core_type = #tpu.core_type<tc>, window_params = [{transform_indices = @transform_0, window_bounds = array<i64: 1, 9, 64, 128>}, {pipeline_mode = #tpu.pipeline_mode<synchronous>, transform_indices = @transform_1, window_bounds = array<i64: 9, 1, 128>}, {pipeline_mode = #tpu.pipeline_mode<synchronous>, transform_indices = @transform_2, window_bounds = array<i64: 1, 128>}, {pipeline_mode = #tpu.pipeline_mode<synchronous>, transform_indices = @transform_3, window_bounds = array<i64: 128, 8>}, {pipeline_mode = #tpu.pipeline_mode<synchronous>, transform_indices = @transform_4, window_bounds = array<i64: 1, 8>}, {pipeline_mode = #tpu.pipeline_mode<synchronous>, transform_indices = @transform_5, window_bounds = array<i64: 8, 128>}, {pipeline_mode = #tpu.pipeline_mode<synchronous>, transform_indices = @transform_6, window_bounds = array<i64: 1, 128>}, {pipeline_mode = #tpu.pipeline_mode<synchronous>, transform_indices = @transform_7, window_bounds = array<i64: 128, 32>}, {pipeline_mode = #tpu.pipeline_mode<synchronous>, transform_indices = @transform_8, window_bounds = array<i64: 1, 32>}, {transform_indices = @transform_9, window_bounds = array<i64: 1, 64, 32>}]} {
    %c0 = arith.constant 0 : index
    %c0_0 = arith.constant 0 : index
    %c0_1 = arith.constant 0 : index
    %c0_2 = arith.constant 0 : index
    %0 = vector.load %arg1[%c0, %c0_0, %c0_1, %c0_2] : memref<1x9x64x128xbf16, #tpu.memory_space<vmem>>, vector<1x1x64x128xbf16>
    %1 = vector.shape_cast %0 : vector<1x1x64x128xbf16> to vector<64x128xbf16>
    %2 = arith.extf %1 : vector<64x128xbf16> to vector<64x128xf32>
    %c0_3 = arith.constant 0 : index
    %c0_4 = arith.constant 0 : index
    %c0_5 = arith.constant 0 : index
    %3 = vector.load %arg2[%c0_3, %c0_4, %c0_5] : memref<9x1x128xf32, #tpu.memory_space<vmem>>, vector<1x1x128xf32>
    %4 = vector.shape_cast %3 : vector<1x1x128xf32> to vector<1x128xf32>
    %5 = vector.broadcast %4 : vector<1x128xf32> to vector<64x128xf32>
    %6 = arith.mulf %2, %5 : vector<64x128xf32>
    %c0_6 = arith.constant 0 : index
    %c1 = arith.constant 1 : index
    %c0_7 = arith.constant 0 : index
    %c0_8 = arith.constant 0 : index
    %7 = vector.load %arg1[%c0_6, %c1, %c0_7, %c0_8] : memref<1x9x64x128xbf16, #tpu.memory_space<vmem>>, vector<1x1x64x128xbf16>
    %8 = vector.shape_cast %7 : vector<1x1x64x128xbf16> to vector<64x128xbf16>
    %9 = arith.extf %8 : vector<64x128xbf16> to vector<64x128xf32>
    %c1_9 = arith.constant 1 : index
    %c0_10 = arith.constant 0 : index
    %c0_11 = arith.constant 0 : index
    %10 = vector.load %arg2[%c1_9, %c0_10, %c0_11] : memref<9x1x128xf32, #tpu.memory_space<vmem>>, vector<1x1x128xf32>
    %11 = vector.shape_cast %10 : vector<1x1x128xf32> to vector<1x128xf32>
    %12 = vector.broadcast %11 : vector<1x128xf32> to vector<64x128xf32>
    %13 = arith.mulf %9, %12 : vector<64x128xf32>
    %14 = arith.addf %6, %13 : vector<64x128xf32>
    %c0_12 = arith.constant 0 : index
    %c2 = arith.constant 2 : index
    %c0_13 = arith.constant 0 : index
    %c0_14 = arith.constant 0 : index
    %15 = vector.load %arg1[%c0_12, %c2, %c0_13, %c0_14] : memref<1x9x64x128xbf16, #tpu.memory_space<vmem>>, vector<1x1x64x128xbf16>
    %16 = vector.shape_cast %15 : vector<1x1x64x128xbf16> to vector<64x128xbf16>
    %17 = arith.extf %16 : vector<64x128xbf16> to vector<64x128xf32>
    %c2_15 = arith.constant 2 : index
    %c0_16 = arith.constant 0 : index
    %c0_17 = arith.constant 0 : index
    %18 = vector.load %arg2[%c2_15, %c0_16, %c0_17] : memref<9x1x128xf32, #tpu.memory_space<vmem>>, vector<1x1x128xf32>
    %19 = vector.shape_cast %18 : vector<1x1x128xf32> to vector<1x128xf32>
    %20 = vector.broadcast %19 : vector<1x128xf32> to vector<64x128xf32>
    %21 = arith.mulf %17, %20 : vector<64x128xf32>
    %22 = arith.addf %14, %21 : vector<64x128xf32>
    %c0_18 = arith.constant 0 : index
    %c3 = arith.constant 3 : index
    %c0_19 = arith.constant 0 : index
    %c0_20 = arith.constant 0 : index
    %23 = vector.load %arg1[%c0_18, %c3, %c0_19, %c0_20] : memref<1x9x64x128xbf16, #tpu.memory_space<vmem>>, vector<1x1x64x128xbf16>
    %24 = vector.shape_cast %23 : vector<1x1x64x128xbf16> to vector<64x128xbf16>
    %25 = arith.extf %24 : vector<64x128xbf16> to vector<64x128xf32>
    %c3_21 = arith.constant 3 : index
    %c0_22 = arith.constant 0 : index
    %c0_23 = arith.constant 0 : index
    %26 = vector.load %arg2[%c3_21, %c0_22, %c0_23] : memref<9x1x128xf32, #tpu.memory_space<vmem>>, vector<1x1x128xf32>
    %27 = vector.shape_cast %26 : vector<1x1x128xf32> to vector<1x128xf32>
    %28 = vector.broadcast %27 : vector<1x128xf32> to vector<64x128xf32>
    %29 = arith.mulf %25, %28 : vector<64x128xf32>
    %30 = arith.addf %22, %29 : vector<64x128xf32>
    %c0_24 = arith.constant 0 : index
    %c4 = arith.constant 4 : index
    %c0_25 = arith.constant 0 : index
    %c0_26 = arith.constant 0 : index
    %31 = vector.load %arg1[%c0_24, %c4, %c0_25, %c0_26] : memref<1x9x64x128xbf16, #tpu.memory_space<vmem>>, vector<1x1x64x128xbf16>
    %32 = vector.shape_cast %31 : vector<1x1x64x128xbf16> to vector<64x128xbf16>
    %33 = arith.extf %32 : vector<64x128xbf16> to vector<64x128xf32>
    %c4_27 = arith.constant 4 : index
    %c0_28 = arith.constant 0 : index
    %c0_29 = arith.constant 0 : index
    %34 = vector.load %arg2[%c4_27, %c0_28, %c0_29] : memref<9x1x128xf32, #tpu.memory_space<vmem>>, vector<1x1x128xf32>
    %35 = vector.shape_cast %34 : vector<1x1x128xf32> to vector<1x128xf32>
    %36 = vector.broadcast %35 : vector<1x128xf32> to vector<64x128xf32>
    %37 = arith.mulf %33, %36 : vector<64x128xf32>
    %38 = arith.addf %30, %37 : vector<64x128xf32>
    %c0_30 = arith.constant 0 : index
    %c5 = arith.constant 5 : index
    %c0_31 = arith.constant 0 : index
    %c0_32 = arith.constant 0 : index
    %39 = vector.load %arg1[%c0_30, %c5, %c0_31, %c0_32] : memref<1x9x64x128xbf16, #tpu.memory_space<vmem>>, vector<1x1x64x128xbf16>
    %40 = vector.shape_cast %39 : vector<1x1x64x128xbf16> to vector<64x128xbf16>
    %41 = arith.extf %40 : vector<64x128xbf16> to vector<64x128xf32>
    %c5_33 = arith.constant 5 : index
    %c0_34 = arith.constant 0 : index
    %c0_35 = arith.constant 0 : index
    %42 = vector.load %arg2[%c5_33, %c0_34, %c0_35] : memref<9x1x128xf32, #tpu.memory_space<vmem>>, vector<1x1x128xf32>
    %43 = vector.shape_cast %42 : vector<1x1x128xf32> to vector<1x128xf32>
    %44 = vector.broadcast %43 : vector<1x128xf32> to vector<64x128xf32>
    %45 = arith.mulf %41, %44 : vector<64x128xf32>
    %46 = arith.addf %38, %45 : vector<64x128xf32>
    %c0_36 = arith.constant 0 : index
    %c6 = arith.constant 6 : index
    %c0_37 = arith.constant 0 : index
    %c0_38 = arith.constant 0 : index
    %47 = vector.load %arg1[%c0_36, %c6, %c0_37, %c0_38] : memref<1x9x64x128xbf16, #tpu.memory_space<vmem>>, vector<1x1x64x128xbf16>
    %48 = vector.shape_cast %47 : vector<1x1x64x128xbf16> to vector<64x128xbf16>
    %49 = arith.extf %48 : vector<64x128xbf16> to vector<64x128xf32>
    %c6_39 = arith.constant 6 : index
    %c0_40 = arith.constant 0 : index
    %c0_41 = arith.constant 0 : index
    %50 = vector.load %arg2[%c6_39, %c0_40, %c0_41] : memref<9x1x128xf32, #tpu.memory_space<vmem>>, vector<1x1x128xf32>
    %51 = vector.shape_cast %50 : vector<1x1x128xf32> to vector<1x128xf32>
    %52 = vector.broadcast %51 : vector<1x128xf32> to vector<64x128xf32>
    %53 = arith.mulf %49, %52 : vector<64x128xf32>
    %54 = arith.addf %46, %53 : vector<64x128xf32>
    %c0_42 = arith.constant 0 : index
    %c7 = arith.constant 7 : index
    %c0_43 = arith.constant 0 : index
    %c0_44 = arith.constant 0 : index
    %55 = vector.load %arg1[%c0_42, %c7, %c0_43, %c0_44] : memref<1x9x64x128xbf16, #tpu.memory_space<vmem>>, vector<1x1x64x128xbf16>
    %56 = vector.shape_cast %55 : vector<1x1x64x128xbf16> to vector<64x128xbf16>
    %57 = arith.extf %56 : vector<64x128xbf16> to vector<64x128xf32>
    %c7_45 = arith.constant 7 : index
    %c0_46 = arith.constant 0 : index
    %c0_47 = arith.constant 0 : index
    %58 = vector.load %arg2[%c7_45, %c0_46, %c0_47] : memref<9x1x128xf32, #tpu.memory_space<vmem>>, vector<1x1x128xf32>
    %59 = vector.shape_cast %58 : vector<1x1x128xf32> to vector<1x128xf32>
    %60 = vector.broadcast %59 : vector<1x128xf32> to vector<64x128xf32>
    %61 = arith.mulf %57, %60 : vector<64x128xf32>
    %62 = arith.addf %54, %61 : vector<64x128xf32>
    %c0_48 = arith.constant 0 : index
    %c8 = arith.constant 8 : index
    %c0_49 = arith.constant 0 : index
    %c0_50 = arith.constant 0 : index
    %63 = vector.load %arg1[%c0_48, %c8, %c0_49, %c0_50] : memref<1x9x64x128xbf16, #tpu.memory_space<vmem>>, vector<1x1x64x128xbf16>
    %64 = vector.shape_cast %63 : vector<1x1x64x128xbf16> to vector<64x128xbf16>
    %65 = arith.extf %64 : vector<64x128xbf16> to vector<64x128xf32>
    %c8_51 = arith.constant 8 : index
    %c0_52 = arith.constant 0 : index
    %c0_53 = arith.constant 0 : index
    %66 = vector.load %arg2[%c8_51, %c0_52, %c0_53] : memref<9x1x128xf32, #tpu.memory_space<vmem>>, vector<1x1x128xf32>
    %67 = vector.shape_cast %66 : vector<1x1x128xf32> to vector<1x128xf32>
    %68 = vector.broadcast %67 : vector<1x128xf32> to vector<64x128xf32>
    %69 = arith.mulf %65, %68 : vector<64x128xf32>
    %70 = arith.addf %62, %69 : vector<64x128xf32>
    %c0_54 = arith.constant 0 : index
    %c0_55 = arith.constant 0 : index
    %71 = vector.load %arg3[%c0_54, %c0_55] : memref<1x128xf32, #tpu.memory_space<vmem>>, vector<1x128xf32>
    %72 = vector.broadcast %71 : vector<1x128xf32> to vector<64x128xf32>
    %73 = arith.addf %70, %72 : vector<64x128xf32>
    %cst = arith.constant 5.000000e-01 : f32
    %74 = vector.broadcast %cst : f32 to vector<64x128xf32>
    %75 = arith.mulf %74, %73 : vector<64x128xf32>
    %76 = math.tanh %75 : vector<64x128xf32>
    %cst_56 = arith.constant 5.000000e-01 : f32
    %77 = vector.broadcast %cst_56 : f32 to vector<64x128xf32>
    %78 = arith.mulf %77, %76 : vector<64x128xf32>
    %cst_57 = arith.constant 5.000000e-01 : f32
    %79 = vector.broadcast %cst_57 : f32 to vector<64x128xf32>
    %80 = arith.addf %78, %79 : vector<64x128xf32>
    %81 = arith.mulf %73, %80 : vector<64x128xf32>
    %cst_58 = arith.constant dense<0.000000e+00> : vector<128xf32>
    %82 = vector.multi_reduction <add>, %81, %cst_58 [0] : vector<64x128xf32> to vector<128xf32>
    %83 = vector.shape_cast %82 : vector<128xf32> to vector<1x128xf32>
    %cst_59 = arith.constant 6.400000e+01 : f32
    %84 = vector.broadcast %cst_59 : f32 to vector<1x128xf32>
    %85 = arith.divf %83, %84 : vector<1x128xf32>
    %86 = arith.truncf %85 : vector<1x128xf32> to vector<1x128xbf16>
    %c0_60 = arith.constant 0 : index
    %c0_61 = arith.constant 0 : index
    %87 = vector.load %arg4[%c0_60, %c0_61] : memref<128x8xbf16, #tpu.memory_space<vmem>>, vector<128x8xbf16>
    %cst_62 = arith.constant dense<0.000000e+00> : vector<1x8xf32>
    %88 = tpu.matmul %86, %87, %cst_62 {dimension_numbers = #tpu.dot_dimension_numbers<[1], [0], [0], [1], [0, 0, 1, 1], [], []>} : vector<1x128xbf16>, vector<128x8xbf16>, vector<1x8xf32> -> vector<1x8xf32>
    %c0_63 = arith.constant 0 : index
    %c0_64 = arith.constant 0 : index
    %89 = vector.load %arg5[%c0_63, %c0_64] : memref<1x8xf32, #tpu.memory_space<vmem>>, vector<1x8xf32>
    %90 = arith.addf %88, %89 : vector<1x8xf32>
    %cst_65 = arith.constant 5.000000e-01 : f32
    %91 = vector.broadcast %cst_65 : f32 to vector<1x8xf32>
    %92 = arith.mulf %91, %90 : vector<1x8xf32>
    %93 = math.tanh %92 : vector<1x8xf32>
    %cst_66 = arith.constant 5.000000e-01 : f32
    %94 = vector.broadcast %cst_66 : f32 to vector<1x8xf32>
    %95 = arith.mulf %94, %93 : vector<1x8xf32>
    %cst_67 = arith.constant 5.000000e-01 : f32
    %96 = vector.broadcast %cst_67 : f32 to vector<1x8xf32>
    %97 = arith.addf %95, %96 : vector<1x8xf32>
    %98 = arith.mulf %90, %97 : vector<1x8xf32>
    %99 = arith.truncf %98 : vector<1x8xf32> to vector<1x8xbf16>
    %c0_68 = arith.constant 0 : index
    %c0_69 = arith.constant 0 : index
    %100 = vector.load %arg6[%c0_68, %c0_69] : memref<8x128xbf16, #tpu.memory_space<vmem>>, vector<8x128xbf16>
    %cst_70 = arith.constant dense<0.000000e+00> : vector<1x128xf32>
    %101 = tpu.matmul %99, %100, %cst_70 {dimension_numbers = #tpu.dot_dimension_numbers<[1], [0], [0], [1], [0, 0, 1, 1], [], []>} : vector<1x8xbf16>, vector<8x128xbf16>, vector<1x128xf32> -> vector<1x128xf32>
    %c0_71 = arith.constant 0 : index
    %c0_72 = arith.constant 0 : index
    %102 = vector.load %arg7[%c0_71, %c0_72] : memref<1x128xf32, #tpu.memory_space<vmem>>, vector<1x128xf32>
    %103 = arith.addf %101, %102 : vector<1x128xf32>
    %cst_73 = arith.constant 5.000000e-01 : f32
    %104 = vector.broadcast %cst_73 : f32 to vector<1x128xf32>
    %105 = arith.mulf %104, %103 : vector<1x128xf32>
    %106 = math.tanh %105 : vector<1x128xf32>
    %cst_74 = arith.constant 5.000000e-01 : f32
    %107 = vector.broadcast %cst_74 : f32 to vector<1x128xf32>
    %108 = arith.mulf %107, %106 : vector<1x128xf32>
    %cst_75 = arith.constant 5.000000e-01 : f32
    %109 = vector.broadcast %cst_75 : f32 to vector<1x128xf32>
    %110 = arith.addf %108, %109 : vector<1x128xf32>
    %111 = vector.broadcast %110 : vector<1x128xf32> to vector<64x128xf32>
    %112 = arith.mulf %81, %111 : vector<64x128xf32>
    %113 = arith.truncf %112 : vector<64x128xf32> to vector<64x128xbf16>
    %c0_76 = arith.constant 0 : index
    %c0_77 = arith.constant 0 : index
    %114 = vector.load %arg8[%c0_76, %c0_77] : memref<128x32xbf16, #tpu.memory_space<vmem>>, vector<128x32xbf16>
    %cst_78 = arith.constant dense<0.000000e+00> : vector<64x32xf32>
    %115 = tpu.matmul %113, %114, %cst_78 {dimension_numbers = #tpu.dot_dimension_numbers<[1], [0], [0], [1], [0, 0, 1, 1], [], []>} : vector<64x128xbf16>, vector<128x32xbf16>, vector<64x32xf32> -> vector<64x32xf32>
    %c0_79 = arith.constant 0 : index
    %c0_80 = arith.constant 0 : index
    %116 = vector.load %arg9[%c0_79, %c0_80] : memref<1x32xf32, #tpu.memory_space<vmem>>, vector<1x32xf32>
    %117 = vector.broadcast %116 : vector<1x32xf32> to vector<64x32xf32>
    %118 = arith.addf %115, %117 : vector<64x32xf32>
    %119 = arith.truncf %118 : vector<64x32xf32> to vector<64x32xbf16>
    %c0_81 = arith.constant 0 : index
    %c0_82 = arith.constant 0 : index
    %c0_83 = arith.constant 0 : index
    %120 = vector.load %arg10[%c0_81, %c0_82, %c0_83] : memref<1x64x32xbf16, #tpu.memory_space<vmem>>, vector<1x64x32xbf16>
    %121 = vector.shape_cast %120 : vector<1x64x32xbf16> to vector<64x32xbf16>
    %122 = vector.shape_cast %119 : vector<64x32xbf16> to vector<1x64x32xbf16>
    tpu.vector_store %arg10[%c0_81, %c0_82, %c0_83], %122 {strides = array<i32>} : memref<1x64x32xbf16, #tpu.memory_space<vmem>>, vector<1x64x32xbf16>,
    return
  }
  func.func @transform_0(%arg0: i32) -> (i32, i32, i32, i32) {
    %c0_i32 = arith.constant 0 : i32
    %c0_i32_0 = arith.constant 0 : i32
    %c0_i32_1 = arith.constant 0 : i32
    %c0_i32_2 = arith.constant 0 : i32
    return %arg0, %c0_i32, %c0_i32_0, %c0_i32_1 : i32, i32, i32, i32
  }
  func.func @transform_1(%arg0: i32) -> (i32, i32, i32) {
    %c0_i32 = arith.constant 0 : i32
    %c0_i32_0 = arith.constant 0 : i32
    %c0_i32_1 = arith.constant 0 : i32
    %c0_i32_2 = arith.constant 0 : i32
    return %c0_i32, %c0_i32_0, %c0_i32_1 : i32, i32, i32
  }
  func.func @transform_2(%arg0: i32) -> (i32, i32) {
    %c0_i32 = arith.constant 0 : i32
    %c0_i32_0 = arith.constant 0 : i32
    %c0_i32_1 = arith.constant 0 : i32
    return %c0_i32, %c0_i32_0 : i32, i32
  }
  func.func @transform_3(%arg0: i32) -> (i32, i32) {
    %c0_i32 = arith.constant 0 : i32
    %c0_i32_0 = arith.constant 0 : i32
    %c0_i32_1 = arith.constant 0 : i32
    return %c0_i32, %c0_i32_0 : i32, i32
  }
  func.func @transform_4(%arg0: i32) -> (i32, i32) {
    %c0_i32 = arith.constant 0 : i32
    %c0_i32_0 = arith.constant 0 : i32
    %c0_i32_1 = arith.constant 0 : i32
    return %c0_i32, %c0_i32_0 : i32, i32
  }
  func.func @transform_5(%arg0: i32) -> (i32, i32) {
    %c0_i32 = arith.constant 0 : i32
    %c0_i32_0 = arith.constant 0 : i32
    %c0_i32_1 = arith.constant 0 : i32
    return %c0_i32, %c0_i32_0 : i32, i32
  }
  func.func @transform_6(%arg0: i32) -> (i32, i32) {
    %c0_i32 = arith.constant 0 : i32
    %c0_i32_0 = arith.constant 0 : i32
    %c0_i32_1 = arith.constant 0 : i32
    return %c0_i32, %c0_i32_0 : i32, i32
  }
  func.func @transform_7(%arg0: i32) -> (i32, i32) {
    %c0_i32 = arith.constant 0 : i32
    %c0_i32_0 = arith.constant 0 : i32
    %c0_i32_1 = arith.constant 0 : i32
    return %c0_i32, %c0_i32_0 : i32, i32
  }
  func.func @transform_8(%arg0: i32) -> (i32, i32) {
    %c0_i32 = arith.constant 0 : i32
    %c0_i32_0 = arith.constant 0 : i32
    %c0_i32_1 = arith.constant 0 : i32
    return %c0_i32, %c0_i32_0 : i32, i32
  }
  func.func @transform_9(%arg0: i32) -> (i32, i32, i32) {
    %c0_i32 = arith.constant 0 : i32
    %c0_i32_0 = arith.constant 0 : i32
    %c0_i32_1 = arith.constant 0 : i32
    return %arg0, %c0_i32, %c0_i32_0 : i32, i32, i32
  }
}

module attributes {stable_mosaic.version = 11 : i64} {
  func.func @kernel(%arg0: i32, %arg1: memref<2x2560xbf16, #tpu.memory_space<vmem>>, %arg2: memref<2560x64xbf16, #tpu.memory_space<vmem>>, %arg3: memref<3x64xf32, #tpu.memory_space<vmem>>, %arg4: memref<64x10xbf16, #tpu.memory_space<vmem>>, %arg5: memref<1x10xf32, #tpu.memory_space<vmem>>, %arg6: memref<2x10xf32, #tpu.memory_space<vmem>>) attributes {dimension_semantics = [#tpu.dimension_semantics<arbitrary>], iteration_bounds = array<i64: 1>, scalar_prefetch = 0 : i64, scratch_operands = 0 : i64, tpu.core_type = #tpu.core_type<tc>, window_params = [{pipeline_mode = #tpu.pipeline_mode<synchronous>, transform_indices = @transform_0, window_bounds = array<i64: 2, 2560>}, {pipeline_mode = #tpu.pipeline_mode<synchronous>, transform_indices = @transform_1, window_bounds = array<i64: 2560, 64>}, {pipeline_mode = #tpu.pipeline_mode<synchronous>, transform_indices = @transform_2, window_bounds = array<i64: 3, 64>}, {pipeline_mode = #tpu.pipeline_mode<synchronous>, transform_indices = @transform_3, window_bounds = array<i64: 64, 10>}, {pipeline_mode = #tpu.pipeline_mode<synchronous>, transform_indices = @transform_4, window_bounds = array<i64: 1, 10>}, {pipeline_mode = #tpu.pipeline_mode<synchronous>, transform_indices = @transform_5, window_bounds = array<i64: 2, 10>}]} {
    %c0 = arith.constant 0 : index
    %c0_0 = arith.constant 0 : index
    %0 = vector.load %arg1[%c0, %c0_0] : memref<2x2560xbf16, #tpu.memory_space<vmem>>, vector<2x2560xbf16>
    %c0_1 = arith.constant 0 : index
    %c0_2 = arith.constant 0 : index
    %1 = vector.load %arg2[%c0_1, %c0_2] : memref<2560x64xbf16, #tpu.memory_space<vmem>>, vector<2560x64xbf16>
    %cst = arith.constant dense<0.000000e+00> : vector<2x64xf32>
    %2 = tpu.matmul %0, %1, %cst {dimension_numbers = #tpu.dot_dimension_numbers<[1], [0], [0], [1], [0, 0, 1, 1], [], []>} : vector<2x2560xbf16>, vector<2560x64xbf16>, vector<2x64xf32> -> vector<2x64xf32>
    %c0_3 = arith.constant 0 : index
    %c0_4 = arith.constant 0 : index
    %3 = vector.load %arg3[%c0_3, %c0_4] : memref<3x64xf32, #tpu.memory_space<vmem>>, vector<1x64xf32>
    %4 = vector.broadcast %3 : vector<1x64xf32> to vector<2x64xf32>
    %5 = arith.addf %2, %4 : vector<2x64xf32>
    %cst_5 = arith.constant 0.000000e+00 : f32
    %6 = vector.broadcast %cst_5 : f32 to vector<2x64xf32>
    %7 = arith.maximumf %5, %6 : vector<2x64xf32>
    %c1 = arith.constant 1 : index
    %c0_6 = arith.constant 0 : index
    %8 = vector.load %arg3[%c1, %c0_6] : memref<3x64xf32, #tpu.memory_space<vmem>>, vector<1x64xf32>
    %9 = vector.broadcast %8 : vector<1x64xf32> to vector<2x64xf32>
    %10 = arith.mulf %7, %9 : vector<2x64xf32>
    %c2 = arith.constant 2 : index
    %c0_7 = arith.constant 0 : index
    %11 = vector.load %arg3[%c2, %c0_7] : memref<3x64xf32, #tpu.memory_space<vmem>>, vector<1x64xf32>
    %12 = vector.broadcast %11 : vector<1x64xf32> to vector<2x64xf32>
    %13 = arith.addf %10, %12 : vector<2x64xf32>
    %14 = arith.truncf %13 : vector<2x64xf32> to vector<2x64xbf16>
    %c0_8 = arith.constant 0 : index
    %c0_9 = arith.constant 0 : index
    %15 = vector.load %arg4[%c0_8, %c0_9] : memref<64x10xbf16, #tpu.memory_space<vmem>>, vector<64x10xbf16>
    %cst_10 = arith.constant dense<0.000000e+00> : vector<2x10xf32>
    %16 = tpu.matmul %14, %15, %cst_10 {dimension_numbers = #tpu.dot_dimension_numbers<[1], [0], [0], [1], [0, 0, 1, 1], [], []>} : vector<2x64xbf16>, vector<64x10xbf16>, vector<2x10xf32> -> vector<2x10xf32>
    %c0_11 = arith.constant 0 : index
    %c0_12 = arith.constant 0 : index
    %17 = vector.load %arg5[%c0_11, %c0_12] : memref<1x10xf32, #tpu.memory_space<vmem>>, vector<1x10xf32>
    %18 = vector.broadcast %17 : vector<1x10xf32> to vector<2x10xf32>
    %19 = arith.addf %16, %18 : vector<2x10xf32>
    %cst_13 = arith.constant dense<0xFF800000> : vector<2xf32>
    %20 = vector.multi_reduction <maximumf>, %19, %cst_13 [1] : vector<2x10xf32> to vector<2xf32>
    %21 = vector.shape_cast %20 : vector<2xf32> to vector<2x1xf32>
    %22 = vector.broadcast %21 : vector<2x1xf32> to vector<2x10xf32>
    %23 = arith.subf %19, %22 : vector<2x10xf32>
    %24 = math.exp %23 : vector<2x10xf32>
    %cst_14 = arith.constant dense<0.000000e+00> : vector<2xf32>
    %25 = vector.multi_reduction <add>, %24, %cst_14 [1] : vector<2x10xf32> to vector<2xf32>
    %26 = vector.shape_cast %25 : vector<2xf32> to vector<2x1xf32>
    %27 = math.log %26 : vector<2x1xf32>
    %28 = vector.broadcast %27 : vector<2x1xf32> to vector<2x10xf32>
    %29 = arith.subf %23, %28 : vector<2x10xf32>
    %c0_15 = arith.constant 0 : index
    %c0_16 = arith.constant 0 : index
    %30 = vector.load %arg6[%c0_15, %c0_16] : memref<2x10xf32, #tpu.memory_space<vmem>>, vector<2x10xf32>
    tpu.vector_store %arg6[%c0_15, %c0_16], %29 {strides = array<i32>} : memref<2x10xf32, #tpu.memory_space<vmem>>, vector<2x10xf32>,
    return
  }
  func.func @transform_0(%arg0: i32) -> (i32, i32) {
    %c0_i32 = arith.constant 0 : i32
    %c0_i32_0 = arith.constant 0 : i32
    %c0_i32_1 = arith.constant 0 : i32
    return %c0_i32, %c0_i32_0 : i32, i32
  }
  func.func @transform_1(%arg0: i32) -> (i32, i32) {
    %c0_i32 = arith.constant 0 : i32
    %c0_i32_0 = arith.constant 0 : i32
    %c0_i32_1 = arith.constant 0 : i32
    return %c0_i32, %c0_i32_0 : i32, i32
  }
  func.func @transform_2(%arg0: i32) -> (i32, i32) {
    %c0_i32 = arith.constant 0 : i32
    %c0_i32_0 = arith.constant 0 : i32
    %c0_i32_1 = arith.constant 0 : i32
    return %c0_i32, %c0_i32_0 : i32, i32
  }
  func.func @transform_3(%arg0: i32) -> (i32, i32) {
    %c0_i32 = arith.constant 0 : i32
    %c0_i32_0 = arith.constant 0 : i32
    %c0_i32_1 = arith.constant 0 : i32
    return %c0_i32, %c0_i32_0 : i32, i32
  }
  func.func @transform_4(%arg0: i32) -> (i32, i32) {
    %c0_i32 = arith.constant 0 : i32
    %c0_i32_0 = arith.constant 0 : i32
    %c0_i32_1 = arith.constant 0 : i32
    return %c0_i32, %c0_i32_0 : i32, i32
  }
  func.func @transform_5(%arg0: i32) -> (i32, i32) {
    %c0_i32 = arith.constant 0 : i32
    %c0_i32_0 = arith.constant 0 : i32
    %c0_i32_1 = arith.constant 0 : i32
    return %c0_i32, %c0_i32_0 : i32, i32
  }
}

module attributes {stable_mosaic.version = 11 : i64} {
  func.func @_head_pool_kernel(%arg0: i32, %arg1: i32, %arg2: memref<1x64x32xbf16, #tpu.memory_space<vmem>>, %arg3: memref<32x512xbf16, #tpu.memory_space<vmem>>, %arg4: memref<1x512xf32, #tpu.memory_space<vmem>>, %arg5: memref<1x1x512xbf16, #tpu.memory_space<vmem>>) attributes {dimension_semantics = [#tpu.dimension_semantics<parallel>, #tpu.dimension_semantics<parallel>], iteration_bounds = array<i64: 2, 5>, scalar_prefetch = 0 : i64, scratch_operands = 0 : i64, tpu.core_type = #tpu.core_type<tc>, window_params = [{transform_indices = @transform_0, window_bounds = array<i64: 1, 64, 32>}, {transform_indices = @transform_1, window_bounds = array<i64: 32, 512>}, {transform_indices = @transform_2, window_bounds = array<i64: 1, 512>}, {transform_indices = @transform_3, window_bounds = array<i64: 1, 1, 512>}]} {
    %c0 = arith.constant 0 : index
    %c0_0 = arith.constant 0 : index
    %c0_1 = arith.constant 0 : index
    %0 = vector.load %arg2[%c0, %c0_0, %c0_1] : memref<1x64x32xbf16, #tpu.memory_space<vmem>>, vector<1x64x32xbf16>
    %1 = vector.shape_cast %0 : vector<1x64x32xbf16> to vector<64x32xbf16>
    %c0_2 = arith.constant 0 : index
    %c0_3 = arith.constant 0 : index
    %2 = vector.load %arg3[%c0_2, %c0_3] : memref<32x512xbf16, #tpu.memory_space<vmem>>, vector<32x512xbf16>
    %cst = arith.constant dense<0.000000e+00> : vector<64x512xf32>
    %3 = tpu.matmul %1, %2, %cst {dimension_numbers = #tpu.dot_dimension_numbers<[1], [0], [0], [1], [0, 0, 1, 1], [], []>} : vector<64x32xbf16>, vector<32x512xbf16>, vector<64x512xf32> -> vector<64x512xf32>
    %c0_4 = arith.constant 0 : index
    %c0_5 = arith.constant 0 : index
    %4 = vector.load %arg4[%c0_4, %c0_5] : memref<1x512xf32, #tpu.memory_space<vmem>>, vector<1x512xf32>
    %5 = vector.broadcast %4 : vector<1x512xf32> to vector<64x512xf32>
    %6 = arith.addf %3, %5 : vector<64x512xf32>
    %cst_6 = arith.constant 5.000000e-01 : f32
    %7 = vector.broadcast %cst_6 : f32 to vector<64x512xf32>
    %8 = arith.mulf %7, %6 : vector<64x512xf32>
    %9 = math.tanh %8 : vector<64x512xf32>
    %cst_7 = arith.constant 5.000000e-01 : f32
    %10 = vector.broadcast %cst_7 : f32 to vector<64x512xf32>
    %11 = arith.mulf %10, %9 : vector<64x512xf32>
    %cst_8 = arith.constant 5.000000e-01 : f32
    %12 = vector.broadcast %cst_8 : f32 to vector<64x512xf32>
    %13 = arith.addf %11, %12 : vector<64x512xf32>
    %14 = arith.mulf %6, %13 : vector<64x512xf32>
    %cst_9 = arith.constant dense<0.000000e+00> : vector<512xf32>
    %15 = vector.multi_reduction <add>, %14, %cst_9 [0] : vector<64x512xf32> to vector<512xf32>
    %16 = vector.shape_cast %15 : vector<512xf32> to vector<1x512xf32>
    %cst_10 = arith.constant 6.400000e+01 : f32
    %17 = vector.broadcast %cst_10 : f32 to vector<1x512xf32>
    %18 = arith.divf %16, %17 : vector<1x512xf32>
    %19 = arith.truncf %18 : vector<1x512xf32> to vector<1x512xbf16>
    %c0_11 = arith.constant 0 : index
    %c0_12 = arith.constant 0 : index
    %c0_13 = arith.constant 0 : index
    %20 = vector.load %arg5[%c0_11, %c0_12, %c0_13] : memref<1x1x512xbf16, #tpu.memory_space<vmem>>, vector<1x1x512xbf16>
    %21 = vector.shape_cast %20 : vector<1x1x512xbf16> to vector<1x512xbf16>
    %22 = vector.shape_cast %19 : vector<1x512xbf16> to vector<1x1x512xbf16>
    tpu.vector_store %arg5[%c0_11, %c0_12, %c0_13], %22 {strides = array<i32>} : memref<1x1x512xbf16, #tpu.memory_space<vmem>>, vector<1x1x512xbf16>,
    return
  }
  func.func @transform_0(%arg0: i32, %arg1: i32) -> (i32, i32, i32) {
    %c0_i32 = arith.constant 0 : i32
    %c0_i32_0 = arith.constant 0 : i32
    %c0_i32_1 = arith.constant 0 : i32
    return %arg0, %c0_i32, %c0_i32_0 : i32, i32, i32
  }
  func.func @transform_1(%arg0: i32, %arg1: i32) -> (i32, i32) {
    %c0_i32 = arith.constant 0 : i32
    %c0_i32_0 = arith.constant 0 : i32
    return %c0_i32, %arg1 : i32, i32
  }
  func.func @transform_2(%arg0: i32, %arg1: i32) -> (i32, i32) {
    %c0_i32 = arith.constant 0 : i32
    %c0_i32_0 = arith.constant 0 : i32
    return %c0_i32, %arg1 : i32, i32
  }
  func.func @transform_3(%arg0: i32, %arg1: i32) -> (i32, i32, i32) {
    %c0_i32 = arith.constant 0 : i32
    %c0_i32_0 = arith.constant 0 : i32
    return %arg0, %c0_i32, %arg1 : i32, i32, i32
  }
}

</mosaic_0001>

<llo_original>
// kernel: _lambda_.6
$region0: #{_lambda_.6}
  #allocation0 [shape = 'u32[]', space=smem, size = 0x4, offset = 0x4, fixed_abs, tag = 'smem constant byte address 0x4 - core index']
  #allocation1 [shape = 'u32[144,128]{1,0:T(1,128)}', space=vmem, size = 0x12000, scoped, tag = 'internal scratch']
  %s0 = inlined_call_operand.vmem [shape: bf16[512,32], index: 0, kind: input, shape index: {}]
  %s1 = inlined_call_operand.vmem [shape: bf16[32,128], index: 1, kind: input, shape index: {}]
  %s2 = inlined_call_operand.vmem [shape: f32[1,128], index: 2, kind: input, shape index: {}]
  %s3 = inlined_call_operand.vmem [shape: bf16[512,128], index: 3, kind: output, shape index: {}]
  %s4 = sld [smem:[#allocation0]]
  $region45: #{_lambda_.6} parent=0
    _
  %s6 = ssub.s32 1, %s4
  %s7 = scalar_select 0, %s6, %s4
  loop: start=0, step=1, limit=4
  $region2: #{_lambda_.6} parent=0 // loop_pre_header
    _
  $region3: #{_lambda_.6} parent=0 // loop_header
    %s9 = sphi 0, %s13
    %p10 = scmp.ge.s32.totalorder %s9, 4
    %s16 = sphi 0, %s28
    %s17 = sphi 0, %s24
    %s18 = sphi 0, %s16
    %s19 = sphi 0, %s17
    %s20 = sphi 0, %s18
    %s21 = sphi 0, %s19
    %s31 = sphi 0, %s33
    %s34 = sphi 0, %s31
    %s35 = sphi 0, %s34
    %s51 = sphi 0, %s35
    %s57 = sphi 0, %s59
    %s60 = sphi 0, %s57
    %s61 = sphi 0, %s60
    %s77 = sphi 0, %s61
    %s83 = sphi 0, %s85
    %s86 = sphi 0, %s83
    %s87 = sphi 0, %s86
    %s103 = sphi 0, %s87
    %s111 = sphi 0, %s113
    %s114 = sphi 0, %s111
    %s115 = sphi 0, %s114
    %s131 = sphi 0, %s115
  $region4: #{_lambda_.6} parent=0 // loop_header_branch
    %12 = sbr.rel (%p10) target = $region8
  $region5: #{_lambda_.6} parent=0 // loop_body
    %s14 = ssub.s32 %s9, 1
    %s15 = ssub.s32 %s9, 2
    %s22 = sadd.s32 1, %s17
    %p23 = scmp.ge.s32.totalorder %s22, 1
    %s24 = scalar_select %p23, 0, %s22
    %s25 = sadd.s32 1, %s16
    %s26 = scalar_select %p23, %s25, %s16
    %p27 = scmp.ge.s32.totalorder %s26, 2
    %s28 = scalar_select %p27, 0, %s26
    %s29 = ssub.s32 %s16, %s28
    %p30 = scmp.eq.s32.totalorder %s29, 0
    %s32 = sadd.s32 %s31, 1
    %s33 = scalar_select %p30, %s31, %s32
    %p36 = pneg %p30
    %p37 = scmp.eq.s32.totalorder %s9, 1
    %p38 = por %p36, %p37
    %p39 = scmp.ne.s32.totalorder %s31, %s34
    %p40 = scmp.eq.s32.totalorder %s9, 0
    %p41 = por %p39, %p40
    %p42 = scmp.ne.s32.totalorder %s31, %s34
    %p43 = scmp.eq.s32.totalorder %s14, 1
    %p44 = por %p42, %p43
    %p45 = scmp.ne.s32.totalorder %s34, %s35
    %p46 = scmp.eq.s32.totalorder %s14, 0
    %p47 = por %p45, %p46
    %p48 = scmp.ne.s32.totalorder %s34, %s35
    %p49 = scmp.eq.s32.totalorder %s15, 1
    %p50 = por %p48, %p49
    %p52 = scmp.ne.s32.totalorder %s35, %s51
    %p53 = scmp.eq.s32.totalorder %s15, 0
    %p54 = por %p52, %p53
    %s55 = ssub.s32 %s17, %s24
    %p56 = scmp.eq.s32.totalorder %s55, 0
    %s58 = sadd.s32 %s57, 1
    %s59 = scalar_select %p56, %s57, %s58
    %p62 = pneg %p56
    %p63 = scmp.eq.s32.totalorder %s9, 1
    %p64 = por %p62, %p63
    %p65 = scmp.ne.s32.totalorder %s57, %s60
    %p66 = scmp.eq.s32.totalorder %s9, 0
    %p67 = por %p65, %p66
    %p68 = scmp.ne.s32.totalorder %s57, %s60
    %p69 = scmp.eq.s32.totalorder %s14, 1
    %p70 = por %p68, %p69
    %p71 = scmp.ne.s32.totalorder %s60, %s61
    %p72 = scmp.eq.s32.totalorder %s14, 0
    %p73 = por %p71, %p72
    %p74 = scmp.ne.s32.totalorder %s60, %s61
    %p75 = scmp.eq.s32.totalorder %s15, 1
    %p76 = por %p74, %p75
    %p78 = scmp.ne.s32.totalorder %s61, %s77
    %p79 = scmp.eq.s32.totalorder %s15, 0
    %p80 = por %p78, %p79
    %s81 = ssub.s32 %s17, %s24
    %p82 = scmp.eq.s32.totalorder %s81, 0
    %s84 = sadd.s32 %s83, 1
    %s85 = scalar_select %p82, %s83, %s84
    %p88 = pneg %p82
    %p89 = scmp.eq.s32.totalorder %s9, 1
    %p90 = por %p88, %p89
    %p91 = scmp.ne.s32.totalorder %s83, %s86
    %p92 = scmp.eq.s32.totalorder %s9, 0
    %p93 = por %p91, %p92
    %p94 = scmp.ne.s32.totalorder %s83, %s86
    %p95 = scmp.eq.s32.totalorder %s14, 1
    %p96 = por %p94, %p95
    %p97 = scmp.ne.s32.totalorder %s86, %s87
    %p98 = scmp.eq.s32.totalorder %s14, 0
    %p99 = por %p97, %p98
    %p100 = scmp.ne.s32.totalorder %s86, %s87
    %p101 = scmp.eq.s32.totalorder %s15, 1
    %p102 = por %p100, %p101
    %p104 = scmp.ne.s32.totalorder %s87, %s103
    %p105 = scmp.eq.s32.totalorder %s15, 0
    %p106 = por %p104, %p105
    %s107 = ssub.s32 %s16, %s28
    %s108 = ssub.s32 %s17, %s24
    %s109 = sor.u32 %s107, %s108
    %p110 = scmp.eq.s32.totalorder %s109, 0
    %s112 = sadd.s32 %s111, 1
    %s113 = scalar_select %p110, %s111, %s112
    %p116 = pneg %p110
    %p117 = scmp.eq.s32.totalorder %s9, 1
    %p118 = por %p116, %p117
    %p119 = scmp.ne.s32.totalorder %s111, %s114
    %p120 = scmp.eq.s32.totalorder %s9, 0
    %p121 = por %p119, %p120
    %p122 = scmp.ne.s32.totalorder %s111, %s114
    %p123 = scmp.eq.s32.totalorder %s14, 1
    %p124 = por %p122, %p123
    %p125 = scmp.ne.s32.totalorder %s114, %s115
    %p126 = scmp.eq.s32.totalorder %s14, 0
    %p127 = por %p125, %p126
    %p128 = scmp.ne.s32.totalorder %s114, %s115
    %p129 = scmp.eq.s32.totalorder %s15, 1
    %p130 = por %p128, %p129
    %p132 = scmp.ne.s32.totalorder %s115, %s131
    %p133 = scmp.eq.s32.totalorder %s15, 0
    %p134 = por %p132, %p133
    %p135 = scmp.le.s32.totalorder 1, %s9
    %p136 = scmp.lt.s32.totalorder %s9, 3
    %p137 = pnand %p135, %p136
    %p138 = pneg %p137
    // Predicated region
    $region9: #{_lambda_.6} parent=5 // pred_check
      _
    $region10: #{_lambda_.6} parent=5 // pred_check_branch
      %140 = sbr.rel (%p137) target = $region12
    $region11: #{_lambda_.6} parent=5 // pred_region
      %s141 = ssub.s32 %s9, 1
      // Predicated region
      $region13: #{_lambda_.6} parent=11 // pred_check
        %p142 = pneg %p73
      $region14: #{_lambda_.6} parent=11 // pred_check_branch
        %144 = sbr.rel (%p142) target = $region16
      $region15: #{_lambda_.6} parent=11 // pred_region
        %p145 = scmp.lt.s32.totalorder %s19, 0
        %s146 = scalar_select %p145, %s19, 0
        %s147 = smul.addr %s146, 4
        %s148 = scalar_lea.vmem %s1, %s147
      $region16: #{_lambda_.6} parent=11 // pred_fallthru
        _
      // Predicated region
      $region17: #{_lambda_.6} parent=11 // pred_check
        %p149 = pneg %p99
      $region18: #{_lambda_.6} parent=11 // pred_check_branch
        %151 = sbr.rel (%p149) target = $region20
      $region19: #{_lambda_.6} parent=11 // pred_region
        %p152 = scmp.lt.s32.totalorder %s19, 0
        %s153 = scalar_select %p152, %s19, 0
        %s154 = scalar_lea.vmem %s2, %s153
      $region20: #{_lambda_.6} parent=11 // pred_fallthru
        _
    $region12: #{_lambda_.6} parent=5 // pred_fallthru
      _
    %p155 = scmp.lt.s32.totalorder %s9, 2
    // Predicated region
    $region21: #{_lambda_.6} parent=5 // pred_check
      %p156 = pneg %p155
    $region22: #{_lambda_.6} parent=5 // pred_check_branch
      %158 = sbr.rel (%p156) target = $region24
    $region23: #{_lambda_.6} parent=5 // pred_region
      // Predicated region
      $region25: #{_lambda_.6} parent=23 // pred_check
        %p159 = pneg %p41
      $region26: #{_lambda_.6} parent=23 // pred_check_branch
        %161 = sbr.rel (%p159) target = $region28
      $region27: #{_lambda_.6} parent=23 // pred_region
        %s162 = smul.u32 32, %s16
        %p163 = scmp.lt.s32.totalorder %s162, 63
        %s164 = scalar_select %p163, %s162, 63
        %s165 = smul.addr %s164, 4
        %s166 = scalar_lea.vmem %s0, %s165
        %s167 = smul.u32 32, %s16
      $region28: #{_lambda_.6} parent=23 // pred_fallthru
        _
    $region24: #{_lambda_.6} parent=5 // pred_fallthru
      _
    %p168 = scmp.le.s32.totalorder 1, %s9
    %p169 = scmp.lt.s32.totalorder %s9, 3
    %p170 = pnand %p168, %p169
    %p171 = pneg %p170
    // Predicated region
    $region29: #{_lambda_.6} parent=5 // pred_check
      _
    $region30: #{_lambda_.6} parent=5 // pred_check_branch
      %173 = sbr.rel (%p170) target = $region32
    $region31: #{_lambda_.6} parent=5 // pred_region
      %s174 = ssub.s32 %s9, 1
      %s175 = smul.u32 32, %s18
      %p176 = scmp.lt.s32.totalorder %s175, 63
      %s177 = scalar_select %p176, %s175, 63
      %s178 = smul.addr %s177, 4
      %s179 = scalar_lea.vmem %s0, %s178
      %p180 = pneg %p47
      %p181 = pneg %p44
      %p182 = scmp.lt.s32.totalorder %s19, 0
      %s183 = scalar_select %p182, %s19, 0
      %s184 = smul.addr %s183, 4
      %s185 = scalar_lea.vmem %s1, %s184
      %p186 = pneg %p73
      %p187 = pneg %p70
      %p188 = scmp.lt.s32.totalorder %s19, 0
      %s189 = scalar_select %p188, %s19, 0
      %s190 = scalar_lea.vmem %s2, %s189
      %p191 = pneg %p99
      %p192 = pneg %p96
      %p193 = pneg %p127
      %p194 = pneg %p124
      %s195 = smul.u32 32, %s18
      %p196 = scmp.lt.s32.totalorder %s195, 63
      %s197 = scalar_select %p196, %s195, 63
      %p198 = scmp.lt.s32.totalorder %s19, 0
      %s199 = scalar_select %p198, %s19, 0
      %s200 = sadd.s32 %s199, %s197
      %s201 = smul.addr %s200, 4
      %s202 = scalar_lea.vmem %s3, %s201
      %s203 = smul.u32 32, %s18
      %p204 = scmp.lt.s32.totalorder %s203, 63
      %s205 = scalar_select %p204, %s203, 63
      %s206 = smul.addr %s205, 4
      %s207 = scalar_lea.vmem %s0, %s206
      %s208 = smul.u32 32, %s18
      %p209 = scmp.lt.s32.totalorder %s19, 0
      %s210 = scalar_select %p209, %s19, 0
      %s211 = smul.addr %s210, 4
      %s212 = scalar_lea.vmem %s1, %s211
      %p213 = scmp.lt.s32.totalorder %s19, 0
      %s214 = scalar_select %p213, %s19, 0
      %s215 = scalar_lea.vmem %s2, %s214
      %s216 = smul.u32 32, %s18
      %p217 = scmp.lt.s32.totalorder %s216, 63
      %s218 = scalar_select %p217, %s216, 63
      %p219 = scmp.lt.s32.totalorder %s19, 0
      %s220 = scalar_select %p219, %s19, 0
      %s221 = sadd.s32 %s220, %s218
      %s222 = smul.addr %s221, 4
      %s223 = scalar_lea.vmem %s3, %s222
      %s224 = smul.u32 32, %s18
      %v226 = vld [vmem:[%s207] sm:$0xf]
      %v227 = vld [vmem:[%s207 + $0x4] sm:$0xf]
      %v228 = vld [vmem:[%s207 + $0x8] sm:$0xf]
      %v229 = vld [vmem:[%s207 + $0xc] sm:$0xf]
      %v230 = vld [vmem:[%s207 + $0x10] sm:$0xf]
      %v231 = vld [vmem:[%s207 + $0x14] sm:$0xf]
      %v232 = vld [vmem:[%s207 + $0x18] sm:$0xf]
      %v233 = vld [vmem:[%s207 + $0x1c] sm:$0xf]
      %v234 = vld [vmem:[%s207 + $0x20] sm:$0xf]
      %v235 = vld [vmem:[%s207 + $0x24] sm:$0xf]
      %v236 = vld [vmem:[%s207 + $0x28] sm:$0xf]
      %v237 = vld [vmem:[%s207 + $0x2c] sm:$0xf]
      %v238 = vld [vmem:[%s207 + $0x30] sm:$0xf]
      %v239 = vld [vmem:[%s207 + $0x34] sm:$0xf]
      %v240 = vld [vmem:[%s207 + $0x38] sm:$0xf]
      %v241 = vld [vmem:[%s207 + $0x3c] sm:$0xf]
      %v242 = vld [vmem:[%s207 + $0x40] sm:$0xf]
      %v243 = vld [vmem:[%s207 + $0x44] sm:$0xf]
      %v244 = vld [vmem:[%s207 + $0x48] sm:$0xf]
      %v245 = vld [vmem:[%s207 + $0x4c] sm:$0xf]
      %v246 = vld [vmem:[%s207 + $0x50] sm:$0xf]
      %v247 = vld [vmem:[%s207 + $0x54] sm:$0xf]
      %v248 = vld [vmem:[%s207 + $0x58] sm:$0xf]
      %v249 = vld [vmem:[%s207 + $0x5c] sm:$0xf]
      %v250 = vld [vmem:[%s207 + $0x60] sm:$0xf]
      %v251 = vld [vmem:[%s207 + $0x64] sm:$0xf]
      %v252 = vld [vmem:[%s207 + $0x68] sm:$0xf]
      %v253 = vld [vmem:[%s207 + $0x6c] sm:$0xf]
      %v254 = vld [vmem:[%s207 + $0x70] sm:$0xf]
      %v255 = vld [vmem:[%s207 + $0x74] sm:$0xf]
      %v256 = vld [vmem:[%s207 + $0x78] sm:$0xf]
      %v257 = vld [vmem:[%s207 + $0x7c] sm:$0xf]
      %v258 = vld [vmem:[%s212] sm:$0xf]
      %v259 = vld [vmem:[%s212 + $0x4] sm:$0xf]
      %v260 = vld [vmem:[%s212 + $0x8] sm:$0xf]
      %v261 = vld [vmem:[%s212 + $0xc] sm:$0xf]
      %v262 = vld [vmem:[%s215] sm:$0x1]
      %v264 = vlaneseq
      %v265 = vshrl.u32 %v264, 7
      %v266 = vsub.s32 0, %v265
      %v267 = vrot.slane %v262, %v266
      %v301 = vunpack.c.l.b16 %v226
      %v302 = vunpack.c.l.b16 %v227
      %v303 = vunpack.c.l.b16 %v228
      %v304 = vunpack.c.l.b16 %v229
      %v305 = vunpack.c.l.b16 %v230
      %v306 = vunpack.c.l.b16 %v231
      %v307 = vunpack.c.l.b16 %v232
      %v308 = vunpack.c.l.b16 %v233
      %v309 = vunpack.c.l.b16 %v234
      %v310 = vunpack.c.l.b16 %v235
      %v311 = vunpack.c.l.b16 %v236
      %v312 = vunpack.c.l.b16 %v237
      %v313 = vunpack.c.l.b16 %v238
      %v314 = vunpack.c.l.b16 %v239
      %v315 = vunpack.c.l.b16 %v240
      %v316 = vunpack.c.l.b16 %v241
      %v317 = vunpack.c.l.b16 %v242
      %v318 = vunpack.c.l.b16 %v243
      %v319 = vunpack.c.l.b16 %v244
      %v320 = vunpack.c.l.b16 %v245
      %v321 = vunpack.c.l.b16 %v246
      %v322 = vunpack.c.l.b16 %v247
      %v323 = vunpack.c.l.b16 %v248
      %v324 = vunpack.c.l.b16 %v249
      %v325 = vunpack.c.l.b16 %v250
      %v326 = vunpack.c.l.b16 %v251
      %v327 = vunpack.c.l.b16 %v252
      %v328 = vunpack.c.l.b16 %v253
      %v329 = vunpack.c.l.b16 %v254
      %v330 = vunpack.c.l.b16 %v255
      %v331 = vunpack.c.l.b16 %v256
      %v332 = vunpack.c.l.b16 %v257
      %v333 = vpack.c.b16 %v302, %v301
      %v334 = vpack.c.b16 %v304, %v303
      %v335 = vpack.c.b16 %v306, %v305
      %v336 = vpack.c.b16 %v308, %v307
      %v337 = vpack.c.b16 %v310, %v309
      %v338 = vpack.c.b16 %v312, %v311
      %v339 = vpack.c.b16 %v314, %v313
      %v340 = vpack.c.b16 %v316, %v315
      %v341 = vpack.c.b16 %v318, %v317
      %v342 = vpack.c.b16 %v320, %v319
      %v343 = vpack.c.b16 %v322, %v321
      %v344 = vpack.c.b16 %v324, %v323
      %v345 = vpack.c.b16 %v326, %v325
      %v346 = vpack.c.b16 %v328, %v327
      %v347 = vpack.c.b16 %v330, %v329
      %v348 = vpack.c.b16 %v332, %v331
      %v353 = vunpack.c.l.b16 %v258
      %v354 = vunpack.c.l.b16 %v259
      %v355 = vunpack.c.l.b16 %v260
      %v356 = vunpack.c.l.b16 %v261
      %v357 = vpack.c.b16 %v354, %v353
      %v358 = vpack.c.b16 %v356, %v355
      %vm361 = vcmask 261120
      %v363 = vsel %vm361, %v333, 0
      %v366 = vsel %vm361, %v334, 0
      %v369 = vsel %vm361, %v335, 0
      %v372 = vsel %vm361, %v336, 0
      %v375 = vsel %vm361, %v337, 0
      %v378 = vsel %vm361, %v338, 0
      %v381 = vsel %vm361, %v339, 0
      %v384 = vsel %vm361, %v340, 0
      %v387 = vsel %vm361, %v341, 0
      %v390 = vsel %vm361, %v342, 0
      %v393 = vsel %vm361, %v343, 0
      %v396 = vsel %vm361, %v344, 0
      %v399 = vsel %vm361, %v345, 0
      %v402 = vsel %vm361, %v346, 0
      %v405 = vsel %vm361, %v347, 0
      %v408 = vsel %vm361, %v348, 0
      %410 = vmatprep.subr.bf16.mxu0 0
      %411 = vmatpush1.bf16.msra.mxu0 %v357
      %412 = vmatprep.subr.bf16.mxu0 0
      %413 = vmatpush1.bf16.msra.mxu0 %v358
      %414 = vmatprep.subr.bf16.mxu0 0
      %415 = vmatpush1.bf16.msra.mxu0 0
      %416 = vmatprep.subr.bf16.mxu0 0
      %417 = vmatpush1.bf16.msra.mxu0 0
      %418 = vmatprep.subr.bf16.mxu0 0
      %419 = vmatpush1.bf16.msra.mxu0 0
      %420 = vmatprep.subr.bf16.mxu0 0
      %421 = vmatpush1.bf16.msra.mxu0 0
      %422 = vmatprep.subr.bf16.mxu0 0
      %423 = vmatpush1.bf16.msra.mxu0 0
      %424 = vmatprep.subr.bf16.mxu0 0
      %425 = vmatpush1.bf16.msra.mxu0 0
      %426 = vmatprep.subr.bf16.mxu0 0
      %427 = vmatpush1.bf16.msra.mxu0 0
      %428 = vmatprep.subr.bf16.mxu0 0
      %429 = vmatpush1.bf16.msra.mxu0 0
      %430 = vmatprep.subr.bf16.mxu0 0
      %431 = vmatpush1.bf16.msra.mxu0 0
      %432 = vmatprep.subr.bf16.mxu0 0
      %433 = vmatpush1.bf16.msra.mxu0 0
      %434 = vmatprep.subr.bf16.mxu0 0
      %435 = vmatpush1.bf16.msra.mxu0 0
      %436 = vmatprep.subr.bf16.mxu0 0
      %437 = vmatpush1.bf16.msra.mxu0 0
      %438 = vmatprep.subr.bf16.mxu0 0
      %439 = vmatpush1.bf16.msra.mxu0 0
      %440 = vmatprep.subr.bf16.mxu0 0
      %441 = vmatpush1.bf16.msra.mxu0 0
      %442 = vmatprep.mubr.bf16.mxu0 0
      %443 = vmatmul.mubr.bf16.gmra.mrb[0].mxu0 %v363
      %v444 = vpop.f32.mrb[0].mxu0
      %v445 = vadd.f32 %v267, %v444
      %v446 = vpop.f32.mrb[0].mxu0
      %v447 = vpop.f32.mrb[0].mxu0
      %v448 = vadd.f32 %v267, %v447
      %v449 = vpop.f32.mrb[0].mxu0
      %450 = vmatprep.mubr.bf16.mxu0 0
      %451 = vmatmul.mubr.bf16.gmra.mrb[0].mxu0 %v366
      %v452 = vpop.f32.mrb[0].mxu0
      %v453 = vadd.f32 %v267, %v452
      %v454 = vpop.f32.mrb[0].mxu0
      %v455 = vpop.f32.mrb[0].mxu0
      %v456 = vadd.f32 %v267, %v455
      %v457 = vpop.f32.mrb[0].mxu0
      %458 = vmatprep.mubr.bf16.mxu0 0
      %459 = vmatmul.mubr.bf16.gmra.mrb[0].mxu0 %v369
      %v460 = vpop.f32.mrb[0].mxu0
      %v461 = vadd.f32 %v267, %v460
      %v462 = vpop.f32.mrb[0].mxu0
      %v463 = vpop.f32.mrb[0].mxu0
      %v464 = vadd.f32 %v267, %v463
      %v465 = vpop.f32.mrb[0].mxu0
      %466 = vmatprep.mubr.bf16.mxu0 0
      %467 = vmatmul.mubr.bf16.gmra.mrb[0].mxu0 %v372
      %v468 = vpop.f32.mrb[0].mxu0
      %v469 = vadd.f32 %v267, %v468
      %v470 = vpop.f32.mrb[0].mxu0
      %v471 = vpop.f32.mrb[0].mxu0
      %v472 = vadd.f32 %v267, %v471
      %v473 = vpop.f32.mrb[0].mxu0
      %474 = vmatprep.mubr.bf16.mxu0 0
      %475 = vmatmul.mubr.bf16.gmra.mrb[0].mxu0 %v375
      %v476 = vpop.f32.mrb[0].mxu0
      %v477 = vadd.f32 %v267, %v476
      %v478 = vpop.f32.mrb[0].mxu0
      %v479 = vpop.f32.mrb[0].mxu0
      %v480 = vadd.f32 %v267, %v479
      %v481 = vpop.f32.mrb[0].mxu0
      %482 = vmatprep.mubr.bf16.mxu0 0
      %483 = vmatmul.mubr.bf16.gmra.mrb[0].mxu0 %v378
      %v484 = vpop.f32.mrb[0].mxu0
      %v485 = vadd.f32 %v267, %v484
      %v486 = vpop.f32.mrb[0].mxu0
      %v487 = vpop.f32.mrb[0].mxu0
      %v488 = vadd.f32 %v267, %v487
      %v489 = vpop.f32.mrb[0].mxu0
      %490 = vmatprep.mubr.bf16.mxu0 0
      %491 = vmatmul.mubr.bf16.gmra.mrb[0].mxu0 %v381
      %v492 = vpop.f32.mrb[0].mxu0
      %v493 = vadd.f32 %v267, %v492
      %v494 = vpop.f32.mrb[0].mxu0
      %v495 = vpop.f32.mrb[0].mxu0
      %v496 = vadd.f32 %v267, %v495
      %v497 = vpop.f32.mrb[0].mxu0
      %498 = vmatprep.mubr.bf16.mxu0 0
      %499 = vmatmul.mubr.bf16.gmra.mrb[0].mxu0 %v384
      %v500 = vpop.f32.mrb[0].mxu0
      %v501 = vadd.f32 %v267, %v500
      %v502 = vpop.f32.mrb[0].mxu0
      %v503 = vpop.f32.mrb[0].mxu0
      %v504 = vadd.f32 %v267, %v503
      %v505 = vpop.f32.mrb[0].mxu0
      %506 = vmatprep.mubr.bf16.mxu0 0
      %507 = vmatmul.mubr.bf16.gmra.mrb[0].mxu0 %v387
      %v508 = vpop.f32.mrb[0].mxu0
      %v509 = vadd.f32 %v267, %v508
      %v510 = vpop.f32.mrb[0].mxu0
      %v511 = vpop.f32.mrb[0].mxu0
      %v512 = vadd.f32 %v267, %v511
      %v513 = vpop.f32.mrb[0].mxu0
      %514 = vmatprep.mubr.bf16.mxu0 0
      %515 = vmatmul.mubr.bf16.gmra.mrb[0].mxu0 %v390
      %v516 = vpop.f32.mrb[0].mxu0
      %v517 = vadd.f32 %v267, %v516
      %v518 = vpop.f32.mrb[0].mxu0
      %v519 = vpop.f32.mrb[0].mxu0
      %v520 = vadd.f32 %v267, %v519
      %v521 = vpop.f32.mrb[0].mxu0
      %522 = vmatprep.mubr.bf16.mxu0 0
      %523 = vmatmul.mubr.bf16.gmra.mrb[0].mxu0 %v393
      %v524 = vpop.f32.mrb[0].mxu0
      %v525 = vadd.f32 %v267, %v524
      %v526 = vpop.f32.mrb[0].mxu0
      %v527 = vpop.f32.mrb[0].mxu0
      %v528 = vadd.f32 %v267, %v527
      %v529 = vpop.f32.mrb[0].mxu0
      %530 = vmatprep.mubr.bf16.mxu0 0
      %531 = vmatmul.mubr.bf16.gmra.mrb[0].mxu0 %v396
      %v532 = vpop.f32.mrb[0].mxu0
      %v533 = vadd.f32 %v267, %v532
      %v534 = vpop.f32.mrb[0].mxu0
      %v535 = vpop.f32.mrb[0].mxu0
      %v536 = vadd.f32 %v267, %v535
      %v537 = vpop.f32.mrb[0].mxu0
      %538 = vmatprep.mubr.bf16.mxu0 0
      %539 = vmatmul.mubr.bf16.gmra.mrb[0].mxu0 %v399
      %v540 = vpop.f32.mrb[0].mxu0
      %v541 = vadd.f32 %v267, %v540
      %v542 = vpop.f32.mrb[0].mxu0
      %v543 = vpop.f32.mrb[0].mxu0
      %v544 = vadd.f32 %v267, %v543
      %v545 = vpop.f32.mrb[0].mxu0
      %546 = vmatprep.mubr.bf16.mxu0 0
      %547 = vmatmul.mubr.bf16.gmra.mrb[0].mxu0 %v402
      %v548 = vpop.f32.mrb[0].mxu0
      %v549 = vadd.f32 %v267, %v548
      %v550 = vpop.f32.mrb[0].mxu0
      %v551 = vpop.f32.mrb[0].mxu0
      %v552 = vadd.f32 %v267, %v551
      %v553 = vpop.f32.mrb[0].mxu0
      %554 = vmatprep.mubr.bf16.mxu0 0
      %555 = vmatmul.mubr.bf16.gmra.mrb[0].mxu0 %v405
      %v556 = vpop.f32.mrb[0].mxu0
      %v557 = vadd.f32 %v267, %v556
      %v558 = vpop.f32.mrb[0].mxu0
      %v559 = vpop.f32.mrb[0].mxu0
      %v560 = vadd.f32 %v267, %v559
      %v561 = vpop.f32.mrb[0].mxu0
      %562 = vmatprep.mubr.bf16.mxu0 0
      %563 = vmatmul.mubr.bf16.gmra.mrb[0].mxu0 %v408
      %v564 = vpop.f32.mrb[0].mxu0
      %v565 = vadd.f32 %v267, %v564
      %v566 = vpop.f32.mrb[0].mxu0
      %v567 = vpop.f32.mrb[0].mxu0
      %v568 = vadd.f32 %v267, %v567
      %v569 = vpop.f32.mrb[0].mxu0
      %570 = vdwg.mxu0
      %v571 = vmul.f32 %v445, 0.5
      %v572 = vmul.f32 %v448, 0.5
      %v573 = vmul.f32 %v453, 0.5
      %v574 = vmul.f32 %v456, 0.5
      %v575 = vmul.f32 %v461, 0.5
      %v576 = vmul.f32 %v464, 0.5
      %v577 = vmul.f32 %v469, 0.5
      %v578 = vmul.f32 %v472, 0.5
      %v579 = vmul.f32 %v477, 0.5
      %v580 = vmul.f32 %v480, 0.5
      %v581 = vmul.f32 %v485, 0.5
      %v582 = vmul.f32 %v488, 0.5
      %v583 = vmul.f32 %v493, 0.5
      %v584 = vmul.f32 %v496, 0.5
      %v585 = vmul.f32 %v501, 0.5
      %v586 = vmul.f32 %v504, 0.5
      %v587 = vmul.f32 %v509, 0.5
      %v588 = vmul.f32 %v512, 0.5
      %v589 = vmul.f32 %v517, 0.5
      %v590 = vmul.f32 %v520, 0.5
      %v591 = vmul.f32 %v525, 0.5
      %v592 = vmul.f32 %v528, 0.5
      %v593 = vmul.f32 %v533, 0.5
      %v594 = vmul.f32 %v536, 0.5
      %v595 = vmul.f32 %v541, 0.5
      %v596 = vmul.f32 %v544, 0.5
      %v597 = vmul.f32 %v549, 0.5
      %v598 = vmul.f32 %v552, 0.5
      %v599 = vmul.f32 %v557, 0.5
      %v600 = vmul.f32 %v560, 0.5
      %v601 = vmul.f32 %v565, 0.5
      %v602 = vmul.f32 %v568, 0.5
      %v603 = vtanh.pop %v571
      %v604 = vtanh.pop %v572
      %v605 = vtanh.pop %v573
      %v606 = vtanh.pop %v574
      %v607 = vtanh.pop %v575
      %v608 = vtanh.pop %v576
      %v609 = vtanh.pop %v577
      %v610 = vtanh.pop %v578
      %v611 = vtanh.pop %v579
      %v612 = vtanh.pop %v580
      %v613 = vtanh.pop %v581
      %v614 = vtanh.pop %v582
      %v615 = vtanh.pop %v583
      %v616 = vtanh.pop %v584
      %v617 = vtanh.pop %v585
      %v618 = vtanh.pop %v586
      %v619 = vtanh.pop %v587
      %v620 = vtanh.pop %v588
      %v621 = vtanh.pop %v589
      %v622 = vtanh.pop %v590
      %v623 = vtanh.pop %v591
      %v624 = vtanh.pop %v592
      %v625 = vtanh.pop %v593
      %v626 = vtanh.pop %v594
      %v627 = vtanh.pop %v595
      %v628 = vtanh.pop %v596
      %v629 = vtanh.pop %v597
      %v630 = vtanh.pop %v598
      %v631 = vtanh.pop %v599
      %v632 = vtanh.pop %v600
      %v633 = vtanh.pop %v601
      %v634 = vtanh.pop %v602
      %v635 = vmul.f32 %v603, 0.5
      %v636 = vmul.f32 %v604, 0.5
      %v637 = vmul.f32 %v605, 0.5
      %v638 = vmul.f32 %v606, 0.5
      %v639 = vmul.f32 %v607, 0.5
      %v640 = vmul.f32 %v608, 0.5
      %v641 = vmul.f32 %v609, 0.5
      %v642 = vmul.f32 %v610, 0.5
      %v643 = vmul.f32 %v611, 0.5
      %v644 = vmul.f32 %v612, 0.5
      %v645 = vmul.f32 %v613, 0.5
      %v646 = vmul.f32 %v614, 0.5
      %v647 = vmul.f32 %v615, 0.5
      %v648 = vmul.f32 %v616, 0.5
      %v649 = vmul.f32 %v617, 0.5
      %v650 = vmul.f32 %v618, 0.5
      %v651 = vmul.f32 %v619, 0.5
      %v652 = vmul.f32 %v620, 0.5
      %v653 = vmul.f32 %v621, 0.5
      %v654 = vmul.f32 %v622, 0.5
      %v655 = vmul.f32 %v623, 0.5
      %v656 = vmul.f32 %v624, 0.5
      %v657 = vmul.f32 %v625, 0.5
      %v658 = vmul.f32 %v626, 0.5
      %v659 = vmul.f32 %v627, 0.5
      %v660 = vmul.f32 %v628, 0.5
      %v661 = vmul.f32 %v629, 0.5
      %v662 = vmul.f32 %v630, 0.5
      %v663 = vmul.f32 %v631, 0.5
      %v664 = vmul.f32 %v632, 0.5
      %v665 = vmul.f32 %v633, 0.5
      %v666 = vmul.f32 %v634, 0.5
      %v667 = vadd.f32 %v635, 0.5
      %v668 = vadd.f32 %v636, 0.5
      %v669 = vadd.f32 %v637, 0.5
      %v670 = vadd.f32 %v638, 0.5
      %v671 = vadd.f32 %v639, 0.5
      %v672 = vadd.f32 %v640, 0.5
      %v673 = vadd.f32 %v641, 0.5
      %v674 = vadd.f32 %v642, 0.5
      %v675 = vadd.f32 %v643, 0.5
      %v676 = vadd.f32 %v644, 0.5
      %v677 = vadd.f32 %v645, 0.5
      %v678 = vadd.f32 %v646, 0.5
      %v679 = vadd.f32 %v647, 0.5
      %v680 = vadd.f32 %v648, 0.5
      %v681 = vadd.f32 %v649, 0.5
      %v682 = vadd.f32 %v650, 0.5
      %v683 = vadd.f32 %v651, 0.5
      %v684 = vadd.f32 %v652, 0.5
      %v685 = vadd.f32 %v653, 0.5
      %v686 = vadd.f32 %v654, 0.5
      %v687 = vadd.f32 %v655, 0.5
      %v688 = vadd.f32 %v656, 0.5
      %v689 = vadd.f32 %v657, 0.5
      %v690 = vadd.f32 %v658, 0.5
      %v691 = vadd.f32 %v659, 0.5
      %v692 = vadd.f32 %v660, 0.5
      %v693 = vadd.f32 %v661, 0.5
      %v694 = vadd.f32 %v662, 0.5
      %v695 = vadd.f32 %v663, 0.5
      %v696 = vadd.f32 %v664, 0.5
      %v697 = vadd.f32 %v665, 0.5
      %v698 = vadd.f32 %v666, 0.5
      %v699 = vmul.f32 %v445, %v667
      %v700 = vmul.f32 %v448, %v668
      %v701 = vmul.f32 %v453, %v669
      %v702 = vmul.f32 %v456, %v670
      %v703 = vmul.f32 %v461, %v671
      %v704 = vmul.f32 %v464, %v672
      %v705 = vmul.f32 %v469, %v673
      %v706 = vmul.f32 %v472, %v674
      %v707 = vmul.f32 %v477, %v675
      %v708 = vmul.f32 %v480, %v676
      %v709 = vmul.f32 %v485, %v677
      %v710 = vmul.f32 %v488, %v678
      %v711 = vmul.f32 %v493, %v679
      %v712 = vmul.f32 %v496, %v680
      %v713 = vmul.f32 %v501, %v681
      %v714 = vmul.f32 %v504, %v682
      %v715 = vmul.f32 %v509, %v683
      %v716 = vmul.f32 %v512, %v684
      %v717 = vmul.f32 %v517, %v685
      %v718 = vmul.f32 %v520, %v686
      %v719 = vmul.f32 %v525, %v687
      %v720 = vmul.f32 %v528, %v688
      %v721 = vmul.f32 %v533, %v689
      %v722 = vmul.f32 %v536, %v690
      %v723 = vmul.f32 %v541, %v691
      %v724 = vmul.f32 %v544, %v692
      %v725 = vmul.f32 %v549, %v693
      %v726 = vmul.f32 %v552, %v694
      %v727 = vmul.f32 %v557, %v695
      %v728 = vmul.f32 %v560, %v696
      %v729 = vmul.f32 %v565, %v697
      %v730 = vmul.f32 %v568, %v698
      %v731 = vpack.c.bf16 %v700, %v699
      %v732 = vpack.c.bf16 %v702, %v701
      %v733 = vpack.c.bf16 %v704, %v703
      %v734 = vpack.c.bf16 %v706, %v705
      %v735 = vpack.c.bf16 %v708, %v707
      %v736 = vpack.c.bf16 %v710, %v709
      %v737 = vpack.c.bf16 %v712, %v711
      %v738 = vpack.c.bf16 %v714, %v713
      %v739 = vpack.c.bf16 %v716, %v715
      %v740 = vpack.c.bf16 %v718, %v717
      %v741 = vpack.c.bf16 %v720, %v719
      %v742 = vpack.c.bf16 %v722, %v721
      %v743 = vpack.c.bf16 %v724, %v723
      %v744 = vpack.c.bf16 %v726, %v725
      %v745 = vpack.c.bf16 %v728, %v727
      %v746 = vpack.c.bf16 %v730, %v729
      %v763 = vunpack.c.l.b16 %v731
      %v764 = vunpack.c.h.b16 %v731
      %v765 = vunpack.c.l.b16 %v732
      %v766 = vunpack.c.h.b16 %v732
      %v767 = vunpack.c.l.b16 %v733
      %v768 = vunpack.c.h.b16 %v733
      %v769 = vunpack.c.l.b16 %v734
      %v770 = vunpack.c.h.b16 %v734
      %v771 = vunpack.c.l.b16 %v735
      %v772 = vunpack.c.h.b16 %v735
      %v773 = vunpack.c.l.b16 %v736
      %v774 = vunpack.c.h.b16 %v736
      %v775 = vunpack.c.l.b16 %v737
      %v776 = vunpack.c.h.b16 %v737
      %v777 = vunpack.c.l.b16 %v738
      %v778 = vunpack.c.h.b16 %v738
      %v779 = vunpack.c.l.b16 %v739
      %v780 = vunpack.c.h.b16 %v739
      %v781 = vunpack.c.l.b16 %v740
      %v782 = vunpack.c.h.b16 %v740
      %v783 = vunpack.c.l.b16 %v741
      %v784 = vunpack.c.h.b16 %v741
      %v785 = vunpack.c.l.b16 %v742
      %v786 = vunpack.c.h.b16 %v742
      %v787 = vunpack.c.l.b16 %v743
      %v788 = vunpack.c.h.b16 %v743
      %v789 = vunpack.c.l.b16 %v744
      %v790 = vunpack.c.h.b16 %v744
      %v791 = vunpack.c.l.b16 %v745
      %v792 = vunpack.c.h.b16 %v745
      %v793 = vunpack.c.l.b16 %v746
      %v794 = vunpack.c.h.b16 %v746
      %v795 = vpack.c.b16 %v763, %v763
      %v796 = vpack.c.b16 %v764, %v764
      %v797 = vpack.c.b16 %v765, %v765
      %v798 = vpack.c.b16 %v766, %v766
      %v799 = vpack.c.b16 %v767, %v767
      %v800 = vpack.c.b16 %v768, %v768
      %v801 = vpack.c.b16 %v769, %v769
      %v802 = vpack.c.b16 %v770, %v770
      %v803 = vpack.c.b16 %v771, %v771
      %v804 = vpack.c.b16 %v772, %v772
      %v805 = vpack.c.b16 %v773, %v773
      %v806 = vpack.c.b16 %v774, %v774
      %v807 = vpack.c.b16 %v775, %v775
      %v808 = vpack.c.b16 %v776, %v776
      %v809 = vpack.c.b16 %v777, %v777
      %v810 = vpack.c.b16 %v778, %v778
      %v811 = vpack.c.b16 %v779, %v779
      %v812 = vpack.c.b16 %v780, %v780
      %v813 = vpack.c.b16 %v781, %v781
      %v814 = vpack.c.b16 %v782, %v782
      %v815 = vpack.c.b16 %v783, %v783
      %v816 = vpack.c.b16 %v784, %v784
      %v817 = vpack.c.b16 %v785, %v785
      %v818 = vpack.c.b16 %v786, %v786
      %v819 = vpack.c.b16 %v787, %v787
      %v820 = vpack.c.b16 %v788, %v788
      %v821 = vpack.c.b16 %v789, %v789
      %v822 = vpack.c.b16 %v790, %v790
      %v823 = vpack.c.b16 %v791, %v791
      %v824 = vpack.c.b16 %v792, %v792
      %v825 = vpack.c.b16 %v793, %v793
      %v826 = vpack.c.b16 %v794, %v794
      %859 = vst [vmem:[%s223] sm:$0xf] %v795
      %860 = vst [vmem:[%s223 + $0x4] sm:$0xf] %v796
      %861 = vst [vmem:[%s223 + $0x8] sm:$0xf] %v797
      %862 = vst [vmem:[%s223 + $0xc] sm:$0xf] %v798
      %863 = vst [vmem:[%s223 + $0x10] sm:$0xf] %v799
      %864 = vst [vmem:[%s223 + $0x14] sm:$0xf] %v800
      %865 = vst [vmem:[%s223 + $0x18] sm:$0xf] %v801
      %866 = vst [vmem:[%s223 + $0x1c] sm:$0xf] %v802
      %867 = vst [vmem:[%s223 + $0x20] sm:$0xf] %v803
      %868 = vst [vmem:[%s223 + $0x24] sm:$0xf] %v804
      %869 = vst [vmem:[%s223 + $0x28] sm:$0xf] %v805
      %870 = vst [vmem:[%s223 + $0x2c] sm:$0xf] %v806
      %871 = vst [vmem:[%s223 + $0x30] sm:$0xf] %v807
      %872 = vst [vmem:[%s223 + $0x34] sm:$0xf] %v808
      %873 = vst [vmem:[%s223 + $0x38] sm:$0xf] %v809
      %874 = vst [vmem:[%s223 + $0x3c] sm:$0xf] %v810
      %875 = vst [vmem:[%s223 + $0x40] sm:$0xf] %v811
      %876 = vst [vmem:[%s223 + $0x44] sm:$0xf] %v812
      %877 = vst [vmem:[%s223 + $0x48] sm:$0xf] %v813
      %878 = vst [vmem:[%s223 + $0x4c] sm:$0xf] %v814
      %879 = vst [vmem:[%s223 + $0x50] sm:$0xf] %v815
      %880 = vst [vmem:[%s223 + $0x54] sm:$0xf] %v816
      %881 = vst [vmem:[%s223 + $0x58] sm:$0xf] %v817
      %882 = vst [vmem:[%s223 + $0x5c] sm:$0xf] %v818
      %883 = vst [vmem:[%s223 + $0x60] sm:$0xf] %v819
      %884 = vst [vmem:[%s223 + $0x64] sm:$0xf] %v820
      %885 = vst [vmem:[%s223 + $0x68] sm:$0xf] %v821
      %886 = vst [vmem:[%s223 + $0x6c] sm:$0xf] %v822
      %887 = vst [vmem:[%s223 + $0x70] sm:$0xf] %v823
      %888 = vst [vmem:[%s223 + $0x74] sm:$0xf] %v824
      %889 = vst [vmem:[%s223 + $0x78] sm:$0xf] %v825
      %890 = vst [vmem:[%s223 + $0x7c] sm:$0xf] %v826
      %s891 = smul.u32 32, %s18
      %p892 = scmp.lt.s32.totalorder %s891, 63
      %s893 = scalar_select %p892, %s891, 63
      %p894 = scmp.lt.s32.totalorder %s19, 0
      %s895 = scalar_select %p894, %s19, 0
      %s896 = sadd.s32 %s895, %s893
      %s897 = smul.addr %s896, 4
      %s898 = scalar_lea.vmem %s3, %s897
      // Predicated region
      $region33: #{_lambda_.6} parent=31 // pred_check
        %p899 = pneg %p124
      $region34: #{_lambda_.6} parent=31 // pred_check_branch
        %901 = sbr.rel (%p899) target = $region36
      $region35: #{_lambda_.6} parent=31 // pred_region
        %s902 = smul.u32 32, %s18
      $region36: #{_lambda_.6} parent=31 // pred_fallthru
        _
    $region32: #{_lambda_.6} parent=5 // pred_fallthru
      _
    %p903 = scmp.le.s32.totalorder 2, %s9
    // Predicated region
    $region37: #{_lambda_.6} parent=5 // pred_check
      %p904 = pneg %p903
    $region38: #{_lambda_.6} parent=5 // pred_check_branch
      %906 = sbr.rel (%p904) target = $region40
    $region39: #{_lambda_.6} parent=5 // pred_region
      %s907 = ssub.s32 %s9, 2
      // Predicated region
      $region41: #{_lambda_.6} parent=39 // pred_check
        %p908 = pneg %p130
      $region42: #{_lambda_.6} parent=39 // pred_check_branch
        %910 = sbr.rel (%p908) target = $region44
      $region43: #{_lambda_.6} parent=39 // pred_region
        %s911 = smul.u32 32, %s20
        %p912 = scmp.lt.s32.totalorder %s911, 63
        %s913 = scalar_select %p912, %s911, 63
        %p914 = scmp.lt.s32.totalorder %s21, 0
        %s915 = scalar_select %p914, %s21, 0
        %s916 = sadd.s32 %s915, %s913
        %s917 = smul.addr %s916, 4
        %s918 = scalar_lea.vmem %s3, %s917
      $region44: #{_lambda_.6} parent=39 // pred_fallthru
        _
    $region40: #{_lambda_.6} parent=5 // pred_fallthru
      _
  $region6: #{_lambda_.6} parent=0 // loop_footer
    %s13 = sadd.s32 1, %s9
  $region7: #{_lambda_.6} parent=0 // loop_footer_branch
    %8 = sbr.rel target = $region3
  $region8: #{_lambda_.6} parent=0 // loop_exit
    _

// kernel: _lambda_.5
$region0: #{_lambda_.5}
  #allocation0 [shape = 'u32[]', space=smem, size = 0x4, offset = 0x4, fixed_abs, tag = 'smem constant byte address 0x4 - core index']
  #allocation1 [shape = 'u32[144,128]{1,0:T(1,128)}', space=vmem, size = 0x12000, scoped, tag = 'internal scratch']
  %s0 = inlined_call_operand.vmem [shape: bf16[512,27], index: 0, kind: input, shape index: {}]
  %s1 = inlined_call_operand.vmem [shape: bf16[27,32], index: 1, kind: input, shape index: {}]
  %s2 = inlined_call_operand.vmem [shape: f32[1,32], index: 2, kind: input, shape index: {}]
  %s3 = inlined_call_operand.vmem [shape: bf16[512,32], index: 3, kind: output, shape index: {}]
  %s4 = sld [smem:[#allocation0]]
  $region45: #{_lambda_.5} parent=0
    _
  %s6 = ssub.s32 1, %s4
  %s7 = scalar_select 0, %s6, %s4
  loop: start=0, step=1, limit=4
  $region2: #{_lambda_.5} parent=0 // loop_pre_header
    _
  $region3: #{_lambda_.5} parent=0 // loop_header
    %s9 = sphi 0, %s13
    %p10 = scmp.ge.s32.totalorder %s9, 4
    %s16 = sphi 0, %s28
    %s17 = sphi 0, %s24
    %s18 = sphi 0, %s16
    %s19 = sphi 0, %s17
    %s20 = sphi 0, %s18
    %s21 = sphi 0, %s19
    %s31 = sphi 0, %s33
    %s34 = sphi 0, %s31
    %s35 = sphi 0, %s34
    %s51 = sphi 0, %s35
    %s57 = sphi 0, %s59
    %s60 = sphi 0, %s57
    %s61 = sphi 0, %s60
    %s77 = sphi 0, %s61
    %s83 = sphi 0, %s85
    %s86 = sphi 0, %s83
    %s87 = sphi 0, %s86
    %s103 = sphi 0, %s87
    %s111 = sphi 0, %s113
    %s114 = sphi 0, %s111
    %s115 = sphi 0, %s114
    %s131 = sphi 0, %s115
  $region4: #{_lambda_.5} parent=0 // loop_header_branch
    %12 = sbr.rel (%p10) target = $region8
  $region5: #{_lambda_.5} parent=0 // loop_body
    %s14 = ssub.s32 %s9, 1
    %s15 = ssub.s32 %s9, 2
    %s22 = sadd.s32 1, %s17
    %p23 = scmp.ge.s32.totalorder %s22, 1
    %s24 = scalar_select %p23, 0, %s22
    %s25 = sadd.s32 1, %s16
    %s26 = scalar_select %p23, %s25, %s16
    %p27 = scmp.ge.s32.totalorder %s26, 2
    %s28 = scalar_select %p27, 0, %s26
    %s29 = ssub.s32 %s16, %s28
    %p30 = scmp.eq.s32.totalorder %s29, 0
    %s32 = sadd.s32 %s31, 1
    %s33 = scalar_select %p30, %s31, %s32
    %p36 = pneg %p30
    %p37 = scmp.eq.s32.totalorder %s9, 1
    %p38 = por %p36, %p37
    %p39 = scmp.ne.s32.totalorder %s31, %s34
    %p40 = scmp.eq.s32.totalorder %s9, 0
    %p41 = por %p39, %p40
    %p42 = scmp.ne.s32.totalorder %s31, %s34
    %p43 = scmp.eq.s32.totalorder %s14, 1
    %p44 = por %p42, %p43
    %p45 = scmp.ne.s32.totalorder %s34, %s35
    %p46 = scmp.eq.s32.totalorder %s14, 0
    %p47 = por %p45, %p46
    %p48 = scmp.ne.s32.totalorder %s34, %s35
    %p49 = scmp.eq.s32.totalorder %s15, 1
    %p50 = por %p48, %p49
    %p52 = scmp.ne.s32.totalorder %s35, %s51
    %p53 = scmp.eq.s32.totalorder %s15, 0
    %p54 = por %p52, %p53
    %s55 = ssub.s32 %s17, %s24
    %p56 = scmp.eq.s32.totalorder %s55, 0
    %s58 = sadd.s32 %s57, 1
    %s59 = scalar_select %p56, %s57, %s58
    %p62 = pneg %p56
    %p63 = scmp.eq.s32.totalorder %s9, 1
    %p64 = por %p62, %p63
    %p65 = scmp.ne.s32.totalorder %s57, %s60
    %p66 = scmp.eq.s32.totalorder %s9, 0
    %p67 = por %p65, %p66
    %p68 = scmp.ne.s32.totalorder %s57, %s60
    %p69 = scmp.eq.s32.totalorder %s14, 1
    %p70 = por %p68, %p69
    %p71 = scmp.ne.s32.totalorder %s60, %s61
    %p72 = scmp.eq.s32.totalorder %s14, 0
    %p73 = por %p71, %p72
    %p74 = scmp.ne.s32.totalorder %s60, %s61
    %p75 = scmp.eq.s32.totalorder %s15, 1
    %p76 = por %p74, %p75
    %p78 = scmp.ne.s32.totalorder %s61, %s77
    %p79 = scmp.eq.s32.totalorder %s15, 0
    %p80 = por %p78, %p79
    %s81 = ssub.s32 %s17, %s24
    %p82 = scmp.eq.s32.totalorder %s81, 0
    %s84 = sadd.s32 %s83, 1
    %s85 = scalar_select %p82, %s83, %s84
    %p88 = pneg %p82
    %p89 = scmp.eq.s32.totalorder %s9, 1
    %p90 = por %p88, %p89
    %p91 = scmp.ne.s32.totalorder %s83, %s86
    %p92 = scmp.eq.s32.totalorder %s9, 0
    %p93 = por %p91, %p92
    %p94 = scmp.ne.s32.totalorder %s83, %s86
    %p95 = scmp.eq.s32.totalorder %s14, 1
    %p96 = por %p94, %p95
    %p97 = scmp.ne.s32.totalorder %s86, %s87
    %p98 = scmp.eq.s32.totalorder %s14, 0
    %p99 = por %p97, %p98
    %p100 = scmp.ne.s32.totalorder %s86, %s87
    %p101 = scmp.eq.s32.totalorder %s15, 1
    %p102 = por %p100, %p101
    %p104 = scmp.ne.s32.totalorder %s87, %s103
    %p105 = scmp.eq.s32.totalorder %s15, 0
    %p106 = por %p104, %p105
    %s107 = ssub.s32 %s16, %s28
    %s108 = ssub.s32 %s17, %s24
    %s109 = sor.u32 %s107, %s108
    %p110 = scmp.eq.s32.totalorder %s109, 0
    %s112 = sadd.s32 %s111, 1
    %s113 = scalar_select %p110, %s111, %s112
    %p116 = pneg %p110
    %p117 = scmp.eq.s32.totalorder %s9, 1
    %p118 = por %p116, %p117
    %p119 = scmp.ne.s32.totalorder %s111, %s114
    %p120 = scmp.eq.s32.totalorder %s9, 0
    %p121 = por %p119, %p120
    %p122 = scmp.ne.s32.totalorder %s111, %s114
    %p123 = scmp.eq.s32.totalorder %s14, 1
    %p124 = por %p122, %p123
    %p125 = scmp.ne.s32.totalorder %s114, %s115
    %p126 = scmp.eq.s32.totalorder %s14, 0
    %p127 = por %p125, %p126
    %p128 = scmp.ne.s32.totalorder %s114, %s115
    %p129 = scmp.eq.s32.totalorder %s15, 1
    %p130 = por %p128, %p129
    %p132 = scmp.ne.s32.totalorder %s115, %s131
    %p133 = scmp.eq.s32.totalorder %s15, 0
    %p134 = por %p132, %p133
    %p135 = scmp.le.s32.totalorder 1, %s9
    %p136 = scmp.lt.s32.totalorder %s9, 3
    %p137 = pnand %p135, %p136
    %p138 = pneg %p137
    // Predicated region
    $region9: #{_lambda_.5} parent=5 // pred_check
      _
    $region10: #{_lambda_.5} parent=5 // pred_check_branch
      %140 = sbr.rel (%p137) target = $region12
    $region11: #{_lambda_.5} parent=5 // pred_region
      %s141 = ssub.s32 %s9, 1
      // Predicated region
      $region13: #{_lambda_.5} parent=11 // pred_check
        %p142 = pneg %p73
      $region14: #{_lambda_.5} parent=11 // pred_check_branch
        %144 = sbr.rel (%p142) target = $region16
      $region15: #{_lambda_.5} parent=11 // pred_region
        %p145 = scmp.lt.s32.totalorder %s19, 0
        %s146 = scalar_select %p145, %s19, 0
        %s147 = smul.addr %s146, 4
        %s148 = scalar_lea.vmem %s1, %s147
      $region16: #{_lambda_.5} parent=11 // pred_fallthru
        _
      // Predicated region
      $region17: #{_lambda_.5} parent=11 // pred_check
        %p149 = pneg %p99
      $region18: #{_lambda_.5} parent=11 // pred_check_branch
        %151 = sbr.rel (%p149) target = $region20
      $region19: #{_lambda_.5} parent=11 // pred_region
        %p152 = scmp.lt.s32.totalorder %s19, 0
        %s153 = scalar_select %p152, %s19, 0
        %s154 = scalar_lea.vmem %s2, %s153
      $region20: #{_lambda_.5} parent=11 // pred_fallthru
        _
    $region12: #{_lambda_.5} parent=5 // pred_fallthru
      _
    %p155 = scmp.lt.s32.totalorder %s9, 2
    // Predicated region
    $region21: #{_lambda_.5} parent=5 // pred_check
      %p156 = pneg %p155
    $region22: #{_lambda_.5} parent=5 // pred_check_branch
      %158 = sbr.rel (%p156) target = $region24
    $region23: #{_lambda_.5} parent=5 // pred_region
      // Predicated region
      $region25: #{_lambda_.5} parent=23 // pred_check
        %p159 = pneg %p41
      $region26: #{_lambda_.5} parent=23 // pred_check_branch
        %161 = sbr.rel (%p159) target = $region28
      $region27: #{_lambda_.5} parent=23 // pred_region
        %s162 = smul.u32 32, %s16
        %p163 = scmp.lt.s32.totalorder %s162, 63
        %s164 = scalar_select %p163, %s162, 63
        %s165 = smul.addr %s164, 4
        %s166 = scalar_lea.vmem %s0, %s165
        %s167 = smul.u32 32, %s16
      $region28: #{_lambda_.5} parent=23 // pred_fallthru
        _
    $region24: #{_lambda_.5} parent=5 // pred_fallthru
      _
    %p168 = scmp.le.s32.totalorder 1, %s9
    %p169 = scmp.lt.s32.totalorder %s9, 3
    %p170 = pnand %p168, %p169
    %p171 = pneg %p170
    // Predicated region
    $region29: #{_lambda_.5} parent=5 // pred_check
      _
    $region30: #{_lambda_.5} parent=5 // pred_check_branch
      %173 = sbr.rel (%p170) target = $region32
    $region31: #{_lambda_.5} parent=5 // pred_region
      %s174 = ssub.s32 %s9, 1
      %s175 = smul.u32 32, %s18
      %p176 = scmp.lt.s32.totalorder %s175, 63
      %s177 = scalar_select %p176, %s175, 63
      %s178 = smul.addr %s177, 4
      %s179 = scalar_lea.vmem %s0, %s178
      %p180 = pneg %p47
      %p181 = pneg %p44
      %p182 = scmp.lt.s32.totalorder %s19, 0
      %s183 = scalar_select %p182, %s19, 0
      %s184 = smul.addr %s183, 4
      %s185 = scalar_lea.vmem %s1, %s184
      %p186 = pneg %p73
      %p187 = pneg %p70
      %p188 = scmp.lt.s32.totalorder %s19, 0
      %s189 = scalar_select %p188, %s19, 0
      %s190 = scalar_lea.vmem %s2, %s189
      %p191 = pneg %p99
      %p192 = pneg %p96
      %p193 = pneg %p127
      %p194 = pneg %p124
      %s195 = smul.u32 32, %s18
      %p196 = scmp.lt.s32.totalorder %s195, 63
      %s197 = scalar_select %p196, %s195, 63
      %p198 = scmp.lt.s32.totalorder %s19, 0
      %s199 = scalar_select %p198, %s19, 0
      %s200 = sadd.s32 %s199, %s197
      %s201 = smul.addr %s200, 4
      %s202 = scalar_lea.vmem %s3, %s201
      %s203 = smul.u32 32, %s18
      %p204 = scmp.lt.s32.totalorder %s203, 63
      %s205 = scalar_select %p204, %s203, 63
      %s206 = smul.addr %s205, 4
      %s207 = scalar_lea.vmem %s0, %s206
      %s208 = smul.u32 32, %s18
      %p209 = scmp.lt.s32.totalorder %s19, 0
      %s210 = scalar_select %p209, %s19, 0
      %s211 = smul.addr %s210, 4
      %s212 = scalar_lea.vmem %s1, %s211
      %p213 = scmp.lt.s32.totalorder %s19, 0
      %s214 = scalar_select %p213, %s19, 0
      %s215 = scalar_lea.vmem %s2, %s214
      %s216 = smul.u32 32, %s18
      %p217 = scmp.lt.s32.totalorder %s216, 63
      %s218 = scalar_select %p217, %s216, 63
      %p219 = scmp.lt.s32.totalorder %s19, 0
      %s220 = scalar_select %p219, %s19, 0
      %s221 = sadd.s32 %s220, %s218
      %s222 = smul.addr %s221, 4
      %s223 = scalar_lea.vmem %s3, %s222
      %s224 = smul.u32 32, %s18
      %v226 = vld [vmem:[%s207] sm:$0xf]
      %v227 = vld [vmem:[%s207 + $0x4] sm:$0xf]
      %v228 = vld [vmem:[%s207 + $0x8] sm:$0xf]
      %v229 = vld [vmem:[%s207 + $0xc] sm:$0xf]
      %v230 = vld [vmem:[%s207 + $0x10] sm:$0xf]
      %v231 = vld [vmem:[%s207 + $0x14] sm:$0xf]
      %v232 = vld [vmem:[%s207 + $0x18] sm:$0xf]
      %v233 = vld [vmem:[%s207 + $0x1c] sm:$0xf]
      %v234 = vld [vmem:[%s207 + $0x20] sm:$0xf]
      %v235 = vld [vmem:[%s207 + $0x24] sm:$0xf]
      %v236 = vld [vmem:[%s207 + $0x28] sm:$0xf]
      %v237 = vld [vmem:[%s207 + $0x2c] sm:$0xf]
      %v238 = vld [vmem:[%s207 + $0x30] sm:$0xf]
      %v239 = vld [vmem:[%s207 + $0x34] sm:$0xf]
      %v240 = vld [vmem:[%s207 + $0x38] sm:$0xf]
      %v241 = vld [vmem:[%s207 + $0x3c] sm:$0xf]
      %v242 = vld [vmem:[%s207 + $0x40] sm:$0xf]
      %v243 = vld [vmem:[%s207 + $0x44] sm:$0xf]
      %v244 = vld [vmem:[%s207 + $0x48] sm:$0xf]
      %v245 = vld [vmem:[%s207 + $0x4c] sm:$0xf]
      %v246 = vld [vmem:[%s207 + $0x50] sm:$0xf]
      %v247 = vld [vmem:[%s207 + $0x54] sm:$0xf]
      %v248 = vld [vmem:[%s207 + $0x58] sm:$0xf]
      %v249 = vld [vmem:[%s207 + $0x5c] sm:$0xf]
      %v250 = vld [vmem:[%s207 + $0x60] sm:$0xf]
      %v251 = vld [vmem:[%s207 + $0x64] sm:$0xf]
      %v252 = vld [vmem:[%s207 + $0x68] sm:$0xf]
      %v253 = vld [vmem:[%s207 + $0x6c] sm:$0xf]
      %v254 = vld [vmem:[%s207 + $0x70] sm:$0xf]
      %v255 = vld [vmem:[%s207 + $0x74] sm:$0xf]
      %v256 = vld [vmem:[%s207 + $0x78] sm:$0xf]
      %v257 = vld [vmem:[%s207 + $0x7c] sm:$0xf]
      %v258 = vld [vmem:[%s212] sm:$0xf]
      %v259 = vld [vmem:[%s212 + $0x4] sm:$0xf]
      %v260 = vld [vmem:[%s212 + $0x8] sm:$0xf]
      %v261 = vld [vmem:[%s212 + $0xc] sm:$0x3]
      %v262 = vld [vmem:[%s215] sm:$0x1]
      %v264 = vlaneseq
      %v265 = vshrl.u32 %v264, 7
      %v266 = vsub.s32 0, %v265
      %v267 = vrot.slane %v262, %v266
      %v301 = vunpack.c.l.b16 %v226
      %v302 = vunpack.c.l.b16 %v227
      %v303 = vunpack.c.l.b16 %v228
      %v304 = vunpack.c.l.b16 %v229
      %v305 = vunpack.c.l.b16 %v230
      %v306 = vunpack.c.l.b16 %v231
      %v307 = vunpack.c.l.b16 %v232
      %v308 = vunpack.c.l.b16 %v233
      %v309 = vunpack.c.l.b16 %v234
      %v310 = vunpack.c.l.b16 %v235
      %v311 = vunpack.c.l.b16 %v236
      %v312 = vunpack.c.l.b16 %v237
      %v313 = vunpack.c.l.b16 %v238
      %v314 = vunpack.c.l.b16 %v239
      %v315 = vunpack.c.l.b16 %v240
      %v316 = vunpack.c.l.b16 %v241
      %v317 = vunpack.c.l.b16 %v242
      %v318 = vunpack.c.l.b16 %v243
      %v319 = vunpack.c.l.b16 %v244
      %v320 = vunpack.c.l.b16 %v245
      %v321 = vunpack.c.l.b16 %v246
      %v322 = vunpack.c.l.b16 %v247
      %v323 = vunpack.c.l.b16 %v248
      %v324 = vunpack.c.l.b16 %v249
      %v325 = vunpack.c.l.b16 %v250
      %v326 = vunpack.c.l.b16 %v251
      %v327 = vunpack.c.l.b16 %v252
      %v328 = vunpack.c.l.b16 %v253
      %v329 = vunpack.c.l.b16 %v254
      %v330 = vunpack.c.l.b16 %v255
      %v331 = vunpack.c.l.b16 %v256
      %v332 = vunpack.c.l.b16 %v257
      %v333 = vpack.c.b16 %v302, %v301
      %v334 = vpack.c.b16 %v304, %v303
      %v335 = vpack.c.b16 %v306, %v305
      %v336 = vpack.c.b16 %v308, %v307
      %v337 = vpack.c.b16 %v310, %v309
      %v338 = vpack.c.b16 %v312, %v311
      %v339 = vpack.c.b16 %v314, %v313
      %v340 = vpack.c.b16 %v316, %v315
      %v341 = vpack.c.b16 %v318, %v317
      %v342 = vpack.c.b16 %v320, %v319
      %v343 = vpack.c.b16 %v322, %v321
      %v344 = vpack.c.b16 %v324, %v323
      %v345 = vpack.c.b16 %v326, %v325
      %v346 = vpack.c.b16 %v328, %v327
      %v347 = vpack.c.b16 %v330, %v329
      %v348 = vpack.c.b16 %v332, %v331
      %v353 = vunpack.c.l.b16 %v258
      %v354 = vunpack.c.l.b16 %v259
      %v355 = vunpack.c.l.b16 %v260
      %v356 = vunpack.c.l.b16 %v261
      %v357 = vpack.c.b16 %v354, %v353
      %v358 = vpack.c.b16 %v356, %v355
      %vm360 = vcmask 220160
      %v362 = vsel %vm360, %v333, 0
      %v365 = vsel %vm360, %v334, 0
      %v368 = vsel %vm360, %v335, 0
      %v371 = vsel %vm360, %v336, 0
      %v374 = vsel %vm360, %v337, 0
      %v377 = vsel %vm360, %v338, 0
      %v380 = vsel %vm360, %v339, 0
      %v383 = vsel %vm360, %v340, 0
      %v386 = vsel %vm360, %v341, 0
      %v389 = vsel %vm360, %v342, 0
      %v392 = vsel %vm360, %v343, 0
      %v395 = vsel %vm360, %v344, 0
      %v398 = vsel %vm360, %v345, 0
      %v401 = vsel %vm360, %v346, 0
      %v404 = vsel %vm360, %v347, 0
      %v407 = vsel %vm360, %v348, 0
      %vm409 = vcmask 1044480
      %vm410 = vcmask 1045504
      %v411 = vsel %vm409, 4294967295, 65535
      %v412 = vsel %vm410, %v411, 0
      %v414 = vand.u32 %v358, %v412
      %416 = vmatprep.subr.bf16.mxu0 0
      %417 = vmatpush1.bf16.msra.mxu0 %v357
      %418 = vmatprep.subr.bf16.mxu0 0
      %419 = vmatpush1.bf16.msra.mxu0 %v414
      %420 = vmatprep.subr.bf16.mxu0 0
      %421 = vmatpush1.bf16.msra.mxu0 0
      %422 = vmatprep.subr.bf16.mxu0 0
      %423 = vmatpush1.bf16.msra.mxu0 0
      %424 = vmatprep.subr.bf16.mxu0 0
      %425 = vmatpush1.bf16.msra.mxu0 0
      %426 = vmatprep.subr.bf16.mxu0 0
      %427 = vmatpush1.bf16.msra.mxu0 0
      %428 = vmatprep.subr.bf16.mxu0 0
      %429 = vmatpush1.bf16.msra.mxu0 0
      %430 = vmatprep.subr.bf16.mxu0 0
      %431 = vmatpush1.bf16.msra.mxu0 0
      %432 = vmatprep.subr.bf16.mxu0 0
      %433 = vmatpush1.bf16.msra.mxu0 0
      %434 = vmatprep.subr.bf16.mxu0 0
      %435 = vmatpush1.bf16.msra.mxu0 0
      %436 = vmatprep.subr.bf16.mxu0 0
      %437 = vmatpush1.bf16.msra.mxu0 0
      %438 = vmatprep.subr.bf16.mxu0 0
      %439 = vmatpush1.bf16.msra.mxu0 0
      %440 = vmatprep.subr.bf16.mxu0 0
      %441 = vmatpush1.bf16.msra.mxu0 0
      %442 = vmatprep.subr.bf16.mxu0 0
      %443 = vmatpush1.bf16.msra.mxu0 0
      %444 = vmatprep.subr.bf16.mxu0 0
      %445 = vmatpush1.bf16.msra.mxu0 0
      %446 = vmatprep.subr.bf16.mxu0 0
      %447 = vmatpush1.bf16.msra.mxu0 0
      %448 = vmatprep.mubr.bf16.mxu0 0
      %449 = vmatmul.mubr.bf16.gmra.mrb[0].mxu0 %v362
      %v450 = vpop.f32.mrb[0].mxu0
      %v451 = vadd.f32 %v267, %v450
      %v452 = vpop.f32.mrb[0].mxu0
      %v453 = vpop.f32.mrb[0].mxu0
      %v454 = vadd.f32 %v267, %v453
      %v455 = vpop.f32.mrb[0].mxu0
      %456 = vmatprep.mubr.bf16.mxu0 0
      %457 = vmatmul.mubr.bf16.gmra.mrb[0].mxu0 %v365
      %v458 = vpop.f32.mrb[0].mxu0
      %v459 = vadd.f32 %v267, %v458
      %v460 = vpop.f32.mrb[0].mxu0
      %v461 = vpop.f32.mrb[0].mxu0
      %v462 = vadd.f32 %v267, %v461
      %v463 = vpop.f32.mrb[0].mxu0
      %464 = vmatprep.mubr.bf16.mxu0 0
      %465 = vmatmul.mubr.bf16.gmra.mrb[0].mxu0 %v368
      %v466 = vpop.f32.mrb[0].mxu0
      %v467 = vadd.f32 %v267, %v466
      %v468 = vpop.f32.mrb[0].mxu0
      %v469 = vpop.f32.mrb[0].mxu0
      %v470 = vadd.f32 %v267, %v469
      %v471 = vpop.f32.mrb[0].mxu0
      %472 = vmatprep.mubr.bf16.mxu0 0
      %473 = vmatmul.mubr.bf16.gmra.mrb[0].mxu0 %v371
      %v474 = vpop.f32.mrb[0].mxu0
      %v475 = vadd.f32 %v267, %v474
      %v476 = vpop.f32.mrb[0].mxu0
      %v477 = vpop.f32.mrb[0].mxu0
      %v478 = vadd.f32 %v267, %v477
      %v479 = vpop.f32.mrb[0].mxu0
      %480 = vmatprep.mubr.bf16.mxu0 0
      %481 = vmatmul.mubr.bf16.gmra.mrb[0].mxu0 %v374
      %v482 = vpop.f32.mrb[0].mxu0
      %v483 = vadd.f32 %v267, %v482
      %v484 = vpop.f32.mrb[0].mxu0
      %v485 = vpop.f32.mrb[0].mxu0
      %v486 = vadd.f32 %v267, %v485
      %v487 = vpop.f32.mrb[0].mxu0
      %488 = vmatprep.mubr.bf16.mxu0 0
      %489 = vmatmul.mubr.bf16.gmra.mrb[0].mxu0 %v377
      %v490 = vpop.f32.mrb[0].mxu0
      %v491 = vadd.f32 %v267, %v490
      %v492 = vpop.f32.mrb[0].mxu0
      %v493 = vpop.f32.mrb[0].mxu0
      %v494 = vadd.f32 %v267, %v493
      %v495 = vpop.f32.mrb[0].mxu0
      %496 = vmatprep.mubr.bf16.mxu0 0
      %497 = vmatmul.mubr.bf16.gmra.mrb[0].mxu0 %v380
      %v498 = vpop.f32.mrb[0].mxu0
      %v499 = vadd.f32 %v267, %v498
      %v500 = vpop.f32.mrb[0].mxu0
      %v501 = vpop.f32.mrb[0].mxu0
      %v502 = vadd.f32 %v267, %v501
      %v503 = vpop.f32.mrb[0].mxu0
      %504 = vmatprep.mubr.bf16.mxu0 0
      %505 = vmatmul.mubr.bf16.gmra.mrb[0].mxu0 %v383
      %v506 = vpop.f32.mrb[0].mxu0
      %v507 = vadd.f32 %v267, %v506
      %v508 = vpop.f32.mrb[0].mxu0
      %v509 = vpop.f32.mrb[0].mxu0
      %v510 = vadd.f32 %v267, %v509
      %v511 = vpop.f32.mrb[0].mxu0
      %512 = vmatprep.mubr.bf16.mxu0 0
      %513 = vmatmul.mubr.bf16.gmra.mrb[0].mxu0 %v386
      %v514 = vpop.f32.mrb[0].mxu0
      %v515 = vadd.f32 %v267, %v514
      %v516 = vpop.f32.mrb[0].mxu0
      %v517 = vpop.f32.mrb[0].mxu0
      %v518 = vadd.f32 %v267, %v517
      %v519 = vpop.f32.mrb[0].mxu0
      %520 = vmatprep.mubr.bf16.mxu0 0
      %521 = vmatmul.mubr.bf16.gmra.mrb[0].mxu0 %v389
      %v522 = vpop.f32.mrb[0].mxu0
      %v523 = vadd.f32 %v267, %v522
      %v524 = vpop.f32.mrb[0].mxu0
      %v525 = vpop.f32.mrb[0].mxu0
      %v526 = vadd.f32 %v267, %v525
      %v527 = vpop.f32.mrb[0].mxu0
      %528 = vmatprep.mubr.bf16.mxu0 0
      %529 = vmatmul.mubr.bf16.gmra.mrb[0].mxu0 %v392
      %v530 = vpop.f32.mrb[0].mxu0
      %v531 = vadd.f32 %v267, %v530
      %v532 = vpop.f32.mrb[0].mxu0
      %v533 = vpop.f32.mrb[0].mxu0
      %v534 = vadd.f32 %v267, %v533
      %v535 = vpop.f32.mrb[0].mxu0
      %536 = vmatprep.mubr.bf16.mxu0 0
      %537 = vmatmul.mubr.bf16.gmra.mrb[0].mxu0 %v395
      %v538 = vpop.f32.mrb[0].mxu0
      %v539 = vadd.f32 %v267, %v538
      %v540 = vpop.f32.mrb[0].mxu0
      %v541 = vpop.f32.mrb[0].mxu0
      %v542 = vadd.f32 %v267, %v541
      %v543 = vpop.f32.mrb[0].mxu0
      %544 = vmatprep.mubr.bf16.mxu0 0
      %545 = vmatmul.mubr.bf16.gmra.mrb[0].mxu0 %v398
      %v546 = vpop.f32.mrb[0].mxu0
      %v547 = vadd.f32 %v267, %v546
      %v548 = vpop.f32.mrb[0].mxu0
      %v549 = vpop.f32.mrb[0].mxu0
      %v550 = vadd.f32 %v267, %v549
      %v551 = vpop.f32.mrb[0].mxu0
      %552 = vmatprep.mubr.bf16.mxu0 0
      %553 = vmatmul.mubr.bf16.gmra.mrb[0].mxu0 %v401
      %v554 = vpop.f32.mrb[0].mxu0
      %v555 = vadd.f32 %v267, %v554
      %v556 = vpop.f32.mrb[0].mxu0
      %v557 = vpop.f32.mrb[0].mxu0
      %v558 = vadd.f32 %v267, %v557
      %v559 = vpop.f32.mrb[0].mxu0
      %560 = vmatprep.mubr.bf16.mxu0 0
      %561 = vmatmul.mubr.bf16.gmra.mrb[0].mxu0 %v404
      %v562 = vpop.f32.mrb[0].mxu0
      %v563 = vadd.f32 %v267, %v562
      %v564 = vpop.f32.mrb[0].mxu0
      %v565 = vpop.f32.mrb[0].mxu0
      %v566 = vadd.f32 %v267, %v565
      %v567 = vpop.f32.mrb[0].mxu0
      %568 = vmatprep.mubr.bf16.mxu0 0
      %569 = vmatmul.mubr.bf16.gmra.mrb[0].mxu0 %v407
      %v570 = vpop.f32.mrb[0].mxu0
      %v571 = vadd.f32 %v267, %v570
      %v572 = vpop.f32.mrb[0].mxu0
      %v573 = vpop.f32.mrb[0].mxu0
      %v574 = vadd.f32 %v267, %v573
      %v575 = vpop.f32.mrb[0].mxu0
      %576 = vdwg.mxu0
      %v577 = vmul.f32 %v451, 0.5
      %v578 = vmul.f32 %v454, 0.5
      %v579 = vmul.f32 %v459, 0.5
      %v580 = vmul.f32 %v462, 0.5
      %v581 = vmul.f32 %v467, 0.5
      %v582 = vmul.f32 %v470, 0.5
      %v583 = vmul.f32 %v475, 0.5
      %v584 = vmul.f32 %v478, 0.5
      %v585 = vmul.f32 %v483, 0.5
      %v586 = vmul.f32 %v486, 0.5
      %v587 = vmul.f32 %v491, 0.5
      %v588 = vmul.f32 %v494, 0.5
      %v589 = vmul.f32 %v499, 0.5
      %v590 = vmul.f32 %v502, 0.5
      %v591 = vmul.f32 %v507, 0.5
      %v592 = vmul.f32 %v510, 0.5
      %v593 = vmul.f32 %v515, 0.5
      %v594 = vmul.f32 %v518, 0.5
      %v595 = vmul.f32 %v523, 0.5
      %v596 = vmul.f32 %v526, 0.5
      %v597 = vmul.f32 %v531, 0.5
      %v598 = vmul.f32 %v534, 0.5
      %v599 = vmul.f32 %v539, 0.5
      %v600 = vmul.f32 %v542, 0.5
      %v601 = vmul.f32 %v547, 0.5
      %v602 = vmul.f32 %v550, 0.5
      %v603 = vmul.f32 %v555, 0.5
      %v604 = vmul.f32 %v558, 0.5
      %v605 = vmul.f32 %v563, 0.5
      %v606 = vmul.f32 %v566, 0.5
      %v607 = vmul.f32 %v571, 0.5
      %v608 = vmul.f32 %v574, 0.5
      %v609 = vtanh.pop %v577
      %v610 = vtanh.pop %v578
      %v611 = vtanh.pop %v579
      %v612 = vtanh.pop %v580
      %v613 = vtanh.pop %v581
      %v614 = vtanh.pop %v582
      %v615 = vtanh.pop %v583
      %v616 = vtanh.pop %v584
      %v617 = vtanh.pop %v585
      %v618 = vtanh.pop %v586
      %v619 = vtanh.pop %v587
      %v620 = vtanh.pop %v588
      %v621 = vtanh.pop %v589
      %v622 = vtanh.pop %v590
      %v623 = vtanh.pop %v591
      %v624 = vtanh.pop %v592
      %v625 = vtanh.pop %v593
      %v626 = vtanh.pop %v594
      %v627 = vtanh.pop %v595
      %v628 = vtanh.pop %v596
      %v629 = vtanh.pop %v597
      %v630 = vtanh.pop %v598
      %v631 = vtanh.pop %v599
      %v632 = vtanh.pop %v600
      %v633 = vtanh.pop %v601
      %v634 = vtanh.pop %v602
      %v635 = vtanh.pop %v603
      %v636 = vtanh.pop %v604
      %v637 = vtanh.pop %v605
      %v638 = vtanh.pop %v606
      %v639 = vtanh.pop %v607
      %v640 = vtanh.pop %v608
      %v641 = vmul.f32 %v609, 0.5
      %v642 = vmul.f32 %v610, 0.5
      %v643 = vmul.f32 %v611, 0.5
      %v644 = vmul.f32 %v612, 0.5
      %v645 = vmul.f32 %v613, 0.5
      %v646 = vmul.f32 %v614, 0.5
      %v647 = vmul.f32 %v615, 0.5
      %v648 = vmul.f32 %v616, 0.5
      %v649 = vmul.f32 %v617, 0.5
      %v650 = vmul.f32 %v618, 0.5
      %v651 = vmul.f32 %v619, 0.5
      %v652 = vmul.f32 %v620, 0.5
      %v653 = vmul.f32 %v621, 0.5
      %v654 = vmul.f32 %v622, 0.5
      %v655 = vmul.f32 %v623, 0.5
      %v656 = vmul.f32 %v624, 0.5
      %v657 = vmul.f32 %v625, 0.5
      %v658 = vmul.f32 %v626, 0.5
      %v659 = vmul.f32 %v627, 0.5
      %v660 = vmul.f32 %v628, 0.5
      %v661 = vmul.f32 %v629, 0.5
      %v662 = vmul.f32 %v630, 0.5
      %v663 = vmul.f32 %v631, 0.5
      %v664 = vmul.f32 %v632, 0.5
      %v665 = vmul.f32 %v633, 0.5
      %v666 = vmul.f32 %v634, 0.5
      %v667 = vmul.f32 %v635, 0.5
      %v668 = vmul.f32 %v636, 0.5
      %v669 = vmul.f32 %v637, 0.5
      %v670 = vmul.f32 %v638, 0.5
      %v671 = vmul.f32 %v639, 0.5
      %v672 = vmul.f32 %v640, 0.5
      %v673 = vadd.f32 %v641, 0.5
      %v674 = vadd.f32 %v642, 0.5
      %v675 = vadd.f32 %v643, 0.5
      %v676 = vadd.f32 %v644, 0.5
      %v677 = vadd.f32 %v645, 0.5
      %v678 = vadd.f32 %v646, 0.5
      %v679 = vadd.f32 %v647, 0.5
      %v680 = vadd.f32 %v648, 0.5
      %v681 = vadd.f32 %v649, 0.5
      %v682 = vadd.f32 %v650, 0.5
      %v683 = vadd.f32 %v651, 0.5
      %v684 = vadd.f32 %v652, 0.5
      %v685 = vadd.f32 %v653, 0.5
      %v686 = vadd.f32 %v654, 0.5
      %v687 = vadd.f32 %v655, 0.5
      %v688 = vadd.f32 %v656, 0.5
      %v689 = vadd.f32 %v657, 0.5
      %v690 = vadd.f32 %v658, 0.5
      %v691 = vadd.f32 %v659, 0.5
      %v692 = vadd.f32 %v660, 0.5
      %v693 = vadd.f32 %v661, 0.5
      %v694 = vadd.f32 %v662, 0.5
      %v695 = vadd.f32 %v663, 0.5
      %v696 = vadd.f32 %v664, 0.5
      %v697 = vadd.f32 %v665, 0.5
      %v698 = vadd.f32 %v666, 0.5
      %v699 = vadd.f32 %v667, 0.5
      %v700 = vadd.f32 %v668, 0.5
      %v701 = vadd.f32 %v669, 0.5
      %v702 = vadd.f32 %v670, 0.5
      %v703 = vadd.f32 %v671, 0.5
      %v704 = vadd.f32 %v672, 0.5
      %v705 = vmul.f32 %v451, %v673
      %v706 = vmul.f32 %v454, %v674
      %v707 = vmul.f32 %v459, %v675
      %v708 = vmul.f32 %v462, %v676
      %v709 = vmul.f32 %v467, %v677
      %v710 = vmul.f32 %v470, %v678
      %v711 = vmul.f32 %v475, %v679
      %v712 = vmul.f32 %v478, %v680
      %v713 = vmul.f32 %v483, %v681
      %v714 = vmul.f32 %v486, %v682
      %v715 = vmul.f32 %v491, %v683
      %v716 = vmul.f32 %v494, %v684
      %v717 = vmul.f32 %v499, %v685
      %v718 = vmul.f32 %v502, %v686
      %v719 = vmul.f32 %v507, %v687
      %v720 = vmul.f32 %v510, %v688
      %v721 = vmul.f32 %v515, %v689
      %v722 = vmul.f32 %v518, %v690
      %v723 = vmul.f32 %v523, %v691
      %v724 = vmul.f32 %v526, %v692
      %v725 = vmul.f32 %v531, %v693
      %v726 = vmul.f32 %v534, %v694
      %v727 = vmul.f32 %v539, %v695
      %v728 = vmul.f32 %v542, %v696
      %v729 = vmul.f32 %v547, %v697
      %v730 = vmul.f32 %v550, %v698
      %v731 = vmul.f32 %v555, %v699
      %v732 = vmul.f32 %v558, %v700
      %v733 = vmul.f32 %v563, %v701
      %v734 = vmul.f32 %v566, %v702
      %v735 = vmul.f32 %v571, %v703
      %v736 = vmul.f32 %v574, %v704
      %v737 = vpack.c.bf16 %v706, %v705
      %v738 = vpack.c.bf16 %v708, %v707
      %v739 = vpack.c.bf16 %v710, %v709
      %v740 = vpack.c.bf16 %v712, %v711
      %v741 = vpack.c.bf16 %v714, %v713
      %v742 = vpack.c.bf16 %v716, %v715
      %v743 = vpack.c.bf16 %v718, %v717
      %v744 = vpack.c.bf16 %v720, %v719
      %v745 = vpack.c.bf16 %v722, %v721
      %v746 = vpack.c.bf16 %v724, %v723
      %v747 = vpack.c.bf16 %v726, %v725
      %v748 = vpack.c.bf16 %v728, %v727
      %v749 = vpack.c.bf16 %v730, %v729
      %v750 = vpack.c.bf16 %v732, %v731
      %v751 = vpack.c.bf16 %v734, %v733
      %v752 = vpack.c.bf16 %v736, %v735
      %v769 = vunpack.c.l.b16 %v737
      %v770 = vunpack.c.h.b16 %v737
      %v771 = vunpack.c.l.b16 %v738
      %v772 = vunpack.c.h.b16 %v738
      %v773 = vunpack.c.l.b16 %v739
      %v774 = vunpack.c.h.b16 %v739
      %v775 = vunpack.c.l.b16 %v740
      %v776 = vunpack.c.h.b16 %v740
      %v777 = vunpack.c.l.b16 %v741
      %v778 = vunpack.c.h.b16 %v741
      %v779 = vunpack.c.l.b16 %v742
      %v780 = vunpack.c.h.b16 %v742
      %v781 = vunpack.c.l.b16 %v743
      %v782 = vunpack.c.h.b16 %v743
      %v783 = vunpack.c.l.b16 %v744
      %v784 = vunpack.c.h.b16 %v744
      %v785 = vunpack.c.l.b16 %v745
      %v786 = vunpack.c.h.b16 %v745
      %v787 = vunpack.c.l.b16 %v746
      %v788 = vunpack.c.h.b16 %v746
      %v789 = vunpack.c.l.b16 %v747
      %v790 = vunpack.c.h.b16 %v747
      %v791 = vunpack.c.l.b16 %v748
      %v792 = vunpack.c.h.b16 %v748
      %v793 = vunpack.c.l.b16 %v749
      %v794 = vunpack.c.h.b16 %v749
      %v795 = vunpack.c.l.b16 %v750
      %v796 = vunpack.c.h.b16 %v750
      %v797 = vunpack.c.l.b16 %v751
      %v798 = vunpack.c.h.b16 %v751
      %v799 = vunpack.c.l.b16 %v752
      %v800 = vunpack.c.h.b16 %v752
      %v801 = vpack.c.b16 %v769, %v769
      %v802 = vpack.c.b16 %v770, %v770
      %v803 = vpack.c.b16 %v771, %v771
      %v804 = vpack.c.b16 %v772, %v772
      %v805 = vpack.c.b16 %v773, %v773
      %v806 = vpack.c.b16 %v774, %v774
      %v807 = vpack.c.b16 %v775, %v775
      %v808 = vpack.c.b16 %v776, %v776
      %v809 = vpack.c.b16 %v777, %v777
      %v810 = vpack.c.b16 %v778, %v778
      %v811 = vpack.c.b16 %v779, %v779
      %v812 = vpack.c.b16 %v780, %v780
      %v813 = vpack.c.b16 %v781, %v781
      %v814 = vpack.c.b16 %v782, %v782
      %v815 = vpack.c.b16 %v783, %v783
      %v816 = vpack.c.b16 %v784, %v784
      %v817 = vpack.c.b16 %v785, %v785
      %v818 = vpack.c.b16 %v786, %v786
      %v819 = vpack.c.b16 %v787, %v787
      %v820 = vpack.c.b16 %v788, %v788
      %v821 = vpack.c.b16 %v789, %v789
      %v822 = vpack.c.b16 %v790, %v790
      %v823 = vpack.c.b16 %v791, %v791
      %v824 = vpack.c.b16 %v792, %v792
      %v825 = vpack.c.b16 %v793, %v793
      %v826 = vpack.c.b16 %v794, %v794
      %v827 = vpack.c.b16 %v795, %v795
      %v828 = vpack.c.b16 %v796, %v796
      %v829 = vpack.c.b16 %v797, %v797
      %v830 = vpack.c.b16 %v798, %v798
      %v831 = vpack.c.b16 %v799, %v799
      %v832 = vpack.c.b16 %v800, %v800
      %vm865 = vcmask 257024
      %866 = vst.msk [vmem:[%s223] sm:$0xf] %vm865, %v801
      %867 = vst.msk [vmem:[%s223 + $0x4] sm:$0xf] %vm865, %v802
      %868 = vst.msk [vmem:[%s223 + $0x8] sm:$0xf] %vm865, %v803
      %869 = vst.msk [vmem:[%s223 + $0xc] sm:$0xf] %vm865, %v804
      %870 = vst.msk [vmem:[%s223 + $0x10] sm:$0xf] %vm865, %v805
      %871 = vst.msk [vmem:[%s223 + $0x14] sm:$0xf] %vm865, %v806
      %872 = vst.msk [vmem:[%s223 + $0x18] sm:$0xf] %vm865, %v807
      %873 = vst.msk [vmem:[%s223 + $0x1c] sm:$0xf] %vm865, %v808
      %874 = vst.msk [vmem:[%s223 + $0x20] sm:$0xf] %vm865, %v809
      %875 = vst.msk [vmem:[%s223 + $0x24] sm:$0xf] %vm865, %v810
      %876 = vst.msk [vmem:[%s223 + $0x28] sm:$0xf] %vm865, %v811
      %877 = vst.msk [vmem:[%s223 + $0x2c] sm:$0xf] %vm865, %v812
      %878 = vst.msk [vmem:[%s223 + $0x30] sm:$0xf] %vm865, %v813
      %879 = vst.msk [vmem:[%s223 + $0x34] sm:$0xf] %vm865, %v814
      %880 = vst.msk [vmem:[%s223 + $0x38] sm:$0xf] %vm865, %v815
      %881 = vst.msk [vmem:[%s223 + $0x3c] sm:$0xf] %vm865, %v816
      %882 = vst.msk [vmem:[%s223 + $0x40] sm:$0xf] %vm865, %v817
      %883 = vst.msk [vmem:[%s223 + $0x44] sm:$0xf] %vm865, %v818
      %884 = vst.msk [vmem:[%s223 + $0x48] sm:$0xf] %vm865, %v819
      %885 = vst.msk [vmem:[%s223 + $0x4c] sm:$0xf] %vm865, %v820
      %886 = vst.msk [vmem:[%s223 + $0x50] sm:$0xf] %vm865, %v821
      %887 = vst.msk [vmem:[%s223 + $0x54] sm:$0xf] %vm865, %v822
      %888 = vst.msk [vmem:[%s223 + $0x58] sm:$0xf] %vm865, %v823
      %889 = vst.msk [vmem:[%s223 + $0x5c] sm:$0xf] %vm865, %v824
      %890 = vst.msk [vmem:[%s223 + $0x60] sm:$0xf] %vm865, %v825
      %891 = vst.msk [vmem:[%s223 + $0x64] sm:$0xf] %vm865, %v826
      %892 = vst.msk [vmem:[%s223 + $0x68] sm:$0xf] %vm865, %v827
      %893 = vst.msk [vmem:[%s223 + $0x6c] sm:$0xf] %vm865, %v828
      %894 = vst.msk [vmem:[%s223 + $0x70] sm:$0xf] %vm865, %v829
      %895 = vst.msk [vmem:[%s223 + $0x74] sm:$0xf] %vm865, %v830
      %896 = vst.msk [vmem:[%s223 + $0x78] sm:$0xf] %vm865, %v831
      %897 = vst.msk [vmem:[%s223 + $0x7c] sm:$0xf] %vm865, %v832
      %s898 = smul.u32 32, %s18
      %p899 = scmp.lt.s32.totalorder %s898, 63
      %s900 = scalar_select %p899, %s898, 63
      %p901 = scmp.lt.s32.totalorder %s19, 0
      %s902 = scalar_select %p901, %s19, 0
      %s903 = sadd.s32 %s902, %s900
      %s904 = smul.addr %s903, 4
      %s905 = scalar_lea.vmem %s3, %s904
      // Predicated region
      $region33: #{_lambda_.5} parent=31 // pred_check
        %p906 = pneg %p124
      $region34: #{_lambda_.5} parent=31 // pred_check_branch
        %908 = sbr.rel (%p906) target = $region36
      $region35: #{_lambda_.5} parent=31 // pred_region
        %s909 = smul.u32 32, %s18
      $region36: #{_lambda_.5} parent=31 // pred_fallthru
        _
    $region32: #{_lambda_.5} parent=5 // pred_fallthru
      _
    %p910 = scmp.le.s32.totalorder 2, %s9
    // Predicated region
    $region37: #{_lambda_.5} parent=5 // pred_check
      %p911 = pneg %p910
    $region38: #{_lambda_.5} parent=5 // pred_check_branch
      %913 = sbr.rel (%p911) target = $region40
    $region39: #{_lambda_.5} parent=5 // pred_region
      %s914 = ssub.s32 %s9, 2
      // Predicated region
      $region41: #{_lambda_.5} parent=39 // pred_check
        %p915 = pneg %p130
      $region42: #{_lambda_.5} parent=39 // pred_check_branch
        %917 = sbr.rel (%p915) target = $region44
      $region43: #{_lambda_.5} parent=39 // pred_region
        %s918 = smul.u32 32, %s20
        %p919 = scmp.lt.s32.totalorder %s918, 63
        %s920 = scalar_select %p919, %s918, 63
        %p921 = scmp.lt.s32.totalorder %s21, 0
        %s922 = scalar_select %p921, %s21, 0
        %s923 = sadd.s32 %s922, %s920
        %s924 = smul.addr %s923, 4
        %s925 = scalar_lea.vmem %s3, %s924
      $region44: #{_lambda_.5} parent=39 // pred_fallthru
        _
    $region40: #{_lambda_.5} parent=5 // pred_fallthru
      _
  $region6: #{_lambda_.5} parent=0 // loop_footer
    %s13 = sadd.s32 1, %s9
  $region7: #{_lambda_.5} parent=0 // loop_footer_branch
    %8 = sbr.rel target = $region3
  $region8: #{_lambda_.5} parent=0 // loop_exit
    _

// kernel: _lambda_.8
$region0: #{_lambda_.8}
  #allocation0 [shape = 'u32[]', space=smem, size = 0x4, offset = 0x4, fixed_abs, tag = 'smem constant byte address 0x4 - core index']
  #allocation1 [shape = 'u32[144,128]{1,0:T(1,128)}', space=vmem, size = 0x12000, scoped, tag = 'internal scratch']
  %s0 = inlined_call_operand.vmem [shape: bf16[2,64,32], index: 0, kind: input, shape index: {}]
  %s1 = inlined_call_operand.vmem [shape: bf16[32,2560], index: 1, kind: input, shape index: {}]
  %s2 = inlined_call_operand.vmem [shape: f32[1,2560], index: 2, kind: input, shape index: {}]
  %s3 = inlined_call_operand.vmem [shape: bf16[2,1,2560], index: 3, kind: output, shape index: {}]
  %s4 = sld [smem:[#allocation0]]
  $region68: #{_lambda_.8} parent=0
    _
  %s6 = ssub.s32 1, %s4
  %s7 = scalar_select 0, %s6, %s4
  $region1: #{_lambda_.8} parent=0
    #allocation2 [shape = 'u8[65536]{0}', space=vmem, size = 0x10000, scoped, tag = 'input window, operand 1']
    loop: start=0, step=1, limit=12
    $region2: #{_lambda_.8} parent=1 // loop_pre_header
      _
    $region3: #{_lambda_.8} parent=1 // loop_header
      %s9 = sphi 0, %s13
      %p10 = scmp.ge.s32.totalorder %s9, 12
      %s16 = sphi 0, %s28
      %s17 = sphi 0, %s24
      %s18 = sphi 0, %s16
      %s19 = sphi 0, %s17
      %s20 = sphi 0, %s18
      %s21 = sphi 0, %s19
      %s31 = sphi 0, %s33
      %s34 = sphi 0, %s31
      %s35 = sphi 0, %s34
      %s51 = sphi 0, %s35
      %s57 = sphi 0, %s59
      %s60 = sphi 0, %s57
      %s61 = sphi 0, %s60
      %s77 = sphi 0, %s61
      %s83 = sphi 0, %s85
      %s86 = sphi 0, %s83
      %s87 = sphi 0, %s86
      %s103 = sphi 0, %s87
      %s111 = sphi 0, %s113
      %s114 = sphi 0, %s111
      %s115 = sphi 0, %s114
      %s131 = sphi 0, %s115
    $region4: #{_lambda_.8} parent=1 // loop_header_branch
      %12 = sbr.rel (%p10) target = $region8
    $region5: #{_lambda_.8} parent=1 // loop_body
      %s14 = ssub.s32 %s9, 1
      %s15 = ssub.s32 %s9, 2
      %s22 = sadd.s32 1, %s17
      %p23 = scmp.ge.s32.totalorder %s22, 5
      %s24 = scalar_select %p23, 0, %s22
      %s25 = sadd.s32 1, %s16
      %s26 = scalar_select %p23, %s25, %s16
      %p27 = scmp.ge.s32.totalorder %s26, 2
      %s28 = scalar_select %p27, 0, %s26
      %s29 = ssub.s32 %s16, %s28
      %p30 = scmp.eq.s32.totalorder %s29, 0
      %s32 = sadd.s32 %s31, 1
      %s33 = scalar_select %p30, %s31, %s32
      %p36 = pneg %p30
      %p37 = scmp.eq.s32.totalorder %s9, 9
      %p38 = por %p36, %p37
      %p39 = scmp.ne.s32.totalorder %s31, %s34
      %p40 = scmp.eq.s32.totalorder %s9, 0
      %p41 = por %p39, %p40
      %p42 = scmp.ne.s32.totalorder %s31, %s34
      %p43 = scmp.eq.s32.totalorder %s14, 9
      %p44 = por %p42, %p43
      %p45 = scmp.ne.s32.totalorder %s34, %s35
      %p46 = scmp.eq.s32.totalorder %s14, 0
      %p47 = por %p45, %p46
      %p48 = scmp.ne.s32.totalorder %s34, %s35
      %p49 = scmp.eq.s32.totalorder %s15, 9
      %p50 = por %p48, %p49
      %p52 = scmp.ne.s32.totalorder %s35, %s51
      %p53 = scmp.eq.s32.totalorder %s15, 0
      %p54 = por %p52, %p53
      %s55 = ssub.s32 %s17, %s24
      %p56 = scmp.eq.s32.totalorder %s55, 0
      %s58 = sadd.s32 %s57, 1
      %s59 = scalar_select %p56, %s57, %s58
      %p62 = pneg %p56
      %p63 = scmp.eq.s32.totalorder %s9, 9
      %p64 = por %p62, %p63
      %p65 = scmp.ne.s32.totalorder %s57, %s60
      %p66 = scmp.eq.s32.totalorder %s9, 0
      %p67 = por %p65, %p66
      %p68 = scmp.ne.s32.totalorder %s57, %s60
      %p69 = scmp.eq.s32.totalorder %s14, 9
      %p70 = por %p68, %p69
      %p71 = scmp.ne.s32.totalorder %s60, %s61
      %p72 = scmp.eq.s32.totalorder %s14, 0
      %p73 = por %p71, %p72
      %p74 = scmp.ne.s32.totalorder %s60, %s61
      %p75 = scmp.eq.s32.totalorder %s15, 9
      %p76 = por %p74, %p75
      %p78 = scmp.ne.s32.totalorder %s61, %s77
      %p79 = scmp.eq.s32.totalorder %s15, 0
      %p80 = por %p78, %p79
      %s81 = ssub.s32 %s17, %s24
      %p82 = scmp.eq.s32.totalorder %s81, 0
      %s84 = sadd.s32 %s83, 1
      %s85 = scalar_select %p82, %s83, %s84
      %p88 = pneg %p82
      %p89 = scmp.eq.s32.totalorder %s9, 9
      %p90 = por %p88, %p89
      %p91 = scmp.ne.s32.totalorder %s83, %s86
      %p92 = scmp.eq.s32.totalorder %s9, 0
      %p93 = por %p91, %p92
      %p94 = scmp.ne.s32.totalorder %s83, %s86
      %p95 = scmp.eq.s32.totalorder %s14, 9
      %p96 = por %p94, %p95
      %p97 = scmp.ne.s32.totalorder %s86, %s87
      %p98 = scmp.eq.s32.totalorder %s14, 0
      %p99 = por %p97, %p98
      %p100 = scmp.ne.s32.totalorder %s86, %s87
      %p101 = scmp.eq.s32.totalorder %s15, 9
      %p102 = por %p100, %p101
      %p104 = scmp.ne.s32.totalorder %s87, %s103
      %p105 = scmp.eq.s32.totalorder %s15, 0
      %p106 = por %p104, %p105
      %s107 = ssub.s32 %s16, %s28
      %s108 = ssub.s32 %s17, %s24
      %s109 = sor.u32 %s107, %s108
      %p110 = scmp.eq.s32.totalorder %s109, 0
      %s112 = sadd.s32 %s111, 1
      %s113 = scalar_select %p110, %s111, %s112
      %p116 = pneg %p110
      %p117 = scmp.eq.s32.totalorder %s9, 9
      %p118 = por %p116, %p117
      %p119 = scmp.ne.s32.totalorder %s111, %s114
      %p120 = scmp.eq.s32.totalorder %s9, 0
      %p121 = por %p119, %p120
      %p122 = scmp.ne.s32.totalorder %s111, %s114
      %p123 = scmp.eq.s32.totalorder %s14, 9
      %p124 = por %p122, %p123
      %p125 = scmp.ne.s32.totalorder %s114, %s115
      %p126 = scmp.eq.s32.totalorder %s14, 0
      %p127 = por %p125, %p126
      %p128 = scmp.ne.s32.totalorder %s114, %s115
      %p129 = scmp.eq.s32.totalorder %s15, 9
      %p130 = por %p128, %p129
      %p132 = scmp.ne.s32.totalorder %s115, %s131
      %p133 = scmp.eq.s32.totalorder %s15, 0
      %p134 = por %p132, %p133
      %p135 = scmp.le.s32.totalorder 1, %s9
      %p136 = scmp.lt.s32.totalorder %s9, 11
      %p137 = pnand %p135, %p136
      %p138 = pneg %p137
      // Predicated region
      $region9: #{_lambda_.8} parent=5 // pred_check
        _
      $region10: #{_lambda_.8} parent=5 // pred_check_branch
        %140 = sbr.rel (%p137) target = $region12
      $region11: #{_lambda_.8} parent=5 // pred_region
        %s141 = ssub.s32 %s9, 1
      $region12: #{_lambda_.8} parent=5 // pred_fallthru
        _
      %p142 = scmp.lt.s32.totalorder %s9, 10
      // Predicated region
      $region13: #{_lambda_.8} parent=5 // pred_check
        %p143 = pneg %p142
      $region14: #{_lambda_.8} parent=5 // pred_check_branch
        %145 = sbr.rel (%p143) target = $region16
      $region15: #{_lambda_.8} parent=5 // pred_region
        // Predicated region
        $region17: #{_lambda_.8} parent=15 // pred_check
          %p146 = pneg %p41
        $region18: #{_lambda_.8} parent=15 // pred_check_branch
          %148 = sbr.rel (%p146) target = $region20
        $region19: #{_lambda_.8} parent=15 // pred_region
          %p149 = scmp.lt.s32.totalorder %s16, 1
          %s150 = scalar_select %p149, %s16, 1
          %s151 = smul.addr %s150, 8
          %s152 = smul.addr %s151, 4
          %s153 = scalar_lea.vmem %s0, %s152
        $region20: #{_lambda_.8} parent=15 // pred_fallthru
          _
        // Predicated region
        $region21: #{_lambda_.8} parent=15 // pred_check
          %p154 = pneg %p67
        $region22: #{_lambda_.8} parent=15 // pred_check_branch
          %156 = sbr.rel (%p154) target = $region24
        $region23: #{_lambda_.8} parent=15 // pred_region
          %s157 = sand.u32 %s57, 1
          %s158 = sand.u32 %s57, 1
          %s159 = smul.addr %s158, 64
          %s160 = scalar_lea.vmem [#allocation2], %s159
          %s161 = smul.u32 4, %s17
          %s162 = smul.addr %s161, 4
          %s163 = scalar_lea.vmem %s1, %s162
          // Predicated region
          $region25: #{_lambda_.8} parent=23 // pred_check
            _
          $region26: #{_lambda_.8} parent=23 // pred_check_branch
            %165 = sbr.rel (0) target = $region28
          $region27: #{_lambda_.8} parent=23 // pred_region
            // Predicated region
            $region29: #{_lambda_.8} parent=27 // pred_check
              _
            $region30: #{_lambda_.8} parent=27 // pred_check_branch
              %167 = sbr.rel (0) target = $region32
            $region31: #{_lambda_.8} parent=27 // pred_region
              loop: start=0, step=1, limit=1
              $region33: #{_lambda_.8} parent=31 // loop_pre_header
                _
              $region34: #{_lambda_.8} parent=31 // loop_header
                %s169 = sphi 0, %s173
                %p170 = scmp.ge.s32.totalorder %s169, 1
                %s174 = sphi %s163, %s163
                %s175 = sphi %s160, %s160
              $region35: #{_lambda_.8} parent=31 // loop_header_branch
                %172 = sbr.rel (%p170) target = $region39
              $region36: #{_lambda_.8} parent=31 // loop_body
                %v176 = vld [vmem:[%s174] sm:$0xff]
                %177 = vst [vmem:[%s175] sm:$0xff] %v176
                %v178 = vld [vmem:[%s174 + $0x8] sm:$0xff]
                %179 = vst [vmem:[%s175 + $0x8] sm:$0xff] %v178
                %v180 = vld [vmem:[%s174 + $0x50] sm:$0xff]
                %181 = vst [vmem:[%s175 + $0x10] sm:$0xff] %v180
                %v182 = vld [vmem:[%s174 + $0x58] sm:$0xff]
                %183 = vst [vmem:[%s175 + $0x18] sm:$0xff] %v182
                %v184 = vld [vmem:[%s174 + $0xa0] sm:$0xff]
                %185 = vst [vmem:[%s175 + $0x20] sm:$0xff] %v184
                %v186 = vld [vmem:[%s174 + $0xa8] sm:$0xff]
                %187 = vst [vmem:[%s175 + $0x28] sm:$0xff] %v186
                %v188 = vld [vmem:[%s174 + $0xf0] sm:$0xff]
                %189 = vst [vmem:[%s175 + $0x30] sm:$0xff] %v188
                %v190 = vld [vmem:[%s174 + $0xf8] sm:$0xff]
                %191 = vst [vmem:[%s175 + $0x38] sm:$0xff] %v190
              $region37: #{_lambda_.8} parent=31 // loop_footer
                %s173 = sadd.s32 1, %s169
              $region38: #{_lambda_.8} parent=31 // loop_footer_branch
                %168 = sbr.rel target = $region34
              $region39: #{_lambda_.8} parent=31 // loop_exit
                _
            $region32: #{_lambda_.8} parent=27 // pred_fallthru
              _
            // Predicated region
            $region40: #{_lambda_.8} parent=27 // pred_check
              _
            $region41: #{_lambda_.8} parent=27 // pred_check_branch
              %193 = sbr.rel target = $region43
            $region42: #{_lambda_.8} parent=27 // pred_region
              _
            $region43: #{_lambda_.8} parent=27 // pred_fallthru
              _
          $region28: #{_lambda_.8} parent=23 // pred_fallthru
            _
          %194 = vnop
        $region24: #{_lambda_.8} parent=15 // pred_fallthru
          _
        // Predicated region
        $region44: #{_lambda_.8} parent=15 // pred_check
          %p195 = pneg %p93
        $region45: #{_lambda_.8} parent=15 // pred_check_branch
          %197 = sbr.rel (%p195) target = $region47
        $region46: #{_lambda_.8} parent=15 // pred_region
          %s198 = smul.u32 4, %s17
          %p199 = scmp.lt.s32.totalorder %s198, 19
          %s200 = scalar_select %p199, %s198, 19
          %s201 = scalar_lea.vmem %s2, %s200
          %s202 = smul.u32 4, %s17
        $region47: #{_lambda_.8} parent=15 // pred_fallthru
          _
      $region16: #{_lambda_.8} parent=5 // pred_fallthru
        _
      %p203 = scmp.le.s32.totalorder 1, %s9
      %p204 = scmp.lt.s32.totalorder %s9, 11
      %p205 = pnand %p203, %p204
      %p206 = pneg %p205
      // Predicated region
      $region48: #{_lambda_.8} parent=5 // pred_check
        _
      $region49: #{_lambda_.8} parent=5 // pred_check_branch
        %208 = sbr.rel (%p205) target = $region51
      $region50: #{_lambda_.8} parent=5 // pred_region
        %s209 = ssub.s32 %s9, 1
        %s210 = sand.u32 %s60, 1
        %s211 = sand.u32 %s60, 1
        %s212 = smul.addr %s211, 64
        %s213 = scalar_lea.vmem [#allocation2], %s212
        // Predicated region
        $region52: #{_lambda_.8} parent=50 // pred_check
          %p214 = pneg %p73
        $region53: #{_lambda_.8} parent=50 // pred_check_branch
          %216 = sbr.rel (%p214) target = $region55
        $region54: #{_lambda_.8} parent=50 // pred_region
          _
        $region55: #{_lambda_.8} parent=50 // pred_fallthru
          _
        %p217 = scmp.lt.s32.totalorder %s18, 1
        %s218 = scalar_select %p217, %s18, 1
        %s219 = smul.addr %s218, 8
        %s220 = smul.addr %s219, 4
        %s221 = scalar_lea.vmem %s0, %s220
        %p222 = pneg %p47
        %p223 = pneg %p44
        %s224 = sand.u32 %s60, 1
        %s225 = sand.u32 %s60, 1
        %s226 = smul.addr %s225, 64
        %s227 = scalar_lea.vmem [#allocation2], %s226
        %p228 = pneg %p73
        %p229 = pneg %p70
        %s230 = smul.u32 4, %s19
        %p231 = scmp.lt.s32.totalorder %s230, 19
        %s232 = scalar_select %p231, %s230, 19
        %s233 = scalar_lea.vmem %s2, %s232
        %p234 = pneg %p99
        %p235 = pneg %p96
        %p236 = pneg %p127
        %p237 = pneg %p124
        %s238 = smul.u32 4, %s19
        %p239 = scmp.lt.s32.totalorder %s18, 1
        %s240 = scalar_select %p239, %s18, 1
        %p241 = scmp.lt.s32.totalorder %s238, 19
        %s242 = scalar_select %p241, %s238, 19
        %s243 = smul.addr %s240, 20
        %s244 = sadd.s32 %s242, %s243
        %s245 = scalar_lea.vmem %s3, %s244
        %p246 = scmp.lt.s32.totalorder %s18, 1
        %s247 = scalar_select %p246, %s18, 1
        %s248 = smul.addr %s247, 8
        %s249 = smul.addr %s248, 4
        %s250 = scalar_lea.vmem %s0, %s249
        %s251 = smul.u32 4, %s19
        %s252 = smul.u32 4, %s19
        %p253 = scmp.lt.s32.totalorder %s252, 19
        %s254 = scalar_select %p253, %s252, 19
        %s255 = scalar_lea.vmem %s2, %s254
        %s256 = smul.u32 4, %s19
        %s257 = smul.u32 4, %s19
        %p258 = scmp.lt.s32.totalorder %s18, 1
        %s259 = scalar_select %p258, %s18, 1
        %p260 = scmp.lt.s32.totalorder %s257, 19
        %s261 = scalar_select %p260, %s257, 19
        %s262 = smul.addr %s259, 20
        %s263 = sadd.s32 %s261, %s262
        %s264 = scalar_lea.vmem %s3, %s263
        %s265 = smul.u32 4, %s19
        %v267 = vld [vmem:[%s250] sm:$0xf]
        %v268 = vld [vmem:[%s250 + $0x4] sm:$0xf]
        %v269 = vld [vmem:[%s250 + $0x8] sm:$0xf]
        %v270 = vld [vmem:[%s250 + $0xc] sm:$0xf]
        %v271 = vld [vmem:[%s250 + $0x10] sm:$0xf]
        %v272 = vld [vmem:[%s250 + $0x14] sm:$0xf]
        %v273 = vld [vmem:[%s250 + $0x18] sm:$0xf]
        %v274 = vld [vmem:[%s250 + $0x1c] sm:$0xf]
        %v275 = vld [vmem:[%s213] sm:$0xff]
        %v276 = vld [vmem:[%s213 + $0x8] sm:$0xff]
        %v277 = vld [vmem:[%s213 + $0x10] sm:$0xff]
        %v278 = vld [vmem:[%s213 + $0x18] sm:$0xff]
        %v279 = vld [vmem:[%s213 + $0x20] sm:$0xff]
        %v280 = vld [vmem:[%s213 + $0x28] sm:$0xff]
        %v281 = vld [vmem:[%s213 + $0x30] sm:$0xff]
        %v282 = vld [vmem:[%s213 + $0x38] sm:$0xff]
        %v283 = vld [vmem:[%s255] sm:$0xf]
        %v285 = vlaneseq
        %v286 = vshrl.u32 %v285, 7
        %v287 = vsub.s32 0, %v286
        %v288 = vrot.slane %v283, %v287
        %v289 = vlaneseq
        %v290 = vshrl.u32 %v289, 7
        %v291 = vsub.s32 1, %v290
        %v292 = vrot.slane %v283, %v291
        %v293 = vlaneseq
        %v294 = vshrl.u32 %v293, 7
        %v295 = vsub.s32 2, %v294
        %v296 = vrot.slane %v283, %v295
        %v297 = vlaneseq
        %v298 = vshrl.u32 %v297, 7
        %v299 = vsub.s32 3, %v298
        %v300 = vrot.slane %v283, %v299
        %v313 = vunpack.c.l.b16 %v267
        %v314 = vunpack.c.l.b16 %v268
        %v315 = vunpack.c.l.b16 %v269
        %v316 = vunpack.c.l.b16 %v270
        %v317 = vunpack.c.l.b16 %v271
        %v318 = vunpack.c.l.b16 %v272
        %v319 = vunpack.c.l.b16 %v273
        %v320 = vunpack.c.l.b16 %v274
        %v321 = vpack.c.b16 %v314, %v313
        %v322 = vpack.c.b16 %v316, %v315
        %v323 = vpack.c.b16 %v318, %v317
        %v324 = vpack.c.b16 %v320, %v319
        %v333 = vunpack.c.l.b16 %v275
        %v334 = vunpack.c.h.b16 %v275
        %v335 = vunpack.c.l.b16 %v276
        %v336 = vunpack.c.h.b16 %v276
        %v337 = vunpack.c.l.b16 %v277
        %v338 = vunpack.c.h.b16 %v277
        %v339 = vunpack.c.l.b16 %v278
        %v340 = vunpack.c.h.b16 %v278
        %v341 = vunpack.c.l.b16 %v279
        %v342 = vunpack.c.h.b16 %v279
        %v343 = vunpack.c.l.b16 %v280
        %v344 = vunpack.c.h.b16 %v280
        %v345 = vunpack.c.l.b16 %v281
        %v346 = vunpack.c.h.b16 %v281
        %v347 = vunpack.c.l.b16 %v282
        %v348 = vunpack.c.h.b16 %v282
        %v349 = vpack.c.b16 %v337, %v333
        %v350 = vpack.c.b16 %v338, %v334
        %v351 = vpack.c.b16 %v339, %v335
        %v352 = vpack.c.b16 %v340, %v336
        %v353 = vpack.c.b16 %v345, %v341
        %v354 = vpack.c.b16 %v346, %v342
        %v355 = vpack.c.b16 %v347, %v343
        %v356 = vpack.c.b16 %v348, %v344
        %vm365 = vcmask 261120
        %v367 = vsel %vm365, %v321, 0
        %v370 = vsel %vm365, %v322, 0
        %v373 = vsel %vm365, %v323, 0
        %v376 = vsel %vm365, %v324, 0
        %378 = vmatprep.subr.bf16.mxu0 %v350
        %379 = vmatpush1.bf16.msra.mxu0 %v349
        %380 = vmatprep.subr.bf16.mxu0 %v354
        %381 = vmatpush1.bf16.msra.mxu0 %v353
        %382 = vmatprep.subr.bf16.mxu0 0
        %383 = vmatpush1.bf16.msra.mxu0 0
        %384 = vmatprep.subr.bf16.mxu0 0
        %385 = vmatpush1.bf16.msra.mxu0 0
        %386 = vmatprep.subr.bf16.mxu0 0
        %387 = vmatpush1.bf16.msra.mxu0 0
        %388 = vmatprep.subr.bf16.mxu0 0
        %389 = vmatpush1.bf16.msra.mxu0 0
        %390 = vmatprep.subr.bf16.mxu0 0
        %391 = vmatpush1.bf16.msra.mxu0 0
        %392 = vmatprep.subr.bf16.mxu0 0
        %393 = vmatpush1.bf16.msra.mxu0 0
        %394 = vmatprep.subr.bf16.mxu0 0
        %395 = vmatpush1.bf16.msra.mxu0 0
        %396 = vmatprep.subr.bf16.mxu0 0
        %397 = vmatpush1.bf16.msra.mxu0 0
        %398 = vmatprep.subr.bf16.mxu0 0
        %399 = vmatpush1.bf16.msra.mxu0 0
        %400 = vmatprep.subr.bf16.mxu0 0
        %401 = vmatpush1.bf16.msra.mxu0 0
        %402 = vmatprep.subr.bf16.mxu0 0
        %403 = vmatpush1.bf16.msra.mxu0 0
        %404 = vmatprep.subr.bf16.mxu0 0
        %405 = vmatpush1.bf16.msra.mxu0 0
        %406 = vmatprep.subr.bf16.mxu0 0
        %407 = vmatpush1.bf16.msra.mxu0 0
        %408 = vmatprep.subr.bf16.mxu0 0
        %409 = vmatpush1.bf16.msra.mxu0 0
        %410 = vmatprep.mubr.bf16.mxu0 0
        %411 = vmatmul.mubr.bf16.gmra.mrb[0].mxu0 %v367
        %v412 = vpop.f32.mrb[0].mxu0
        %v413 = vadd.f32 %v288, %v412
        %v414 = vpop.f32.mrb[0].mxu0
        %v415 = vadd.f32 %v292, %v414
        %v416 = vpop.f32.mrb[0].mxu0
        %v417 = vadd.f32 %v288, %v416
        %v418 = vpop.f32.mrb[0].mxu0
        %v419 = vadd.f32 %v292, %v418
        %420 = vmatprep.mubr.bf16.mxu0 0
        %421 = vmatmul.mubr.bf16.gmra.mrb[0].mxu0 %v370
        %v422 = vpop.f32.mrb[0].mxu0
        %v423 = vadd.f32 %v288, %v422
        %v424 = vpop.f32.mrb[0].mxu0
        %v425 = vadd.f32 %v292, %v424
        %v426 = vpop.f32.mrb[0].mxu0
        %v427 = vadd.f32 %v288, %v426
        %v428 = vpop.f32.mrb[0].mxu0
        %v429 = vadd.f32 %v292, %v428
        %430 = vmatprep.mubr.bf16.mxu0 0
        %431 = vmatmul.mubr.bf16.gmra.mrb[0].mxu0 %v373
        %v432 = vpop.f32.mrb[0].mxu0
        %v433 = vadd.f32 %v288, %v432
        %v434 = vpop.f32.mrb[0].mxu0
        %v435 = vadd.f32 %v292, %v434
        %v436 = vpop.f32.mrb[0].mxu0
        %v437 = vadd.f32 %v288, %v436
        %v438 = vpop.f32.mrb[0].mxu0
        %v439 = vadd.f32 %v292, %v438
        %440 = vmatprep.mubr.bf16.mxu0 0
        %441 = vmatmul.mubr.bf16.gmra.mrb[0].mxu0 %v376
        %v442 = vpop.f32.mrb[0].mxu0
        %v443 = vadd.f32 %v288, %v442
        %v444 = vpop.f32.mrb[0].mxu0
        %v445 = vadd.f32 %v292, %v444
        %v446 = vpop.f32.mrb[0].mxu0
        %v447 = vadd.f32 %v288, %v446
        %v448 = vpop.f32.mrb[0].mxu0
        %v449 = vadd.f32 %v292, %v448
        %450 = vdwg.mxu0
        %451 = vmatprep.subr.bf16.mxu0 %v352
        %452 = vmatpush1.bf16.msra.mxu0 %v351
        %453 = vmatprep.subr.bf16.mxu0 %v356
        %454 = vmatpush1.bf16.msra.mxu0 %v355
        %455 = vmatprep.subr.bf16.mxu0 0
        %456 = vmatpush1.bf16.msra.mxu0 0
        %457 = vmatprep.subr.bf16.mxu0 0
        %458 = vmatpush1.bf16.msra.mxu0 0
        %459 = vmatprep.subr.bf16.mxu0 0
        %460 = vmatpush1.bf16.msra.mxu0 0
        %461 = vmatprep.subr.bf16.mxu0 0
        %462 = vmatpush1.bf16.msra.mxu0 0
        %463 = vmatprep.subr.bf16.mxu0 0
        %464 = vmatpush1.bf16.msra.mxu0 0
        %465 = vmatprep.subr.bf16.mxu0 0
        %466 = vmatpush1.bf16.msra.mxu0 0
        %467 = vmatprep.subr.bf16.mxu0 0
        %468 = vmatpush1.bf16.msra.mxu0 0
        %469 = vmatprep.subr.bf16.mxu0 0
        %470 = vmatpush1.bf16.msra.mxu0 0
        %471 = vmatprep.subr.bf16.mxu0 0
        %472 = vmatpush1.bf16.msra.mxu0 0
        %473 = vmatprep.subr.bf16.mxu0 0
        %474 = vmatpush1.bf16.msra.mxu0 0
        %475 = vmatprep.subr.bf16.mxu0 0
        %476 = vmatpush1.bf16.msra.mxu0 0
        %477 = vmatprep.subr.bf16.mxu0 0
        %478 = vmatpush1.bf16.msra.mxu0 0
        %479 = vmatprep.subr.bf16.mxu0 0
        %480 = vmatpush1.bf16.msra.mxu0 0
        %481 = vmatprep.subr.bf16.mxu0 0
        %482 = vmatpush1.bf16.msra.mxu0 0
        %483 = vmatprep.mubr.bf16.mxu0 0
        %484 = vmatmul.mubr.bf16.gmra.mrb[0].mxu0 %v367
        %v485 = vpop.f32.mrb[0].mxu0
        %v486 = vadd.f32 %v296, %v485
        %v487 = vpop.f32.mrb[0].mxu0
        %v488 = vadd.f32 %v300, %v487
        %v489 = vpop.f32.mrb[0].mxu0
        %v490 = vadd.f32 %v296, %v489
        %v491 = vpop.f32.mrb[0].mxu0
        %v492 = vadd.f32 %v300, %v491
        %493 = vmatprep.mubr.bf16.mxu0 0
        %494 = vmatmul.mubr.bf16.gmra.mrb[0].mxu0 %v370
        %v495 = vpop.f32.mrb[0].mxu0
        %v496 = vadd.f32 %v296, %v495
        %v497 = vpop.f32.mrb[0].mxu0
        %v498 = vadd.f32 %v300, %v497
        %v499 = vpop.f32.mrb[0].mxu0
        %v500 = vadd.f32 %v296, %v499
        %v501 = vpop.f32.mrb[0].mxu0
        %v502 = vadd.f32 %v300, %v501
        %503 = vmatprep.mubr.bf16.mxu0 0
        %504 = vmatmul.mubr.bf16.gmra.mrb[0].mxu0 %v373
        %v505 = vpop.f32.mrb[0].mxu0
        %v506 = vadd.f32 %v296, %v505
        %v507 = vpop.f32.mrb[0].mxu0
        %v508 = vadd.f32 %v300, %v507
        %v509 = vpop.f32.mrb[0].mxu0
        %v510 = vadd.f32 %v296, %v509
        %v511 = vpop.f32.mrb[0].mxu0
        %v512 = vadd.f32 %v300, %v511
        %513 = vmatprep.mubr.bf16.mxu0 0
        %514 = vmatmul.mubr.bf16.gmra.mrb[0].mxu0 %v376
        %v515 = vpop.f32.mrb[0].mxu0
        %v516 = vadd.f32 %v296, %v515
        %v517 = vpop.f32.mrb[0].mxu0
        %v518 = vadd.f32 %v300, %v517
        %v519 = vpop.f32.mrb[0].mxu0
        %v520 = vadd.f32 %v296, %v519
        %v521 = vpop.f32.mrb[0].mxu0
        %v522 = vadd.f32 %v300, %v521
        %523 = vdwg.mxu0
        %v524 = vmul.f32 %v413, 0.5
        %v525 = vmul.f32 %v415, 0.5
        %v526 = vmul.f32 %v486, 0.5
        %v527 = vmul.f32 %v488, 0.5
        %v528 = vmul.f32 %v417, 0.5
        %v529 = vmul.f32 %v419, 0.5
        %v530 = vmul.f32 %v490, 0.5
        %v531 = vmul.f32 %v492, 0.5
        %v532 = vmul.f32 %v423, 0.5
        %v533 = vmul.f32 %v425, 0.5
        %v534 = vmul.f32 %v496, 0.5
        %v535 = vmul.f32 %v498, 0.5
        %v536 = vmul.f32 %v427, 0.5
        %v537 = vmul.f32 %v429, 0.5
        %v538 = vmul.f32 %v500, 0.5
        %v539 = vmul.f32 %v502, 0.5
        %v540 = vmul.f32 %v433, 0.5
        %v541 = vmul.f32 %v435, 0.5
        %v542 = vmul.f32 %v506, 0.5
        %v543 = vmul.f32 %v508, 0.5
        %v544 = vmul.f32 %v437, 0.5
        %v545 = vmul.f32 %v439, 0.5
        %v546 = vmul.f32 %v510, 0.5
        %v547 = vmul.f32 %v512, 0.5
        %v548 = vmul.f32 %v443, 0.5
        %v549 = vmul.f32 %v445, 0.5
        %v550 = vmul.f32 %v516, 0.5
        %v551 = vmul.f32 %v518, 0.5
        %v552 = vmul.f32 %v447, 0.5
        %v553 = vmul.f32 %v449, 0.5
        %v554 = vmul.f32 %v520, 0.5
        %v555 = vmul.f32 %v522, 0.5
        %v556 = vtanh.pop %v524
        %v557 = vtanh.pop %v525
        %v558 = vtanh.pop %v526
        %v559 = vtanh.pop %v527
        %v560 = vtanh.pop %v528
        %v561 = vtanh.pop %v529
        %v562 = vtanh.pop %v530
        %v563 = vtanh.pop %v531
        %v564 = vtanh.pop %v532
        %v565 = vtanh.pop %v533
        %v566 = vtanh.pop %v534
        %v567 = vtanh.pop %v535
        %v568 = vtanh.pop %v536
        %v569 = vtanh.pop %v537
        %v570 = vtanh.pop %v538
        %v571 = vtanh.pop %v539
        %v572 = vtanh.pop %v540
        %v573 = vtanh.pop %v541
        %v574 = vtanh.pop %v542
        %v575 = vtanh.pop %v543
        %v576 = vtanh.pop %v544
        %v577 = vtanh.pop %v545
        %v578 = vtanh.pop %v546
        %v579 = vtanh.pop %v547
        %v580 = vtanh.pop %v548
        %v581 = vtanh.pop %v549
        %v582 = vtanh.pop %v550
        %v583 = vtanh.pop %v551
        %v584 = vtanh.pop %v552
        %v585 = vtanh.pop %v553
        %v586 = vtanh.pop %v554
        %v587 = vtanh.pop %v555
        %v588 = vmul.f32 %v556, 0.5
        %v589 = vmul.f32 %v557, 0.5
        %v590 = vmul.f32 %v558, 0.5
        %v591 = vmul.f32 %v559, 0.5
        %v592 = vmul.f32 %v560, 0.5
        %v593 = vmul.f32 %v561, 0.5
        %v594 = vmul.f32 %v562, 0.5
        %v595 = vmul.f32 %v563, 0.5
        %v596 = vmul.f32 %v564, 0.5
        %v597 = vmul.f32 %v565, 0.5
        %v598 = vmul.f32 %v566, 0.5
        %v599 = vmul.f32 %v567, 0.5
        %v600 = vmul.f32 %v568, 0.5
        %v601 = vmul.f32 %v569, 0.5
        %v602 = vmul.f32 %v570, 0.5
        %v603 = vmul.f32 %v571, 0.5
        %v604 = vmul.f32 %v572, 0.5
        %v605 = vmul.f32 %v573, 0.5
        %v606 = vmul.f32 %v574, 0.5
        %v607 = vmul.f32 %v575, 0.5
        %v608 = vmul.f32 %v576, 0.5
        %v609 = vmul.f32 %v577, 0.5
        %v610 = vmul.f32 %v578, 0.5
        %v611 = vmul.f32 %v579, 0.5
        %v612 = vmul.f32 %v580, 0.5
        %v613 = vmul.f32 %v581, 0.5
        %v614 = vmul.f32 %v582, 0.5
        %v615 = vmul.f32 %v583, 0.5
        %v616 = vmul.f32 %v584, 0.5
        %v617 = vmul.f32 %v585, 0.5
        %v618 = vmul.f32 %v586, 0.5
        %v619 = vmul.f32 %v587, 0.5
        %v620 = vadd.f32 %v588, 0.5
        %v621 = vadd.f32 %v589, 0.5
        %v622 = vadd.f32 %v590, 0.5
        %v623 = vadd.f32 %v591, 0.5
        %v624 = vadd.f32 %v592, 0.5
        %v625 = vadd.f32 %v593, 0.5
        %v626 = vadd.f32 %v594, 0.5
        %v627 = vadd.f32 %v595, 0.5
        %v628 = vadd.f32 %v596, 0.5
        %v629 = vadd.f32 %v597, 0.5
        %v630 = vadd.f32 %v598, 0.5
        %v631 = vadd.f32 %v599, 0.5
        %v632 = vadd.f32 %v600, 0.5
        %v633 = vadd.f32 %v601, 0.5
        %v634 = vadd.f32 %v602, 0.5
        %v635 = vadd.f32 %v603, 0.5
        %v636 = vadd.f32 %v604, 0.5
        %v637 = vadd.f32 %v605, 0.5
        %v638 = vadd.f32 %v606, 0.5
        %v639 = vadd.f32 %v607, 0.5
        %v640 = vadd.f32 %v608, 0.5
        %v641 = vadd.f32 %v609, 0.5
        %v642 = vadd.f32 %v610, 0.5
        %v643 = vadd.f32 %v611, 0.5
        %v644 = vadd.f32 %v612, 0.5
        %v645 = vadd.f32 %v613, 0.5
        %v646 = vadd.f32 %v614, 0.5
        %v647 = vadd.f32 %v615, 0.5
        %v648 = vadd.f32 %v616, 0.5
        %v649 = vadd.f32 %v617, 0.5
        %v650 = vadd.f32 %v618, 0.5
        %v651 = vadd.f32 %v619, 0.5
        %v652 = vmul.f32 %v413, %v620
        %v653 = vmul.f32 %v415, %v621
        %v654 = vmul.f32 %v486, %v622
        %v655 = vmul.f32 %v488, %v623
        %v656 = vmul.f32 %v417, %v624
        %v657 = vmul.f32 %v419, %v625
        %v658 = vmul.f32 %v490, %v626
        %v659 = vmul.f32 %v492, %v627
        %v660 = vmul.f32 %v423, %v628
        %v661 = vmul.f32 %v425, %v629
        %v662 = vmul.f32 %v496, %v630
        %v663 = vmul.f32 %v498, %v631
        %v664 = vmul.f32 %v427, %v632
        %v665 = vmul.f32 %v429, %v633
        %v666 = vmul.f32 %v500, %v634
        %v667 = vmul.f32 %v502, %v635
        %v668 = vmul.f32 %v433, %v636
        %v669 = vmul.f32 %v435, %v637
        %v670 = vmul.f32 %v506, %v638
        %v671 = vmul.f32 %v508, %v639
        %v672 = vmul.f32 %v437, %v640
        %v673 = vmul.f32 %v439, %v641
        %v674 = vmul.f32 %v510, %v642
        %v675 = vmul.f32 %v512, %v643
        %v676 = vmul.f32 %v443, %v644
        %v677 = vmul.f32 %v445, %v645
        %v678 = vmul.f32 %v516, %v646
        %v679 = vmul.f32 %v518, %v647
        %v680 = vmul.f32 %v447, %v648
        %v681 = vmul.f32 %v449, %v649
        %v682 = vmul.f32 %v520, %v650
        %v683 = vmul.f32 %v522, %v651
        %v684 = vadd.f32 %v652, %v656
        %v685 = vadd.f32 %v684, %v660
        %v686 = vadd.f32 %v685, %v664
        %v687 = vadd.f32 %v686, %v668
        %v688 = vadd.f32 %v687, %v672
        %v689 = vadd.f32 %v688, %v676
        %v690 = vadd.f32 %v689, %v680
        %v691 = vrot.slane %v690, 4
        %v692 = vadd.f32 %v690, %v691
        %v693 = vrot.slane %v692, 2
        %v694 = vadd.f32 %v692, %v693
        %v695 = vrot.slane %v694, 1
        %v696 = vadd.f32 %v694, %v695
        %v697 = vadd.f32 %v653, %v657
        %v698 = vadd.f32 %v697, %v661
        %v699 = vadd.f32 %v698, %v665
        %v700 = vadd.f32 %v699, %v669
        %v701 = vadd.f32 %v700, %v673
        %v702 = vadd.f32 %v701, %v677
        %v703 = vadd.f32 %v702, %v681
        %v704 = vrot.slane %v703, 4
        %v705 = vadd.f32 %v703, %v704
        %v706 = vrot.slane %v705, 2
        %v707 = vadd.f32 %v705, %v706
        %v708 = vrot.slane %v707, 1
        %v709 = vadd.f32 %v707, %v708
        %v710 = vadd.f32 %v654, %v658
        %v711 = vadd.f32 %v710, %v662
        %v712 = vadd.f32 %v711, %v666
        %v713 = vadd.f32 %v712, %v670
        %v714 = vadd.f32 %v713, %v674
        %v715 = vadd.f32 %v714, %v678
        %v716 = vadd.f32 %v715, %v682
        %v717 = vrot.slane %v716, 4
        %v718 = vadd.f32 %v716, %v717
        %v719 = vrot.slane %v718, 2
        %v720 = vadd.f32 %v718, %v719
        %v721 = vrot.slane %v720, 1
        %v722 = vadd.f32 %v720, %v721
        %v723 = vadd.f32 %v655, %v659
        %v724 = vadd.f32 %v723, %v663
        %v725 = vadd.f32 %v724, %v667
        %v726 = vadd.f32 %v725, %v671
        %v727 = vadd.f32 %v726, %v675
        %v728 = vadd.f32 %v727, %v679
        %v729 = vadd.f32 %v728, %v683
        %v730 = vrot.slane %v729, 4
        %v731 = vadd.f32 %v729, %v730
        %v732 = vrot.slane %v731, 2
        %v733 = vadd.f32 %v731, %v732
        %v734 = vrot.slane %v733, 1
        %v735 = vadd.f32 %v733, %v734
        %v736 = vrcp.pop 64.0
        %v737 = vmul.f32 %v696, %v736
        %v738 = vmul.f32 %v709, %v736
        %v739 = vmul.f32 %v722, %v736
        %v740 = vmul.f32 %v735, %v736
        %v741 = vpack.c.bf16 %v737, %v737
        %v742 = vpack.c.bf16 %v738, %v738
        %v743 = vpack.c.bf16 %v739, %v739
        %v744 = vpack.c.bf16 %v740, %v740
        %v749 = vcombine.low %v741, %v742
        %v750 = vcombine.low %v743, %v744
        %v752 = vunpack.c.l.s4 1966171168
        %v753 = vunpack.c.0.s8 %v752
        %v754 = vlaneseq
        %v755 = vshrl.u32 %v754, 7
        %v756 = vsub.s32 %v753, %v755
        %v757 = vrot.slane %v749, %v756
        %v759 = vunpack.c.l.s4 1966171168
        %v760 = vunpack.c.0.s8 %v759
        %v761 = vlaneseq
        %v762 = vshrl.u32 %v761, 7
        %v763 = vsub.s32 %v760, %v762
        %v764 = vrot.slane %v750, %v763
        %v765 = vcombine.low %v757, %v764
        %v767 = vunpack.c.l.s4 1966171168
        %v768 = vunpack.c.0.s8 %v767
        %v769 = vlaneseq
        %v770 = vshrl.u32 %v769, 7
        %v771 = vsub.s32 %v768, %v770
        %v772 = vrot.slane %v765, %v771
        %vm774 = vcmask 1040384
        %vm775 = vsmask.f32 256
        %vm776 = vmand %vm774, %vm775
        %vm777 = vcmask 1041409
        %vm778 = vsmask.f32 1280
        %vm779 = vmand %vm777, %vm778
        %vm780 = vmor %vm779, %vm776
        %vm781 = vcmask 1042434
        %vm782 = vsmask.f32 2304
        %vm783 = vmand %vm781, %vm782
        %vm784 = vmor %vm783, %vm780
        %vm785 = vcmask 1043459
        %vm786 = vsmask.f32 3328
        %vm787 = vmand %vm785, %vm786
        %vm788 = vmor %vm787, %vm784
        %v789 = vld [vmem:[%s264] sm:$0xf]
        %v790 = vsel %vm788, %v772, %v789
        %791 = vst [vmem:[%s264] sm:$0xf] %v790
        %s792 = smul.u32 4, %s19
        %p793 = scmp.lt.s32.totalorder %s18, 1
        %s794 = scalar_select %p793, %s18, 1
        %p795 = scmp.lt.s32.totalorder %s792, 19
        %s796 = scalar_select %p795, %s792, 19
        %s797 = smul.addr %s794, 20
        %s798 = sadd.s32 %s796, %s797
        %s799 = scalar_lea.vmem %s3, %s798
        // Predicated region
        $region56: #{_lambda_.8} parent=50 // pred_check
          %p800 = pneg %p124
        $region57: #{_lambda_.8} parent=50 // pred_check_branch
          %802 = sbr.rel (%p800) target = $region59
        $region58: #{_lambda_.8} parent=50 // pred_region
          %s803 = smul.u32 4, %s19
        $region59: #{_lambda_.8} parent=50 // pred_fallthru
          _
      $region51: #{_lambda_.8} parent=5 // pred_fallthru
        _
      %p804 = scmp.le.s32.totalorder 2, %s9
      // Predicated region
      $region60: #{_lambda_.8} parent=5 // pred_check
        %p805 = pneg %p804
      $region61: #{_lambda_.8} parent=5 // pred_check_branch
        %807 = sbr.rel (%p805) target = $region63
      $region62: #{_lambda_.8} parent=5 // pred_region
        %s808 = ssub.s32 %s9, 2
        // Predicated region
        $region64: #{_lambda_.8} parent=62 // pred_check
          %p809 = pneg %p130
        $region65: #{_lambda_.8} parent=62 // pred_check_branch
          %811 = sbr.rel (%p809) target = $region67
        $region66: #{_lambda_.8} parent=62 // pred_region
          %s812 = smul.u32 4, %s21
          %p813 = scmp.lt.s32.totalorder %s20, 1
          %s814 = scalar_select %p813, %s20, 1
          %p815 = scmp.lt.s32.totalorder %s812, 19
          %s816 = scalar_select %p815, %s812, 19
          %s817 = smul.addr %s814, 20
          %s818 = sadd.s32 %s816, %s817
          %s819 = scalar_lea.vmem %s3, %s818
        $region67: #{_lambda_.8} parent=62 // pred_fallthru
          _
      $region63: #{_lambda_.8} parent=5 // pred_fallthru
        _
    $region6: #{_lambda_.8} parent=1 // loop_footer
      %s13 = sadd.s32 1, %s9
    $region7: #{_lambda_.8} parent=1 // loop_footer_branch
      %8 = sbr.rel target = $region3
    $region8: #{_lambda_.8} parent=1 // loop_exit
      _

// kernel: _lambda_.7
$region0: #{_lambda_.7}
  #allocation0 [shape = 'u32[]', space=smem, size = 0x4, offset = 0x4, fixed_abs, tag = 'smem constant byte address 0x4 - core index']
  #allocation1 [shape = 'u32[144,128]{1,0:T(1,128)}', space=vmem, size = 0x12000, scoped, tag = 'internal scratch']
  %s0 = inlined_call_operand.vmem [shape: bf16[2,9,64,128], index: 0, kind: input, shape index: {}]
  %s1 = inlined_call_operand.vmem [shape: f32[9,1,128], index: 1, kind: input, shape index: {}]
  %s2 = inlined_call_operand.vmem [shape: f32[1,128], index: 2, kind: input, shape index: {}]
  %s3 = inlined_call_operand.vmem [shape: bf16[128,8], index: 3, kind: input, shape index: {}]
  %s4 = inlined_call_operand.vmem [shape: f32[1,8], index: 4, kind: input, shape index: {}]
  %s5 = inlined_call_operand.vmem [shape: bf16[8,128], index: 5, kind: input, shape index: {}]
  %s6 = inlined_call_operand.vmem [shape: f32[1,128], index: 6, kind: input, shape index: {}]
  %s7 = inlined_call_operand.vmem [shape: bf16[128,32], index: 7, kind: input, shape index: {}]
  %s8 = inlined_call_operand.vmem [shape: f32[1,32], index: 8, kind: input, shape index: {}]
  %s9 = inlined_call_operand.vmem [shape: bf16[2,64,32], index: 9, kind: output, shape index: {}]
  %s10 = sld [smem:[#allocation0]]
  $region69: #{_lambda_.7} parent=0
    _
  %s12 = ssub.s32 1, %s10
  %s13 = scalar_select 0, %s12, %s10
  loop: start=0, step=1, limit=4
  $region2: #{_lambda_.7} parent=0 // loop_pre_header
    _
  $region3: #{_lambda_.7} parent=0 // loop_header
    %s15 = sphi 0, %s19
    %p16 = scmp.ge.s32.totalorder %s15, 4
    %s25 = sphi 0, %s27
    %s28 = sphi 0, %s25
    %s29 = sphi 0, %s28
    %s45 = sphi 0, %s29
    %s49 = sphi 0, %s49
    %s51 = sphi 0, %s49
    %s52 = sphi 0, %s51
    %s66 = sphi 0, %s52
    %s70 = sphi 0, %s70
    %s72 = sphi 0, %s70
    %s73 = sphi 0, %s72
    %s87 = sphi 0, %s73
    %s91 = sphi 0, %s91
    %s93 = sphi 0, %s91
    %s94 = sphi 0, %s93
    %s108 = sphi 0, %s94
    %s112 = sphi 0, %s112
    %s114 = sphi 0, %s112
    %s115 = sphi 0, %s114
    %s129 = sphi 0, %s115
    %s133 = sphi 0, %s133
    %s135 = sphi 0, %s133
    %s136 = sphi 0, %s135
    %s150 = sphi 0, %s136
    %s154 = sphi 0, %s154
    %s156 = sphi 0, %s154
    %s157 = sphi 0, %s156
    %s171 = sphi 0, %s157
    %s175 = sphi 0, %s175
    %s177 = sphi 0, %s175
    %s178 = sphi 0, %s177
    %s192 = sphi 0, %s178
    %s196 = sphi 0, %s196
    %s198 = sphi 0, %s196
    %s199 = sphi 0, %s198
    %s213 = sphi 0, %s199
    %s219 = sphi 0, %s221
    %s222 = sphi 0, %s219
    %s223 = sphi 0, %s222
    %s239 = sphi 0, %s223
  $region4: #{_lambda_.7} parent=0 // loop_header_branch
    %18 = sbr.rel (%p16) target = $region8
  $region5: #{_lambda_.7} parent=0 // loop_body
    %s20 = ssub.s32 %s15, 1
    %s21 = ssub.s32 %s15, 2
    %s22 = sadd.s32 %s15, 1
    %s23 = ssub.s32 %s15, %s22
    %p24 = scmp.eq.s32.totalorder %s23, 0
    %s26 = sadd.s32 %s25, 1
    %s27 = scalar_select %p24, %s25, %s26
    %p30 = pneg %p24
    %p31 = scmp.eq.s32.totalorder %s15, 1
    %p32 = por %p30, %p31
    %p33 = scmp.ne.s32.totalorder %s25, %s28
    %p34 = scmp.eq.s32.totalorder %s15, 0
    %p35 = por %p33, %p34
    %p36 = scmp.ne.s32.totalorder %s25, %s28
    %p37 = scmp.eq.s32.totalorder %s20, 1
    %p38 = por %p36, %p37
    %p39 = scmp.ne.s32.totalorder %s28, %s29
    %p40 = scmp.eq.s32.totalorder %s20, 0
    %p41 = por %p39, %p40
    %p42 = scmp.ne.s32.totalorder %s28, %s29
    %p43 = scmp.eq.s32.totalorder %s21, 1
    %p44 = por %p42, %p43
    %p46 = scmp.ne.s32.totalorder %s29, %s45
    %p47 = scmp.eq.s32.totalorder %s21, 0
    %p48 = por %p46, %p47
    %s50 = sadd.s32 %s49, 1
    %p53 = scmp.eq.s32.totalorder %s15, 1
    %p54 = scmp.ne.s32.totalorder %s49, %s51
    %p55 = scmp.eq.s32.totalorder %s15, 0
    %p56 = por %p54, %p55
    %p57 = scmp.ne.s32.totalorder %s49, %s51
    %p58 = scmp.eq.s32.totalorder %s20, 1
    %p59 = por %p57, %p58
    %p60 = scmp.ne.s32.totalorder %s51, %s52
    %p61 = scmp.eq.s32.totalorder %s20, 0
    %p62 = por %p60, %p61
    %p63 = scmp.ne.s32.totalorder %s51, %s52
    %p64 = scmp.eq.s32.totalorder %s21, 1
    %p65 = por %p63, %p64
    %p67 = scmp.ne.s32.totalorder %s52, %s66
    %p68 = scmp.eq.s32.totalorder %s21, 0
    %p69 = por %p67, %p68
    %s71 = sadd.s32 %s70, 1
    %p74 = scmp.eq.s32.totalorder %s15, 1
    %p75 = scmp.ne.s32.totalorder %s70, %s72
    %p76 = scmp.eq.s32.totalorder %s15, 0
    %p77 = por %p75, %p76
    %p78 = scmp.ne.s32.totalorder %s70, %s72
    %p79 = scmp.eq.s32.totalorder %s20, 1
    %p80 = por %p78, %p79
    %p81 = scmp.ne.s32.totalorder %s72, %s73
    %p82 = scmp.eq.s32.totalorder %s20, 0
    %p83 = por %p81, %p82
    %p84 = scmp.ne.s32.totalorder %s72, %s73
    %p85 = scmp.eq.s32.totalorder %s21, 1
    %p86 = por %p84, %p85
    %p88 = scmp.ne.s32.totalorder %s73, %s87
    %p89 = scmp.eq.s32.totalorder %s21, 0
    %p90 = por %p88, %p89
    %s92 = sadd.s32 %s91, 1
    %p95 = scmp.eq.s32.totalorder %s15, 1
    %p96 = scmp.ne.s32.totalorder %s91, %s93
    %p97 = scmp.eq.s32.totalorder %s15, 0
    %p98 = por %p96, %p97
    %p99 = scmp.ne.s32.totalorder %s91, %s93
    %p100 = scmp.eq.s32.totalorder %s20, 1
    %p101 = por %p99, %p100
    %p102 = scmp.ne.s32.totalorder %s93, %s94
    %p103 = scmp.eq.s32.totalorder %s20, 0
    %p104 = por %p102, %p103
    %p105 = scmp.ne.s32.totalorder %s93, %s94
    %p106 = scmp.eq.s32.totalorder %s21, 1
    %p107 = por %p105, %p106
    %p109 = scmp.ne.s32.totalorder %s94, %s108
    %p110 = scmp.eq.s32.totalorder %s21, 0
    %p111 = por %p109, %p110
    %s113 = sadd.s32 %s112, 1
    %p116 = scmp.eq.s32.totalorder %s15, 1
    %p117 = scmp.ne.s32.totalorder %s112, %s114
    %p118 = scmp.eq.s32.totalorder %s15, 0
    %p119 = por %p117, %p118
    %p120 = scmp.ne.s32.totalorder %s112, %s114
    %p121 = scmp.eq.s32.totalorder %s20, 1
    %p122 = por %p120, %p121
    %p123 = scmp.ne.s32.totalorder %s114, %s115
    %p124 = scmp.eq.s32.totalorder %s20, 0
    %p125 = por %p123, %p124
    %p126 = scmp.ne.s32.totalorder %s114, %s115
    %p127 = scmp.eq.s32.totalorder %s21, 1
    %p128 = por %p126, %p127
    %p130 = scmp.ne.s32.totalorder %s115, %s129
    %p131 = scmp.eq.s32.totalorder %s21, 0
    %p132 = por %p130, %p131
    %s134 = sadd.s32 %s133, 1
    %p137 = scmp.eq.s32.totalorder %s15, 1
    %p138 = scmp.ne.s32.totalorder %s133, %s135
    %p139 = scmp.eq.s32.totalorder %s15, 0
    %p140 = por %p138, %p139
    %p141 = scmp.ne.s32.totalorder %s133, %s135
    %p142 = scmp.eq.s32.totalorder %s20, 1
    %p143 = por %p141, %p142
    %p144 = scmp.ne.s32.totalorder %s135, %s136
    %p145 = scmp.eq.s32.totalorder %s20, 0
    %p146 = por %p144, %p145
    %p147 = scmp.ne.s32.totalorder %s135, %s136
    %p148 = scmp.eq.s32.totalorder %s21, 1
    %p149 = por %p147, %p148
    %p151 = scmp.ne.s32.totalorder %s136, %s150
    %p152 = scmp.eq.s32.totalorder %s21, 0
    %p153 = por %p151, %p152
    %s155 = sadd.s32 %s154, 1
    %p158 = scmp.eq.s32.totalorder %s15, 1
    %p159 = scmp.ne.s32.totalorder %s154, %s156
    %p160 = scmp.eq.s32.totalorder %s15, 0
    %p161 = por %p159, %p160
    %p162 = scmp.ne.s32.totalorder %s154, %s156
    %p163 = scmp.eq.s32.totalorder %s20, 1
    %p164 = por %p162, %p163
    %p165 = scmp.ne.s32.totalorder %s156, %s157
    %p166 = scmp.eq.s32.totalorder %s20, 0
    %p167 = por %p165, %p166
    %p168 = scmp.ne.s32.totalorder %s156, %s157
    %p169 = scmp.eq.s32.totalorder %s21, 1
    %p170 = por %p168, %p169
    %p172 = scmp.ne.s32.totalorder %s157, %s171
    %p173 = scmp.eq.s32.totalorder %s21, 0
    %p174 = por %p172, %p173
    %s176 = sadd.s32 %s175, 1
    %p179 = scmp.eq.s32.totalorder %s15, 1
    %p180 = scmp.ne.s32.totalorder %s175, %s177
    %p181 = scmp.eq.s32.totalorder %s15, 0
    %p182 = por %p180, %p181
    %p183 = scmp.ne.s32.totalorder %s175, %s177
    %p184 = scmp.eq.s32.totalorder %s20, 1
    %p185 = por %p183, %p184
    %p186 = scmp.ne.s32.totalorder %s177, %s178
    %p187 = scmp.eq.s32.totalorder %s20, 0
    %p188 = por %p186, %p187
    %p189 = scmp.ne.s32.totalorder %s177, %s178
    %p190 = scmp.eq.s32.totalorder %s21, 1
    %p191 = por %p189, %p190
    %p193 = scmp.ne.s32.totalorder %s178, %s192
    %p194 = scmp.eq.s32.totalorder %s21, 0
    %p195 = por %p193, %p194
    %s197 = sadd.s32 %s196, 1
    %p200 = scmp.eq.s32.totalorder %s15, 1
    %p201 = scmp.ne.s32.totalorder %s196, %s198
    %p202 = scmp.eq.s32.totalorder %s15, 0
    %p203 = por %p201, %p202
    %p204 = scmp.ne.s32.totalorder %s196, %s198
    %p205 = scmp.eq.s32.totalorder %s20, 1
    %p206 = por %p204, %p205
    %p207 = scmp.ne.s32.totalorder %s198, %s199
    %p208 = scmp.eq.s32.totalorder %s20, 0
    %p209 = por %p207, %p208
    %p210 = scmp.ne.s32.totalorder %s198, %s199
    %p211 = scmp.eq.s32.totalorder %s21, 1
    %p212 = por %p210, %p211
    %p214 = scmp.ne.s32.totalorder %s199, %s213
    %p215 = scmp.eq.s32.totalorder %s21, 0
    %p216 = por %p214, %p215
    %s217 = ssub.s32 %s15, %s22
    %p218 = scmp.eq.s32.totalorder %s217, 0
    %s220 = sadd.s32 %s219, 1
    %s221 = scalar_select %p218, %s219, %s220
    %p224 = pneg %p218
    %p225 = scmp.eq.s32.totalorder %s15, 1
    %p226 = por %p224, %p225
    %p227 = scmp.ne.s32.totalorder %s219, %s222
    %p228 = scmp.eq.s32.totalorder %s15, 0
    %p229 = por %p227, %p228
    %p230 = scmp.ne.s32.totalorder %s219, %s222
    %p231 = scmp.eq.s32.totalorder %s20, 1
    %p232 = por %p230, %p231
    %p233 = scmp.ne.s32.totalorder %s222, %s223
    %p234 = scmp.eq.s32.totalorder %s20, 0
    %p235 = por %p233, %p234
    %p236 = scmp.ne.s32.totalorder %s222, %s223
    %p237 = scmp.eq.s32.totalorder %s21, 1
    %p238 = por %p236, %p237
    %p240 = scmp.ne.s32.totalorder %s223, %s239
    %p241 = scmp.eq.s32.totalorder %s21, 0
    %p242 = por %p240, %p241
    %p243 = scmp.le.s32.totalorder 1, %s15
    %p244 = scmp.lt.s32.totalorder %s15, 3
    %p245 = pnand %p243, %p244
    %p246 = pneg %p245
    // Predicated region
    $region9: #{_lambda_.7} parent=5 // pred_check
      _
    $region10: #{_lambda_.7} parent=5 // pred_check_branch
      %248 = sbr.rel (%p245) target = $region12
    $region11: #{_lambda_.7} parent=5 // pred_region
      %s249 = ssub.s32 %s15, 1
      // Predicated region
      $region13: #{_lambda_.7} parent=11 // pred_check
        %p250 = pneg %p62
      $region14: #{_lambda_.7} parent=11 // pred_check_branch
        %252 = sbr.rel (%p250) target = $region16
      $region15: #{_lambda_.7} parent=11 // pred_region
        _
      $region16: #{_lambda_.7} parent=11 // pred_fallthru
        _
      // Predicated region
      $region17: #{_lambda_.7} parent=11 // pred_check
        %p253 = pneg %p83
      $region18: #{_lambda_.7} parent=11 // pred_check_branch
        %255 = sbr.rel (%p253) target = $region20
      $region19: #{_lambda_.7} parent=11 // pred_region
        _
      $region20: #{_lambda_.7} parent=11 // pred_fallthru
        _
      // Predicated region
      $region21: #{_lambda_.7} parent=11 // pred_check
        %p256 = pneg %p104
      $region22: #{_lambda_.7} parent=11 // pred_check_branch
        %258 = sbr.rel (%p256) target = $region24
      $region23: #{_lambda_.7} parent=11 // pred_region
        _
      $region24: #{_lambda_.7} parent=11 // pred_fallthru
        _
      // Predicated region
      $region25: #{_lambda_.7} parent=11 // pred_check
        %p259 = pneg %p125
      $region26: #{_lambda_.7} parent=11 // pred_check_branch
        %261 = sbr.rel (%p259) target = $region28
      $region27: #{_lambda_.7} parent=11 // pred_region
        _
      $region28: #{_lambda_.7} parent=11 // pred_fallthru
        _
      // Predicated region
      $region29: #{_lambda_.7} parent=11 // pred_check
        %p262 = pneg %p146
      $region30: #{_lambda_.7} parent=11 // pred_check_branch
        %264 = sbr.rel (%p262) target = $region32
      $region31: #{_lambda_.7} parent=11 // pred_region
        _
      $region32: #{_lambda_.7} parent=11 // pred_fallthru
        _
      // Predicated region
      $region33: #{_lambda_.7} parent=11 // pred_check
        %p265 = pneg %p167
      $region34: #{_lambda_.7} parent=11 // pred_check_branch
        %267 = sbr.rel (%p265) target = $region36
      $region35: #{_lambda_.7} parent=11 // pred_region
        _
      $region36: #{_lambda_.7} parent=11 // pred_fallthru
        _
      // Predicated region
      $region37: #{_lambda_.7} parent=11 // pred_check
        %p268 = pneg %p188
      $region38: #{_lambda_.7} parent=11 // pred_check_branch
        %270 = sbr.rel (%p268) target = $region40
      $region39: #{_lambda_.7} parent=11 // pred_region
        _
      $region40: #{_lambda_.7} parent=11 // pred_fallthru
        _
      // Predicated region
      $region41: #{_lambda_.7} parent=11 // pred_check
        %p271 = pneg %p209
      $region42: #{_lambda_.7} parent=11 // pred_check_branch
        %273 = sbr.rel (%p271) target = $region44
      $region43: #{_lambda_.7} parent=11 // pred_region
        _
      $region44: #{_lambda_.7} parent=11 // pred_fallthru
        _
    $region12: #{_lambda_.7} parent=5 // pred_fallthru
      _
    %p274 = scmp.lt.s32.totalorder %s15, 2
    // Predicated region
    $region45: #{_lambda_.7} parent=5 // pred_check
      %p275 = pneg %p274
    $region46: #{_lambda_.7} parent=5 // pred_check_branch
      %277 = sbr.rel (%p275) target = $region48
    $region47: #{_lambda_.7} parent=5 // pred_region
      // Predicated region
      $region49: #{_lambda_.7} parent=47 // pred_check
        %p278 = pneg %p35
      $region50: #{_lambda_.7} parent=47 // pred_check_branch
        %280 = sbr.rel (%p278) target = $region52
      $region51: #{_lambda_.7} parent=47 // pred_region
        %p281 = scmp.lt.s32.totalorder %s15, 1
        %s282 = scalar_select %p281, %s15, 1
        %s283 = smul.addr %s282, 72
        %s284 = smul.addr %s283, 4
        %s285 = scalar_lea.vmem %s0, %s284
      $region52: #{_lambda_.7} parent=47 // pred_fallthru
        _
    $region48: #{_lambda_.7} parent=5 // pred_fallthru
      _
    %p286 = scmp.le.s32.totalorder 1, %s15
    %p287 = scmp.lt.s32.totalorder %s15, 3
    %p288 = pnand %p286, %p287
    %p289 = pneg %p288
    // Predicated region
    $region53: #{_lambda_.7} parent=5 // pred_check
      _
    $region54: #{_lambda_.7} parent=5 // pred_check_branch
      %291 = sbr.rel (%p288) target = $region56
    $region55: #{_lambda_.7} parent=5 // pred_region
      %s292 = ssub.s32 %s15, 1
      %p293 = scmp.lt.s32.totalorder %s20, 1
      %s294 = scalar_select %p293, %s20, 1
      %s295 = smul.addr %s294, 72
      %s296 = smul.addr %s295, 4
      %s297 = scalar_lea.vmem %s0, %s296
      %p298 = pneg %p41
      %p299 = pneg %p38
      %p300 = pneg %p62
      %p301 = pneg %p59
      %p302 = pneg %p83
      %p303 = pneg %p80
      %p304 = pneg %p104
      %p305 = pneg %p101
      %p306 = pneg %p125
      %p307 = pneg %p122
      %p308 = pneg %p146
      %p309 = pneg %p143
      %p310 = pneg %p167
      %p311 = pneg %p164
      %p312 = pneg %p188
      %p313 = pneg %p185
      %p314 = pneg %p209
      %p315 = pneg %p206
      %p316 = pneg %p235
      %p317 = pneg %p232
      %p318 = scmp.lt.s32.totalorder %s20, 1
      %s319 = scalar_select %p318, %s20, 1
      %s320 = smul.addr %s319, 8
      %s321 = smul.addr %s320, 4
      %s322 = scalar_lea.vmem %s9, %s321
      %p323 = scmp.lt.s32.totalorder %s20, 1
      %s324 = scalar_select %p323, %s20, 1
      %s325 = smul.addr %s324, 72
      %s326 = smul.addr %s325, 4
      %s327 = scalar_lea.vmem %s0, %s326
      %p328 = scmp.lt.s32.totalorder %s20, 1
      %s329 = scalar_select %p328, %s20, 1
      %s330 = smul.addr %s329, 8
      %s331 = smul.addr %s330, 4
      %s332 = scalar_lea.vmem %s9, %s331
      %v334 = vld [vmem:[%s327] sm:$0xf]
      %v335 = vld [vmem:[%s327 + $0x4] sm:$0xf]
      %v336 = vld [vmem:[%s327 + $0x8] sm:$0xf]
      %v337 = vld [vmem:[%s327 + $0xc] sm:$0xf]
      %v338 = vld [vmem:[%s327 + $0x10] sm:$0xf]
      %v339 = vld [vmem:[%s327 + $0x14] sm:$0xf]
      %v340 = vld [vmem:[%s327 + $0x18] sm:$0xf]
      %v341 = vld [vmem:[%s327 + $0x1c] sm:$0xf]
      %v342 = vunpack.c.l.bf16 %v334
      %v343 = vunpack.c.l.bf16 %v335
      %v344 = vunpack.c.l.bf16 %v336
      %v345 = vunpack.c.l.bf16 %v337
      %v346 = vunpack.c.l.bf16 %v338
      %v347 = vunpack.c.l.bf16 %v339
      %v348 = vunpack.c.l.bf16 %v340
      %v349 = vunpack.c.l.bf16 %v341
      %v350 = vld [vmem:[%s1] sm:$0x1]
      %v352 = vlaneseq
      %v353 = vshrl.u32 %v352, 7
      %v354 = vsub.s32 0, %v353
      %v355 = vrot.slane %v350, %v354
      %v357 = vmul.f32 %v342, %v355
      %v358 = vmul.f32 %v343, %v355
      %v359 = vmul.f32 %v344, %v355
      %v360 = vmul.f32 %v345, %v355
      %v361 = vmul.f32 %v346, %v355
      %v362 = vmul.f32 %v347, %v355
      %v363 = vmul.f32 %v348, %v355
      %v364 = vmul.f32 %v349, %v355
      %s365 = scalar_lea.vmem %s327, 32
      %v366 = vld [vmem:[%s365] sm:$0xf]
      %v367 = vld [vmem:[%s365 + $0x4] sm:$0xf]
      %v368 = vld [vmem:[%s365 + $0x8] sm:$0xf]
      %v369 = vld [vmem:[%s365 + $0xc] sm:$0xf]
      %v370 = vld [vmem:[%s365 + $0x10] sm:$0xf]
      %v371 = vld [vmem:[%s365 + $0x14] sm:$0xf]
      %v372 = vld [vmem:[%s365 + $0x18] sm:$0xf]
      %v373 = vld [vmem:[%s365 + $0x1c] sm:$0xf]
      %v374 = vunpack.c.l.bf16 %v366
      %v375 = vunpack.c.l.bf16 %v367
      %v376 = vunpack.c.l.bf16 %v368
      %v377 = vunpack.c.l.bf16 %v369
      %v378 = vunpack.c.l.bf16 %v370
      %v379 = vunpack.c.l.bf16 %v371
      %v380 = vunpack.c.l.bf16 %v372
      %v381 = vunpack.c.l.bf16 %v373
      %s382 = scalar_lea.vmem %s1, 1
      %v383 = vld [vmem:[%s382] sm:$0x1]
      %v385 = vlaneseq
      %v386 = vshrl.u32 %v385, 7
      %v387 = vsub.s32 0, %v386
      %v388 = vrot.slane %v383, %v387
      %v390 = vmul.f32 %v374, %v388
      %v391 = vmul.f32 %v375, %v388
      %v392 = vmul.f32 %v376, %v388
      %v393 = vmul.f32 %v377, %v388
      %v394 = vmul.f32 %v378, %v388
      %v395 = vmul.f32 %v379, %v388
      %v396 = vmul.f32 %v380, %v388
      %v397 = vmul.f32 %v381, %v388
      %v398 = vadd.f32 %v357, %v390
      %v399 = vadd.f32 %v358, %v391
      %v400 = vadd.f32 %v359, %v392
      %v401 = vadd.f32 %v360, %v393
      %v402 = vadd.f32 %v361, %v394
      %v403 = vadd.f32 %v362, %v395
      %v404 = vadd.f32 %v363, %v396
      %v405 = vadd.f32 %v364, %v397
      %s406 = scalar_lea.vmem %s327, 64
      %v407 = vld [vmem:[%s406] sm:$0xf]
      %v408 = vld [vmem:[%s406 + $0x4] sm:$0xf]
      %v409 = vld [vmem:[%s406 + $0x8] sm:$0xf]
      %v410 = vld [vmem:[%s406 + $0xc] sm:$0xf]
      %v411 = vld [vmem:[%s406 + $0x10] sm:$0xf]
      %v412 = vld [vmem:[%s406 + $0x14] sm:$0xf]
      %v413 = vld [vmem:[%s406 + $0x18] sm:$0xf]
      %v414 = vld [vmem:[%s406 + $0x1c] sm:$0xf]
      %v415 = vunpack.c.l.bf16 %v407
      %v416 = vunpack.c.l.bf16 %v408
      %v417 = vunpack.c.l.bf16 %v409
      %v418 = vunpack.c.l.bf16 %v410
      %v419 = vunpack.c.l.bf16 %v411
      %v420 = vunpack.c.l.bf16 %v412
      %v421 = vunpack.c.l.bf16 %v413
      %v422 = vunpack.c.l.bf16 %v414
      %s423 = scalar_lea.vmem %s1, 2
      %v424 = vld [vmem:[%s423] sm:$0x1]
      %v426 = vlaneseq
      %v427 = vshrl.u32 %v426, 7
      %v428 = vsub.s32 0, %v427
      %v429 = vrot.slane %v424, %v428
      %v431 = vmul.f32 %v415, %v429
      %v432 = vmul.f32 %v416, %v429
      %v433 = vmul.f32 %v417, %v429
      %v434 = vmul.f32 %v418, %v429
      %v435 = vmul.f32 %v419, %v429
      %v436 = vmul.f32 %v420, %v429
      %v437 = vmul.f32 %v421, %v429
      %v438 = vmul.f32 %v422, %v429
      %v439 = vadd.f32 %v398, %v431
      %v440 = vadd.f32 %v399, %v432
      %v441 = vadd.f32 %v400, %v433
      %v442 = vadd.f32 %v401, %v434
      %v443 = vadd.f32 %v402, %v435
      %v444 = vadd.f32 %v403, %v436
      %v445 = vadd.f32 %v404, %v437
      %v446 = vadd.f32 %v405, %v438
      %s447 = scalar_lea.vmem %s327, 96
      %v448 = vld [vmem:[%s447] sm:$0xf]
      %v449 = vld [vmem:[%s447 + $0x4] sm:$0xf]
      %v450 = vld [vmem:[%s447 + $0x8] sm:$0xf]
      %v451 = vld [vmem:[%s447 + $0xc] sm:$0xf]
      %v452 = vld [vmem:[%s447 + $0x10] sm:$0xf]
      %v453 = vld [vmem:[%s447 + $0x14] sm:$0xf]
      %v454 = vld [vmem:[%s447 + $0x18] sm:$0xf]
      %v455 = vld [vmem:[%s447 + $0x1c] sm:$0xf]
      %v456 = vunpack.c.l.bf16 %v448
      %v457 = vunpack.c.l.bf16 %v449
      %v458 = vunpack.c.l.bf16 %v450
      %v459 = vunpack.c.l.bf16 %v451
      %v460 = vunpack.c.l.bf16 %v452
      %v461 = vunpack.c.l.bf16 %v453
      %v462 = vunpack.c.l.bf16 %v454
      %v463 = vunpack.c.l.bf16 %v455
      %s464 = scalar_lea.vmem %s1, 3
      %v465 = vld [vmem:[%s464] sm:$0x1]
      %v467 = vlaneseq
      %v468 = vshrl.u32 %v467, 7
      %v469 = vsub.s32 0, %v468
      %v470 = vrot.slane %v465, %v469
      %v472 = vmul.f32 %v456, %v470
      %v473 = vmul.f32 %v457, %v470
      %v474 = vmul.f32 %v458, %v470
      %v475 = vmul.f32 %v459, %v470
      %v476 = vmul.f32 %v460, %v470
      %v477 = vmul.f32 %v461, %v470
      %v478 = vmul.f32 %v462, %v470
      %v479 = vmul.f32 %v463, %v470
      %v480 = vadd.f32 %v439, %v472
      %v481 = vadd.f32 %v440, %v473
      %v482 = vadd.f32 %v441, %v474
      %v483 = vadd.f32 %v442, %v475
      %v484 = vadd.f32 %v443, %v476
      %v485 = vadd.f32 %v444, %v477
      %v486 = vadd.f32 %v445, %v478
      %v487 = vadd.f32 %v446, %v479
      %s488 = scalar_lea.vmem %s327, 128
      %v489 = vld [vmem:[%s488] sm:$0xf]
      %v490 = vld [vmem:[%s488 + $0x4] sm:$0xf]
      %v491 = vld [vmem:[%s488 + $0x8] sm:$0xf]
      %v492 = vld [vmem:[%s488 + $0xc] sm:$0xf]
      %v493 = vld [vmem:[%s488 + $0x10] sm:$0xf]
      %v494 = vld [vmem:[%s488 + $0x14] sm:$0xf]
      %v495 = vld [vmem:[%s488 + $0x18] sm:$0xf]
      %v496 = vld [vmem:[%s488 + $0x1c] sm:$0xf]
      %v497 = vunpack.c.l.bf16 %v489
      %v498 = vunpack.c.l.bf16 %v490
      %v499 = vunpack.c.l.bf16 %v491
      %v500 = vunpack.c.l.bf16 %v492
      %v501 = vunpack.c.l.bf16 %v493
      %v502 = vunpack.c.l.bf16 %v494
      %v503 = vunpack.c.l.bf16 %v495
      %v504 = vunpack.c.l.bf16 %v496
      %s505 = scalar_lea.vmem %s1, 4
      %v506 = vld [vmem:[%s505] sm:$0x1]
      %v508 = vlaneseq
      %v509 = vshrl.u32 %v508, 7
      %v510 = vsub.s32 0, %v509
      %v511 = vrot.slane %v506, %v510
      %v513 = vmul.f32 %v497, %v511
      %v514 = vmul.f32 %v498, %v511
      %v515 = vmul.f32 %v499, %v511
      %v516 = vmul.f32 %v500, %v511
      %v517 = vmul.f32 %v501, %v511
      %v518 = vmul.f32 %v502, %v511
      %v519 = vmul.f32 %v503, %v511
      %v520 = vmul.f32 %v504, %v511
      %v521 = vadd.f32 %v480, %v513
      %v522 = vadd.f32 %v481, %v514
      %v523 = vadd.f32 %v482, %v515
      %v524 = vadd.f32 %v483, %v516
      %v525 = vadd.f32 %v484, %v517
      %v526 = vadd.f32 %v485, %v518
      %v527 = vadd.f32 %v486, %v519
      %v528 = vadd.f32 %v487, %v520
      %s529 = scalar_lea.vmem %s327, 160
      %v530 = vld [vmem:[%s529] sm:$0xf]
      %v531 = vld [vmem:[%s529 + $0x4] sm:$0xf]
      %v532 = vld [vmem:[%s529 + $0x8] sm:$0xf]
      %v533 = vld [vmem:[%s529 + $0xc] sm:$0xf]
      %v534 = vld [vmem:[%s529 + $0x10] sm:$0xf]
      %v535 = vld [vmem:[%s529 + $0x14] sm:$0xf]
      %v536 = vld [vmem:[%s529 + $0x18] sm:$0xf]
      %v537 = vld [vmem:[%s529 + $0x1c] sm:$0xf]
      %v538 = vunpack.c.l.bf16 %v530
      %v539 = vunpack.c.l.bf16 %v531
      %v540 = vunpack.c.l.bf16 %v532
      %v541 = vunpack.c.l.bf16 %v533
      %v542 = vunpack.c.l.bf16 %v534
      %v543 = vunpack.c.l.bf16 %v535
      %v544 = vunpack.c.l.bf16 %v536
      %v545 = vunpack.c.l.bf16 %v537
      %s546 = scalar_lea.vmem %s1, 5
      %v547 = vld [vmem:[%s546] sm:$0x1]
      %v549 = vlaneseq
      %v550 = vshrl.u32 %v549, 7
      %v551 = vsub.s32 0, %v550
      %v552 = vrot.slane %v547, %v551
      %v554 = vmul.f32 %v538, %v552
      %v555 = vmul.f32 %v539, %v552
      %v556 = vmul.f32 %v540, %v552
      %v557 = vmul.f32 %v541, %v552
      %v558 = vmul.f32 %v542, %v552
      %v559 = vmul.f32 %v543, %v552
      %v560 = vmul.f32 %v544, %v552
      %v561 = vmul.f32 %v545, %v552
      %v562 = vadd.f32 %v521, %v554
      %v563 = vadd.f32 %v522, %v555
      %v564 = vadd.f32 %v523, %v556
      %v565 = vadd.f32 %v524, %v557
      %v566 = vadd.f32 %v525, %v558
      %v567 = vadd.f32 %v526, %v559
      %v568 = vadd.f32 %v527, %v560
      %v569 = vadd.f32 %v528, %v561
      %s570 = scalar_lea.vmem %s327, 192
      %v571 = vld [vmem:[%s570] sm:$0xf]
      %v572 = vld [vmem:[%s570 + $0x4] sm:$0xf]
      %v573 = vld [vmem:[%s570 + $0x8] sm:$0xf]
      %v574 = vld [vmem:[%s570 + $0xc] sm:$0xf]
      %v575 = vld [vmem:[%s570 + $0x10] sm:$0xf]
      %v576 = vld [vmem:[%s570 + $0x14] sm:$0xf]
      %v577 = vld [vmem:[%s570 + $0x18] sm:$0xf]
      %v578 = vld [vmem:[%s570 + $0x1c] sm:$0xf]
      %v579 = vunpack.c.l.bf16 %v571
      %v580 = vunpack.c.l.bf16 %v572
      %v581 = vunpack.c.l.bf16 %v573
      %v582 = vunpack.c.l.bf16 %v574
      %v583 = vunpack.c.l.bf16 %v575
      %v584 = vunpack.c.l.bf16 %v576
      %v585 = vunpack.c.l.bf16 %v577
      %v586 = vunpack.c.l.bf16 %v578
      %s587 = scalar_lea.vmem %s1, 6
      %v588 = vld [vmem:[%s587] sm:$0x1]
      %v590 = vlaneseq
      %v591 = vshrl.u32 %v590, 7
      %v592 = vsub.s32 0, %v591
      %v593 = vrot.slane %v588, %v592
      %v595 = vmul.f32 %v579, %v593
      %v596 = vmul.f32 %v580, %v593
      %v597 = vmul.f32 %v581, %v593
      %v598 = vmul.f32 %v582, %v593
      %v599 = vmul.f32 %v583, %v593
      %v600 = vmul.f32 %v584, %v593
      %v601 = vmul.f32 %v585, %v593
      %v602 = vmul.f32 %v586, %v593
      %v603 = vadd.f32 %v562, %v595
      %v604 = vadd.f32 %v563, %v596
      %v605 = vadd.f32 %v564, %v597
      %v606 = vadd.f32 %v565, %v598
      %v607 = vadd.f32 %v566, %v599
      %v608 = vadd.f32 %v567, %v600
      %v609 = vadd.f32 %v568, %v601
      %v610 = vadd.f32 %v569, %v602
      %s611 = scalar_lea.vmem %s327, 224
      %v612 = vld [vmem:[%s611] sm:$0xf]
      %v613 = vld [vmem:[%s611 + $0x4] sm:$0xf]
      %v614 = vld [vmem:[%s611 + $0x8] sm:$0xf]
      %v615 = vld [vmem:[%s611 + $0xc] sm:$0xf]
      %v616 = vld [vmem:[%s611 + $0x10] sm:$0xf]
      %v617 = vld [vmem:[%s611 + $0x14] sm:$0xf]
      %v618 = vld [vmem:[%s611 + $0x18] sm:$0xf]
      %v619 = vld [vmem:[%s611 + $0x1c] sm:$0xf]
      %v620 = vunpack.c.l.bf16 %v612
      %v621 = vunpack.c.l.bf16 %v613
      %v622 = vunpack.c.l.bf16 %v614
      %v623 = vunpack.c.l.bf16 %v615
      %v624 = vunpack.c.l.bf16 %v616
      %v625 = vunpack.c.l.bf16 %v617
      %v626 = vunpack.c.l.bf16 %v618
      %v627 = vunpack.c.l.bf16 %v619
      %s628 = scalar_lea.vmem %s1, 7
      %v629 = vld [vmem:[%s628] sm:$0x1]
      %v631 = vlaneseq
      %v632 = vshrl.u32 %v631, 7
      %v633 = vsub.s32 0, %v632
      %v634 = vrot.slane %v629, %v633
      %v636 = vmul.f32 %v620, %v634
      %v637 = vmul.f32 %v621, %v634
      %v638 = vmul.f32 %v622, %v634
      %v639 = vmul.f32 %v623, %v634
      %v640 = vmul.f32 %v624, %v634
      %v641 = vmul.f32 %v625, %v634
      %v642 = vmul.f32 %v626, %v634
      %v643 = vmul.f32 %v627, %v634
      %v644 = vadd.f32 %v603, %v636
      %v645 = vadd.f32 %v604, %v637
      %v646 = vadd.f32 %v605, %v638
      %v647 = vadd.f32 %v606, %v639
      %v648 = vadd.f32 %v607, %v640
      %v649 = vadd.f32 %v608, %v641
      %v650 = vadd.f32 %v609, %v642
      %v651 = vadd.f32 %v610, %v643
      %s652 = scalar_lea.vmem %s327, 256
      %v653 = vld [vmem:[%s652] sm:$0xf]
      %v654 = vld [vmem:[%s652 + $0x4] sm:$0xf]
      %v655 = vld [vmem:[%s652 + $0x8] sm:$0xf]
      %v656 = vld [vmem:[%s652 + $0xc] sm:$0xf]
      %v657 = vld [vmem:[%s652 + $0x10] sm:$0xf]
      %v658 = vld [vmem:[%s652 + $0x14] sm:$0xf]
      %v659 = vld [vmem:[%s652 + $0x18] sm:$0xf]
      %v660 = vld [vmem:[%s652 + $0x1c] sm:$0xf]
      %v661 = vunpack.c.l.bf16 %v653
      %v662 = vunpack.c.l.bf16 %v654
      %v663 = vunpack.c.l.bf16 %v655
      %v664 = vunpack.c.l.bf16 %v656
      %v665 = vunpack.c.l.bf16 %v657
      %v666 = vunpack.c.l.bf16 %v658
      %v667 = vunpack.c.l.bf16 %v659
      %v668 = vunpack.c.l.bf16 %v660
      %s669 = scalar_lea.vmem %s1, 8
      %v670 = vld [vmem:[%s669] sm:$0x1]
      %v672 = vlaneseq
      %v673 = vshrl.u32 %v672, 7
      %v674 = vsub.s32 0, %v673
      %v675 = vrot.slane %v670, %v674
      %v677 = vmul.f32 %v661, %v675
      %v678 = vmul.f32 %v662, %v675
      %v679 = vmul.f32 %v663, %v675
      %v680 = vmul.f32 %v664, %v675
      %v681 = vmul.f32 %v665, %v675
      %v682 = vmul.f32 %v666, %v675
      %v683 = vmul.f32 %v667, %v675
      %v684 = vmul.f32 %v668, %v675
      %v685 = vadd.f32 %v644, %v677
      %v686 = vadd.f32 %v645, %v678
      %v687 = vadd.f32 %v646, %v679
      %v688 = vadd.f32 %v647, %v680
      %v689 = vadd.f32 %v648, %v681
      %v690 = vadd.f32 %v649, %v682
      %v691 = vadd.f32 %v650, %v683
      %v692 = vadd.f32 %v651, %v684
      %v693 = vld [vmem:[%s2] sm:$0x1]
      %v695 = vlaneseq
      %v696 = vshrl.u32 %v695, 7
      %v697 = vsub.s32 0, %v696
      %v698 = vrot.slane %v693, %v697
      %v700 = vadd.f32 %v685, %v698
      %v701 = vadd.f32 %v686, %v698
      %v702 = vadd.f32 %v687, %v698
      %v703 = vadd.f32 %v688, %v698
      %v704 = vadd.f32 %v689, %v698
      %v705 = vadd.f32 %v690, %v698
      %v706 = vadd.f32 %v691, %v698
      %v707 = vadd.f32 %v692, %v698
      %v708 = vmul.f32 %v700, 0.5
      %v709 = vmul.f32 %v701, 0.5
      %v710 = vmul.f32 %v702, 0.5
      %v711 = vmul.f32 %v703, 0.5
      %v712 = vmul.f32 %v704, 0.5
      %v713 = vmul.f32 %v705, 0.5
      %v714 = vmul.f32 %v706, 0.5
      %v715 = vmul.f32 %v707, 0.5
      %v716 = vtanh.pop %v708
      %v717 = vtanh.pop %v709
      %v718 = vtanh.pop %v710
      %v719 = vtanh.pop %v711
      %v720 = vtanh.pop %v712
      %v721 = vtanh.pop %v713
      %v722 = vtanh.pop %v714
      %v723 = vtanh.pop %v715
      %v724 = vmul.f32 %v716, 0.5
      %v725 = vmul.f32 %v717, 0.5
      %v726 = vmul.f32 %v718, 0.5
      %v727 = vmul.f32 %v719, 0.5
      %v728 = vmul.f32 %v720, 0.5
      %v729 = vmul.f32 %v721, 0.5
      %v730 = vmul.f32 %v722, 0.5
      %v731 = vmul.f32 %v723, 0.5
      %v732 = vadd.f32 %v724, 0.5
      %v733 = vadd.f32 %v725, 0.5
      %v734 = vadd.f32 %v726, 0.5
      %v735 = vadd.f32 %v727, 0.5
      %v736 = vadd.f32 %v728, 0.5
      %v737 = vadd.f32 %v729, 0.5
      %v738 = vadd.f32 %v730, 0.5
      %v739 = vadd.f32 %v731, 0.5
      %v740 = vmul.f32 %v700, %v732
      %v741 = vmul.f32 %v701, %v733
      %v742 = vmul.f32 %v702, %v734
      %v743 = vmul.f32 %v703, %v735
      %v744 = vmul.f32 %v704, %v736
      %v745 = vmul.f32 %v705, %v737
      %v746 = vmul.f32 %v706, %v738
      %v747 = vmul.f32 %v707, %v739
      %v748 = vadd.f32 %v740, %v741
      %v749 = vadd.f32 %v748, %v742
      %v750 = vadd.f32 %v749, %v743
      %v751 = vadd.f32 %v750, %v744
      %v752 = vadd.f32 %v751, %v745
      %v753 = vadd.f32 %v752, %v746
      %v754 = vadd.f32 %v753, %v747
      %v755 = vrot.slane %v754, 4
      %v756 = vadd.f32 %v754, %v755
      %v757 = vrot.slane %v756, 2
      %v758 = vadd.f32 %v756, %v757
      %v759 = vrot.slane %v758, 1
      %v760 = vadd.f32 %v758, %v759
      %v761 = vrcp.pop 64.0
      %v762 = vmul.f32 %v760, %v761
      %v763 = vpack.c.bf16 %v762, %v762
      %v764 = vld [vmem:[%s3] sm:$0xf]
      %v765 = vld [vmem:[%s3 + $0x4] sm:$0xf]
      %v766 = vld [vmem:[%s3 + $0x8] sm:$0xf]
      %v767 = vld [vmem:[%s3 + $0xc] sm:$0xf]
      %v768 = vld [vmem:[%s3 + $0x10] sm:$0xf]
      %v769 = vld [vmem:[%s3 + $0x14] sm:$0xf]
      %v770 = vld [vmem:[%s3 + $0x18] sm:$0xf]
      %v771 = vld [vmem:[%s3 + $0x1c] sm:$0xf]
      %v772 = vld [vmem:[%s3 + $0x20] sm:$0xf]
      %v773 = vld [vmem:[%s3 + $0x24] sm:$0xf]
      %v774 = vld [vmem:[%s3 + $0x28] sm:$0xf]
      %v775 = vld [vmem:[%s3 + $0x2c] sm:$0xf]
      %v776 = vld [vmem:[%s3 + $0x30] sm:$0xf]
      %v777 = vld [vmem:[%s3 + $0x34] sm:$0xf]
      %v778 = vld [vmem:[%s3 + $0x38] sm:$0xf]
      %v779 = vld [vmem:[%s3 + $0x3c] sm:$0xf]
      %v780 = vld [vmem:[%s4] sm:$0x1]
      %v797 = vunpack.c.l.b16 %v764
      %v798 = vunpack.c.l.b16 %v765
      %v799 = vunpack.c.l.b16 %v766
      %v800 = vunpack.c.l.b16 %v767
      %v801 = vunpack.c.l.b16 %v768
      %v802 = vunpack.c.l.b16 %v769
      %v803 = vunpack.c.l.b16 %v770
      %v804 = vunpack.c.l.b16 %v771
      %v805 = vunpack.c.l.b16 %v772
      %v806 = vunpack.c.l.b16 %v773
      %v807 = vunpack.c.l.b16 %v774
      %v808 = vunpack.c.l.b16 %v775
      %v809 = vunpack.c.l.b16 %v776
      %v810 = vunpack.c.l.b16 %v777
      %v811 = vunpack.c.l.b16 %v778
      %v812 = vunpack.c.l.b16 %v779
      %v813 = vpack.c.b16 %v798, %v797
      %v814 = vpack.c.b16 %v800, %v799
      %v815 = vpack.c.b16 %v802, %v801
      %v816 = vpack.c.b16 %v804, %v803
      %v817 = vpack.c.b16 %v806, %v805
      %v818 = vpack.c.b16 %v808, %v807
      %v819 = vpack.c.b16 %v810, %v809
      %v820 = vpack.c.b16 %v812, %v811
      %829 = vmatprep.subr.bf16.mxu0 0
      %830 = vmatpush1.bf16.msra.mxu0 %v813
      %831 = vmatprep.subr.bf16.mxu0 0
      %832 = vmatpush1.bf16.msra.mxu0 %v814
      %833 = vmatprep.subr.bf16.mxu0 0
      %834 = vmatpush1.bf16.msra.mxu0 %v815
      %835 = vmatprep.subr.bf16.mxu0 0
      %836 = vmatpush1.bf16.msra.mxu0 %v816
      %837 = vmatprep.subr.bf16.mxu0 0
      %838 = vmatpush1.bf16.msra.mxu0 %v817
      %839 = vmatprep.subr.bf16.mxu0 0
      %840 = vmatpush1.bf16.msra.mxu0 %v818
      %841 = vmatprep.subr.bf16.mxu0 0
      %842 = vmatpush1.bf16.msra.mxu0 %v819
      %843 = vmatprep.subr.bf16.mxu0 0
      %844 = vmatpush1.bf16.msra.mxu0 %v820
      %845 = vmatprep.subr.bf16.mxu0 0
      %846 = vmatpush1.bf16.msra.mxu0 0
      %847 = vmatprep.subr.bf16.mxu0 0
      %848 = vmatpush1.bf16.msra.mxu0 0
      %849 = vmatprep.subr.bf16.mxu0 0
      %850 = vmatpush1.bf16.msra.mxu0 0
      %851 = vmatprep.subr.bf16.mxu0 0
      %852 = vmatpush1.bf16.msra.mxu0 0
      %853 = vmatprep.subr.bf16.mxu0 0
      %854 = vmatpush1.bf16.msra.mxu0 0
      %855 = vmatprep.subr.bf16.mxu0 0
      %856 = vmatpush1.bf16.msra.mxu0 0
      %857 = vmatprep.subr.bf16.mxu0 0
      %858 = vmatpush1.bf16.msra.mxu0 0
      %859 = vmatprep.subr.bf16.mxu0 0
      %860 = vmatpush1.bf16.msra.mxu0 0
      %861 = vmatprep.mubr.bf16.mxu0 0
      %862 = vmatmul.mubr.bf16.gmra.mrb[0].mxu0 %v763
      %v863 = vpop.f32.mrb[0].mxu0
      %v864 = vadd.f32 %v780, %v863
      %v865 = vpop.f32.mrb[0].mxu0
      %v866 = vpop.f32.mrb[0].mxu0
      %v867 = vpop.f32.mrb[0].mxu0
      %868 = vdwg.mxu0
      %v869 = vmul.f32 %v864, 0.5
      %v870 = vtanh.pop %v869
      %v871 = vmul.f32 %v870, 0.5
      %v872 = vadd.f32 %v871, 0.5
      %v873 = vmul.f32 %v864, %v872
      %v874 = vpack.c.bf16 %v873, %v873
      %v875 = vld [vmem:[%s5] sm:$0xf]
      %v876 = vld [vmem:[%s6] sm:$0x1]
      %vm877 = vcmask 64512
      %v879 = vsel %vm877, %v874, 0
      %vm881 = vcmask 1043456
      %v883 = vsel %vm881, %v875, 0
      %885 = vmatprep.subr.bf16.mxu0 0
      %886 = vmatpush1.bf16.msra.mxu0 %v883
      %887 = vmatprep.subr.bf16.mxu0 0
      %888 = vmatpush1.bf16.msra.mxu0 0
      %889 = vmatprep.subr.bf16.mxu0 0
      %890 = vmatpush1.bf16.msra.mxu0 0
      %891 = vmatprep.subr.bf16.mxu0 0
      %892 = vmatpush1.bf16.msra.mxu0 0
      %893 = vmatprep.subr.bf16.mxu0 0
      %894 = vmatpush1.bf16.msra.mxu0 0
      %895 = vmatprep.subr.bf16.mxu0 0
      %896 = vmatpush1.bf16.msra.mxu0 0
      %897 = vmatprep.subr.bf16.mxu0 0
      %898 = vmatpush1.bf16.msra.mxu0 0
      %899 = vmatprep.subr.bf16.mxu0 0
      %900 = vmatpush1.bf16.msra.mxu0 0
      %901 = vmatprep.subr.bf16.mxu0 0
      %902 = vmatpush1.bf16.msra.mxu0 0
      %903 = vmatprep.subr.bf16.mxu0 0
      %904 = vmatpush1.bf16.msra.mxu0 0
      %905 = vmatprep.subr.bf16.mxu0 0
      %906 = vmatpush1.bf16.msra.mxu0 0
      %907 = vmatprep.subr.bf16.mxu0 0
      %908 = vmatpush1.bf16.msra.mxu0 0
      %909 = vmatprep.subr.bf16.mxu0 0
      %910 = vmatpush1.bf16.msra.mxu0 0
      %911 = vmatprep.subr.bf16.mxu0 0
      %912 = vmatpush1.bf16.msra.mxu0 0
      %913 = vmatprep.subr.bf16.mxu0 0
      %914 = vmatpush1.bf16.msra.mxu0 0
      %915 = vmatprep.subr.bf16.mxu0 0
      %916 = vmatpush1.bf16.msra.mxu0 0
      %917 = vmatprep.mubr.bf16.mxu0 0
      %918 = vmatmul.mubr.bf16.gmra.mrb[0].mxu0 %v879
      %v919 = vpop.f32.mrb[0].mxu0
      %v920 = vadd.f32 %v876, %v919
      %v921 = vpop.f32.mrb[0].mxu0
      %v922 = vpop.f32.mrb[0].mxu0
      %v923 = vpop.f32.mrb[0].mxu0
      %924 = vdwg.mxu0
      %v925 = vmul.f32 %v920, 0.5
      %v926 = vtanh.pop %v925
      %v927 = vmul.f32 %v926, 0.5
      %v928 = vadd.f32 %v927, 0.5
      %v929 = vlaneseq
      %v930 = vshrl.u32 %v929, 7
      %v931 = vsub.s32 0, %v930
      %v932 = vrot.slane %v928, %v931
      %v933 = vmul.f32 %v740, %v932
      %v934 = vmul.f32 %v741, %v932
      %v935 = vmul.f32 %v742, %v932
      %v936 = vmul.f32 %v743, %v932
      %v937 = vmul.f32 %v744, %v932
      %v938 = vmul.f32 %v745, %v932
      %v939 = vmul.f32 %v746, %v932
      %v940 = vmul.f32 %v747, %v932
      %v941 = vpack.c.bf16 %v934, %v933
      %v942 = vpack.c.bf16 %v936, %v935
      %v943 = vpack.c.bf16 %v938, %v937
      %v944 = vpack.c.bf16 %v940, %v939
      %v945 = vld [vmem:[%s7] sm:$0xf]
      %v946 = vld [vmem:[%s7 + $0x4] sm:$0xf]
      %v947 = vld [vmem:[%s7 + $0x8] sm:$0xf]
      %v948 = vld [vmem:[%s7 + $0xc] sm:$0xf]
      %v949 = vld [vmem:[%s7 + $0x10] sm:$0xf]
      %v950 = vld [vmem:[%s7 + $0x14] sm:$0xf]
      %v951 = vld [vmem:[%s7 + $0x18] sm:$0xf]
      %v952 = vld [vmem:[%s7 + $0x1c] sm:$0xf]
      %v953 = vld [vmem:[%s7 + $0x20] sm:$0xf]
      %v954 = vld [vmem:[%s7 + $0x24] sm:$0xf]
      %v955 = vld [vmem:[%s7 + $0x28] sm:$0xf]
      %v956 = vld [vmem:[%s7 + $0x2c] sm:$0xf]
      %v957 = vld [vmem:[%s7 + $0x30] sm:$0xf]
      %v958 = vld [vmem:[%s7 + $0x34] sm:$0xf]
      %v959 = vld [vmem:[%s7 + $0x38] sm:$0xf]
      %v960 = vld [vmem:[%s7 + $0x3c] sm:$0xf]
      %v961 = vld [vmem:[%s8] sm:$0x1]
      %v963 = vlaneseq
      %v964 = vshrl.u32 %v963, 7
      %v965 = vsub.s32 0, %v964
      %v966 = vrot.slane %v961, %v965
      %v984 = vunpack.c.l.b16 %v945
      %v985 = vunpack.c.l.b16 %v946
      %v986 = vunpack.c.l.b16 %v947
      %v987 = vunpack.c.l.b16 %v948
      %v988 = vunpack.c.l.b16 %v949
      %v989 = vunpack.c.l.b16 %v950
      %v990 = vunpack.c.l.b16 %v951
      %v991 = vunpack.c.l.b16 %v952
      %v992 = vunpack.c.l.b16 %v953
      %v993 = vunpack.c.l.b16 %v954
      %v994 = vunpack.c.l.b16 %v955
      %v995 = vunpack.c.l.b16 %v956
      %v996 = vunpack.c.l.b16 %v957
      %v997 = vunpack.c.l.b16 %v958
      %v998 = vunpack.c.l.b16 %v959
      %v999 = vunpack.c.l.b16 %v960
      %v1000 = vpack.c.b16 %v985, %v984
      %v1001 = vpack.c.b16 %v987, %v986
      %v1002 = vpack.c.b16 %v989, %v988
      %v1003 = vpack.c.b16 %v991, %v990
      %v1004 = vpack.c.b16 %v993, %v992
      %v1005 = vpack.c.b16 %v995, %v994
      %v1006 = vpack.c.b16 %v997, %v996
      %v1007 = vpack.c.b16 %v999, %v998
      %1016 = vmatprep.subr.bf16.mxu0 0
      %1017 = vmatpush1.bf16.msra.mxu0 %v1000
      %1018 = vmatprep.subr.bf16.mxu0 0
      %1019 = vmatpush1.bf16.msra.mxu0 %v1001
      %1020 = vmatprep.subr.bf16.mxu0 0
      %1021 = vmatpush1.bf16.msra.mxu0 %v1002
      %1022 = vmatprep.subr.bf16.mxu0 0
      %1023 = vmatpush1.bf16.msra.mxu0 %v1003
      %1024 = vmatprep.subr.bf16.mxu0 0
      %1025 = vmatpush1.bf16.msra.mxu0 %v1004
      %1026 = vmatprep.subr.bf16.mxu0 0
      %1027 = vmatpush1.bf16.msra.mxu0 %v1005
      %1028 = vmatprep.subr.bf16.mxu0 0
      %1029 = vmatpush1.bf16.msra.mxu0 %v1006
      %1030 = vmatprep.subr.bf16.mxu0 0
      %1031 = vmatpush1.bf16.msra.mxu0 %v1007
      %1032 = vmatprep.subr.bf16.mxu0 0
      %1033 = vmatpush1.bf16.msra.mxu0 0
      %1034 = vmatprep.subr.bf16.mxu0 0
      %1035 = vmatpush1.bf16.msra.mxu0 0
      %1036 = vmatprep.subr.bf16.mxu0 0
      %1037 = vmatpush1.bf16.msra.mxu0 0
      %1038 = vmatprep.subr.bf16.mxu0 0
      %1039 = vmatpush1.bf16.msra.mxu0 0
      %1040 = vmatprep.subr.bf16.mxu0 0
      %1041 = vmatpush1.bf16.msra.mxu0 0
      %1042 = vmatprep.subr.bf16.mxu0 0
      %1043 = vmatpush1.bf16.msra.mxu0 0
      %1044 = vmatprep.subr.bf16.mxu0 0
      %1045 = vmatpush1.bf16.msra.mxu0 0
      %1046 = vmatprep.subr.bf16.mxu0 0
      %1047 = vmatpush1.bf16.msra.mxu0 0
      %1048 = vmatprep.mubr.bf16.mxu0 0
      %1049 = vmatmul.mubr.bf16.gmra.mrb[0].mxu0 %v941
      %v1050 = vpop.f32.mrb[0].mxu0
      %v1051 = vadd.f32 %v966, %v1050
      %v1052 = vpop.f32.mrb[0].mxu0
      %v1053 = vpop.f32.mrb[0].mxu0
      %v1054 = vadd.f32 %v966, %v1053
      %v1055 = vpop.f32.mrb[0].mxu0
      %1056 = vmatprep.mubr.bf16.mxu0 0
      %1057 = vmatmul.mubr.bf16.gmra.mrb[0].mxu0 %v942
      %v1058 = vpop.f32.mrb[0].mxu0
      %v1059 = vadd.f32 %v966, %v1058
      %v1060 = vpop.f32.mrb[0].mxu0
      %v1061 = vpop.f32.mrb[0].mxu0
      %v1062 = vadd.f32 %v966, %v1061
      %v1063 = vpop.f32.mrb[0].mxu0
      %1064 = vmatprep.mubr.bf16.mxu0 0
      %1065 = vmatmul.mubr.bf16.gmra.mrb[0].mxu0 %v943
      %v1066 = vpop.f32.mrb[0].mxu0
      %v1067 = vadd.f32 %v966, %v1066
      %v1068 = vpop.f32.mrb[0].mxu0
      %v1069 = vpop.f32.mrb[0].mxu0
      %v1070 = vadd.f32 %v966, %v1069
      %v1071 = vpop.f32.mrb[0].mxu0
      %1072 = vmatprep.mubr.bf16.mxu0 0
      %1073 = vmatmul.mubr.bf16.gmra.mrb[0].mxu0 %v944
      %v1074 = vpop.f32.mrb[0].mxu0
      %v1075 = vadd.f32 %v966, %v1074
      %v1076 = vpop.f32.mrb[0].mxu0
      %v1077 = vpop.f32.mrb[0].mxu0
      %v1078 = vadd.f32 %v966, %v1077
      %v1079 = vpop.f32.mrb[0].mxu0
      %1080 = vdwg.mxu0
      %v1081 = vpack.c.bf16 %v1054, %v1051
      %v1082 = vpack.c.bf16 %v1062, %v1059
      %v1083 = vpack.c.bf16 %v1070, %v1067
      %v1084 = vpack.c.bf16 %v1078, %v1075
      %v1089 = vunpack.c.l.b16 %v1081
      %v1090 = vunpack.c.h.b16 %v1081
      %v1091 = vunpack.c.l.b16 %v1082
      %v1092 = vunpack.c.h.b16 %v1082
      %v1093 = vunpack.c.l.b16 %v1083
      %v1094 = vunpack.c.h.b16 %v1083
      %v1095 = vunpack.c.l.b16 %v1084
      %v1096 = vunpack.c.h.b16 %v1084
      %v1097 = vpack.c.b16 %v1089, %v1089
      %v1098 = vpack.c.b16 %v1090, %v1090
      %v1099 = vpack.c.b16 %v1091, %v1091
      %v1100 = vpack.c.b16 %v1092, %v1092
      %v1101 = vpack.c.b16 %v1093, %v1093
      %v1102 = vpack.c.b16 %v1094, %v1094
      %v1103 = vpack.c.b16 %v1095, %v1095
      %v1104 = vpack.c.b16 %v1096, %v1096
      %vm1113 = vcmask 257024
      %1114 = vst.msk [vmem:[%s332] sm:$0xf] %vm1113, %v1097
      %1115 = vst.msk [vmem:[%s332 + $0x4] sm:$0xf] %vm1113, %v1098
      %1116 = vst.msk [vmem:[%s332 + $0x8] sm:$0xf] %vm1113, %v1099
      %1117 = vst.msk [vmem:[%s332 + $0xc] sm:$0xf] %vm1113, %v1100
      %1118 = vst.msk [vmem:[%s332 + $0x10] sm:$0xf] %vm1113, %v1101
      %1119 = vst.msk [vmem:[%s332 + $0x14] sm:$0xf] %vm1113, %v1102
      %1120 = vst.msk [vmem:[%s332 + $0x18] sm:$0xf] %vm1113, %v1103
      %1121 = vst.msk [vmem:[%s332 + $0x1c] sm:$0xf] %vm1113, %v1104
      %p1122 = scmp.lt.s32.totalorder %s20, 1
      %s1123 = scalar_select %p1122, %s20, 1
      %s1124 = smul.addr %s1123, 8
      %s1125 = smul.addr %s1124, 4
      %s1126 = scalar_lea.vmem %s9, %s1125
      // Predicated region
      $region57: #{_lambda_.7} parent=55 // pred_check
        %p1127 = pneg %p232
      $region58: #{_lambda_.7} parent=55 // pred_check_branch
        %1129 = sbr.rel (%p1127) target = $region60
      $region59: #{_lambda_.7} parent=55 // pred_region
        _
      $region60: #{_lambda_.7} parent=55 // pred_fallthru
        _
    $region56: #{_lambda_.7} parent=5 // pred_fallthru
      _
    %p1130 = scmp.le.s32.totalorder 2, %s15
    // Predicated region
    $region61: #{_lambda_.7} parent=5 // pred_check
      %p1131 = pneg %p1130
    $region62: #{_lambda_.7} parent=5 // pred_check_branch
      %1133 = sbr.rel (%p1131) target = $region64
    $region63: #{_lambda_.7} parent=5 // pred_region
      %s1134 = ssub.s32 %s15, 2
      // Predicated region
      $region65: #{_lambda_.7} parent=63 // pred_check
        %p1135 = pneg %p238
      $region66: #{_lambda_.7} parent=63 // pred_check_branch
        %1137 = sbr.rel (%p1135) target = $region68
      $region67: #{_lambda_.7} parent=63 // pred_region
        %p1138 = scmp.lt.s32.totalorder %s21, 1
        %s1139 = scalar_select %p1138, %s21, 1
        %s1140 = smul.addr %s1139, 8
        %s1141 = smul.addr %s1140, 4
        %s1142 = scalar_lea.vmem %s9, %s1141
      $region68: #{_lambda_.7} parent=63 // pred_fallthru
        _
    $region64: #{_lambda_.7} parent=5 // pred_fallthru
      _
  $region6: #{_lambda_.7} parent=0 // loop_footer
    %s19 = sadd.s32 1, %s15
  $region7: #{_lambda_.7} parent=0 // loop_footer_branch
    %14 = sbr.rel target = $region3
  $region8: #{_lambda_.7} parent=0 // loop_exit
    _

// kernel: _lambda_.9
$region0: #{_lambda_.9}
  #allocation0 [shape = 'u32[]', space=smem, size = 0x4, offset = 0x4, fixed_abs, tag = 'smem constant byte address 0x4 - core index']
  #allocation1 [shape = 'u32[144,128]{1,0:T(1,128)}', space=vmem, size = 0x12000, scoped, tag = 'internal scratch']
  %s0 = inlined_call_operand.vmem [shape: bf16[2,2560], index: 0, kind: input, shape index: {}]
  %s1 = inlined_call_operand.vmem [shape: bf16[2560,64], index: 1, kind: input, shape index: {}]
  %s2 = inlined_call_operand.vmem [shape: f32[3,64], index: 2, kind: input, shape index: {}]
  %s3 = inlined_call_operand.vmem [shape: bf16[64,10], index: 3, kind: input, shape index: {}]
  %s4 = inlined_call_operand.vmem [shape: f32[1,10], index: 4, kind: input, shape index: {}]
  %s5 = inlined_call_operand.hbm [shape: f32[2,10], index: 5, kind: output, shape index: {}]
  %s6 = sld [smem:[#allocation0]]
  $region30: #{_lambda_.9} parent=0
    _
  %s8 = ssub.s32 1, %s6
  %s9 = scalar_select 0, %s8, %s6
  $region1: #{_lambda_.9} parent=0
    #allocation2 [shape = 'u8[1024]{0}', space=vmem, size = 0x400, scoped, tag = 'output window, operand 0, single buffered']
    #allocation3 [shape = 's32[1]{0}', space=sflag, size = 0x4, scoped, tag = 'scoped memory for _lambda_.9']
    %10 = vsyncpa [#allocation3], 0
    // Predicated region
    $region2: #{_lambda_.9} parent=1 // pred_check
      _
    $region3: #{_lambda_.9} parent=1 // pred_check_branch
      %12 = sbr.rel (0) target = $region5
    $region4: #{_lambda_.9} parent=1 // pred_region
      _
    $region5: #{_lambda_.9} parent=1 // pred_fallthru
      _
    // Predicated region
    $region6: #{_lambda_.9} parent=1 // pred_check
      _
    $region7: #{_lambda_.9} parent=1 // pred_check_branch
      %14 = sbr.rel (0) target = $region9
    $region8: #{_lambda_.9} parent=1 // pred_region
      _
    $region9: #{_lambda_.9} parent=1 // pred_fallthru
      _
    // Predicated region
    $region10: #{_lambda_.9} parent=1 // pred_check
      _
    $region11: #{_lambda_.9} parent=1 // pred_check_branch
      %16 = sbr.rel (0) target = $region13
    $region12: #{_lambda_.9} parent=1 // pred_region
      _
    $region13: #{_lambda_.9} parent=1 // pred_fallthru
      _
    // Predicated region
    $region14: #{_lambda_.9} parent=1 // pred_check
      _
    $region15: #{_lambda_.9} parent=1 // pred_check_branch
      %18 = sbr.rel (0) target = $region17
    $region16: #{_lambda_.9} parent=1 // pred_region
      _
    $region17: #{_lambda_.9} parent=1 // pred_fallthru
      _
    // Predicated region
    $region18: #{_lambda_.9} parent=1 // pred_check
      _
    $region19: #{_lambda_.9} parent=1 // pred_check_branch
      %20 = sbr.rel (0) target = $region21
    $region20: #{_lambda_.9} parent=1 // pred_region
      _
    $region21: #{_lambda_.9} parent=1 // pred_fallthru
      _
    %v22 = vld [vmem:[%s0] sm:$0xff]
    %v23 = vld [vmem:[%s0 + $0x8] sm:$0xff]
    %v24 = vld [vmem:[%s0 + $0x10] sm:$0xf]
    %v25 = vld [vmem:[%s1] sm:$0xf]
    %v26 = vld [vmem:[%s1 + $0x4] sm:$0xf]
    %v27 = vld [vmem:[%s1 + $0x8] sm:$0xf]
    %v28 = vld [vmem:[%s1 + $0xc] sm:$0xf]
    %v29 = vld [vmem:[%s1 + $0x10] sm:$0xf]
    %v30 = vld [vmem:[%s1 + $0x14] sm:$0xf]
    %v31 = vld [vmem:[%s1 + $0x18] sm:$0xf]
    %v32 = vld [vmem:[%s1 + $0x1c] sm:$0xf]
    %v33 = vld [vmem:[%s1 + $0x20] sm:$0xf]
    %v34 = vld [vmem:[%s1 + $0x24] sm:$0xf]
    %v35 = vld [vmem:[%s1 + $0x28] sm:$0xf]
    %v36 = vld [vmem:[%s1 + $0x2c] sm:$0xf]
    %v37 = vld [vmem:[%s1 + $0x30] sm:$0xf]
    %v38 = vld [vmem:[%s1 + $0x34] sm:$0xf]
    %v39 = vld [vmem:[%s1 + $0x38] sm:$0xf]
    %v40 = vld [vmem:[%s1 + $0x3c] sm:$0xf]
    %v41 = vld [vmem:[%s1 + $0x40] sm:$0xf]
    %v42 = vld [vmem:[%s1 + $0x44] sm:$0xf]
    %v43 = vld [vmem:[%s1 + $0x48] sm:$0xf]
    %v44 = vld [vmem:[%s1 + $0x4c] sm:$0xf]
    %v45 = vld [vmem:[%s1 + $0x50] sm:$0xf]
    %v46 = vld [vmem:[%s1 + $0x54] sm:$0xf]
    %v47 = vld [vmem:[%s1 + $0x58] sm:$0xf]
    %v48 = vld [vmem:[%s1 + $0x5c] sm:$0xf]
    %v49 = vld [vmem:[%s1 + $0x60] sm:$0xf]
    %v50 = vld [vmem:[%s1 + $0x64] sm:$0xf]
    %v51 = vld [vmem:[%s1 + $0x68] sm:$0xf]
    %v52 = vld [vmem:[%s1 + $0x6c] sm:$0xf]
    %v53 = vld [vmem:[%s1 + $0x70] sm:$0xf]
    %v54 = vld [vmem:[%s1 + $0x74] sm:$0xf]
    %v55 = vld [vmem:[%s1 + $0x78] sm:$0xf]
    %v56 = vld [vmem:[%s1 + $0x7c] sm:$0xf]
    %v57 = vld [vmem:[%s1 + $0x80] sm:$0xf]
    %v58 = vld [vmem:[%s1 + $0x84] sm:$0xf]
    %v59 = vld [vmem:[%s1 + $0x88] sm:$0xf]
    %v60 = vld [vmem:[%s1 + $0x8c] sm:$0xf]
    %v61 = vld [vmem:[%s1 + $0x90] sm:$0xf]
    %v62 = vld [vmem:[%s1 + $0x94] sm:$0xf]
    %v63 = vld [vmem:[%s1 + $0x98] sm:$0xf]
    %v64 = vld [vmem:[%s1 + $0x9c] sm:$0xf]
    %v65 = vld [vmem:[%s1 + $0xa0] sm:$0xf]
    %v66 = vld [vmem:[%s1 + $0xa4] sm:$0xf]
    %v67 = vld [vmem:[%s1 + $0xa8] sm:$0xf]
    %v68 = vld [vmem:[%s1 + $0xac] sm:$0xf]
    %v69 = vld [vmem:[%s1 + $0xb0] sm:$0xf]
    %v70 = vld [vmem:[%s1 + $0xb4] sm:$0xf]
    %v71 = vld [vmem:[%s1 + $0xb8] sm:$0xf]
    %v72 = vld [vmem:[%s1 + $0xbc] sm:$0xf]
    %v73 = vld [vmem:[%s1 + $0xc0] sm:$0xf]
    %v74 = vld [vmem:[%s1 + $0xc4] sm:$0xf]
    %v75 = vld [vmem:[%s1 + $0xc8] sm:$0xf]
    %v76 = vld [vmem:[%s1 + $0xcc] sm:$0xf]
    %v77 = vld [vmem:[%s1 + $0xd0] sm:$0xf]
    %v78 = vld [vmem:[%s1 + $0xd4] sm:$0xf]
    %v79 = vld [vmem:[%s1 + $0xd8] sm:$0xf]
    %v80 = vld [vmem:[%s1 + $0xdc] sm:$0xf]
    %v81 = vld [vmem:[%s1 + $0xe0] sm:$0xf]
    %v82 = vld [vmem:[%s1 + $0xe4] sm:$0xf]
    %v83 = vld [vmem:[%s1 + $0xe8] sm:$0xf]
    %v84 = vld [vmem:[%s1 + $0xec] sm:$0xf]
    %v85 = vld [vmem:[%s1 + $0xf0] sm:$0xf]
    %v86 = vld [vmem:[%s1 + $0xf4] sm:$0xf]
    %v87 = vld [vmem:[%s1 + $0xf8] sm:$0xf]
    %v88 = vld [vmem:[%s1 + $0xfc] sm:$0xf]
    %v89 = vld [vmem:[%s1 + $0x100] sm:$0xf]
    %v90 = vld [vmem:[%s1 + $0x104] sm:$0xf]
    %v91 = vld [vmem:[%s1 + $0x108] sm:$0xf]
    %v92 = vld [vmem:[%s1 + $0x10c] sm:$0xf]
    %v93 = vld [vmem:[%s1 + $0x110] sm:$0xf]
    %v94 = vld [vmem:[%s1 + $0x114] sm:$0xf]
    %v95 = vld [vmem:[%s1 + $0x118] sm:$0xf]
    %v96 = vld [vmem:[%s1 + $0x11c] sm:$0xf]
    %v97 = vld [vmem:[%s1 + $0x120] sm:$0xf]
    %v98 = vld [vmem:[%s1 + $0x124] sm:$0xf]
    %v99 = vld [vmem:[%s1 + $0x128] sm:$0xf]
    %v100 = vld [vmem:[%s1 + $0x12c] sm:$0xf]
    %v101 = vld [vmem:[%s1 + $0x130] sm:$0xf]
    %v102 = vld [vmem:[%s1 + $0x134] sm:$0xf]
    %v103 = vld [vmem:[%s1 + $0x138] sm:$0xf]
    %v104 = vld [vmem:[%s1 + $0x13c] sm:$0xf]
    %v105 = vld [vmem:[%s1 + $0x140] sm:$0xf]
    %v106 = vld [vmem:[%s1 + $0x144] sm:$0xf]
    %v107 = vld [vmem:[%s1 + $0x148] sm:$0xf]
    %v108 = vld [vmem:[%s1 + $0x14c] sm:$0xf]
    %v109 = vld [vmem:[%s1 + $0x150] sm:$0xf]
    %v110 = vld [vmem:[%s1 + $0x154] sm:$0xf]
    %v111 = vld [vmem:[%s1 + $0x158] sm:$0xf]
    %v112 = vld [vmem:[%s1 + $0x15c] sm:$0xf]
    %v113 = vld [vmem:[%s1 + $0x160] sm:$0xf]
    %v114 = vld [vmem:[%s1 + $0x164] sm:$0xf]
    %v115 = vld [vmem:[%s1 + $0x168] sm:$0xf]
    %v116 = vld [vmem:[%s1 + $0x16c] sm:$0xf]
    %v117 = vld [vmem:[%s1 + $0x170] sm:$0xf]
    %v118 = vld [vmem:[%s1 + $0x174] sm:$0xf]
    %v119 = vld [vmem:[%s1 + $0x178] sm:$0xf]
    %v120 = vld [vmem:[%s1 + $0x17c] sm:$0xf]
    %v121 = vld [vmem:[%s1 + $0x180] sm:$0xf]
    %v122 = vld [vmem:[%s1 + $0x184] sm:$0xf]
    %v123 = vld [vmem:[%s1 + $0x188] sm:$0xf]
    %v124 = vld [vmem:[%s1 + $0x18c] sm:$0xf]
    %v125 = vld [vmem:[%s1 + $0x190] sm:$0xf]
    %v126 = vld [vmem:[%s1 + $0x194] sm:$0xf]
    %v127 = vld [vmem:[%s1 + $0x198] sm:$0xf]
    %v128 = vld [vmem:[%s1 + $0x19c] sm:$0xf]
    %v129 = vld [vmem:[%s1 + $0x1a0] sm:$0xf]
    %v130 = vld [vmem:[%s1 + $0x1a4] sm:$0xf]
    %v131 = vld [vmem:[%s1 + $0x1a8] sm:$0xf]
    %v132 = vld [vmem:[%s1 + $0x1ac] sm:$0xf]
    %v133 = vld [vmem:[%s1 + $0x1b0] sm:$0xf]
    %v134 = vld [vmem:[%s1 + $0x1b4] sm:$0xf]
    %v135 = vld [vmem:[%s1 + $0x1b8] sm:$0xf]
    %v136 = vld [vmem:[%s1 + $0x1bc] sm:$0xf]
    %v137 = vld [vmem:[%s1 + $0x1c0] sm:$0xf]
    %v138 = vld [vmem:[%s1 + $0x1c4] sm:$0xf]
    %v139 = vld [vmem:[%s1 + $0x1c8] sm:$0xf]
    %v140 = vld [vmem:[%s1 + $0x1cc] sm:$0xf]
    %v141 = vld [vmem:[%s1 + $0x1d0] sm:$0xf]
    %v142 = vld [vmem:[%s1 + $0x1d4] sm:$0xf]
    %v143 = vld [vmem:[%s1 + $0x1d8] sm:$0xf]
    %v144 = vld [vmem:[%s1 + $0x1dc] sm:$0xf]
    %v145 = vld [vmem:[%s1 + $0x1e0] sm:$0xf]
    %v146 = vld [vmem:[%s1 + $0x1e4] sm:$0xf]
    %v147 = vld [vmem:[%s1 + $0x1e8] sm:$0xf]
    %v148 = vld [vmem:[%s1 + $0x1ec] sm:$0xf]
    %v149 = vld [vmem:[%s1 + $0x1f0] sm:$0xf]
    %v150 = vld [vmem:[%s1 + $0x1f4] sm:$0xf]
    %v151 = vld [vmem:[%s1 + $0x1f8] sm:$0xf]
    %v152 = vld [vmem:[%s1 + $0x1fc] sm:$0xf]
    %v153 = vld [vmem:[%s1 + $0x200] sm:$0xf]
    %v154 = vld [vmem:[%s1 + $0x204] sm:$0xf]
    %v155 = vld [vmem:[%s1 + $0x208] sm:$0xf]
    %v156 = vld [vmem:[%s1 + $0x20c] sm:$0xf]
    %v157 = vld [vmem:[%s1 + $0x210] sm:$0xf]
    %v158 = vld [vmem:[%s1 + $0x214] sm:$0xf]
    %v159 = vld [vmem:[%s1 + $0x218] sm:$0xf]
    %v160 = vld [vmem:[%s1 + $0x21c] sm:$0xf]
    %v161 = vld [vmem:[%s1 + $0x220] sm:$0xf]
    %v162 = vld [vmem:[%s1 + $0x224] sm:$0xf]
    %v163 = vld [vmem:[%s1 + $0x228] sm:$0xf]
    %v164 = vld [vmem:[%s1 + $0x22c] sm:$0xf]
    %v165 = vld [vmem:[%s1 + $0x230] sm:$0xf]
    %v166 = vld [vmem:[%s1 + $0x234] sm:$0xf]
    %v167 = vld [vmem:[%s1 + $0x238] sm:$0xf]
    %v168 = vld [vmem:[%s1 + $0x23c] sm:$0xf]
    %v169 = vld [vmem:[%s1 + $0x240] sm:$0xf]
    %v170 = vld [vmem:[%s1 + $0x244] sm:$0xf]
    %v171 = vld [vmem:[%s1 + $0x248] sm:$0xf]
    %v172 = vld [vmem:[%s1 + $0x24c] sm:$0xf]
    %v173 = vld [vmem:[%s1 + $0x250] sm:$0xf]
    %v174 = vld [vmem:[%s1 + $0x254] sm:$0xf]
    %v175 = vld [vmem:[%s1 + $0x258] sm:$0xf]
    %v176 = vld [vmem:[%s1 + $0x25c] sm:$0xf]
    %v177 = vld [vmem:[%s1 + $0x260] sm:$0xf]
    %v178 = vld [vmem:[%s1 + $0x264] sm:$0xf]
    %v179 = vld [vmem:[%s1 + $0x268] sm:$0xf]
    %v180 = vld [vmem:[%s1 + $0x26c] sm:$0xf]
    %v181 = vld [vmem:[%s1 + $0x270] sm:$0xf]
    %v182 = vld [vmem:[%s1 + $0x274] sm:$0xf]
    %v183 = vld [vmem:[%s1 + $0x278] sm:$0xf]
    %v184 = vld [vmem:[%s1 + $0x27c] sm:$0xf]
    %v185 = vld [vmem:[%s1 + $0x280] sm:$0xf]
    %v186 = vld [vmem:[%s1 + $0x284] sm:$0xf]
    %v187 = vld [vmem:[%s1 + $0x288] sm:$0xf]
    %v188 = vld [vmem:[%s1 + $0x28c] sm:$0xf]
    %v189 = vld [vmem:[%s1 + $0x290] sm:$0xf]
    %v190 = vld [vmem:[%s1 + $0x294] sm:$0xf]
    %v191 = vld [vmem:[%s1 + $0x298] sm:$0xf]
    %v192 = vld [vmem:[%s1 + $0x29c] sm:$0xf]
    %v193 = vld [vmem:[%s1 + $0x2a0] sm:$0xf]
    %v194 = vld [vmem:[%s1 + $0x2a4] sm:$0xf]
    %v195 = vld [vmem:[%s1 + $0x2a8] sm:$0xf]
    %v196 = vld [vmem:[%s1 + $0x2ac] sm:$0xf]
    %v197 = vld [vmem:[%s1 + $0x2b0] sm:$0xf]
    %v198 = vld [vmem:[%s1 + $0x2b4] sm:$0xf]
    %v199 = vld [vmem:[%s1 + $0x2b8] sm:$0xf]
    %v200 = vld [vmem:[%s1 + $0x2bc] sm:$0xf]
    %v201 = vld [vmem:[%s1 + $0x2c0] sm:$0xf]
    %v202 = vld [vmem:[%s1 + $0x2c4] sm:$0xf]
    %v203 = vld [vmem:[%s1 + $0x2c8] sm:$0xf]
    %v204 = vld [vmem:[%s1 + $0x2cc] sm:$0xf]
    %v205 = vld [vmem:[%s1 + $0x2d0] sm:$0xf]
    %v206 = vld [vmem:[%s1 + $0x2d4] sm:$0xf]
    %v207 = vld [vmem:[%s1 + $0x2d8] sm:$0xf]
    %v208 = vld [vmem:[%s1 + $0x2dc] sm:$0xf]
    %v209 = vld [vmem:[%s1 + $0x2e0] sm:$0xf]
    %v210 = vld [vmem:[%s1 + $0x2e4] sm:$0xf]
    %v211 = vld [vmem:[%s1 + $0x2e8] sm:$0xf]
    %v212 = vld [vmem:[%s1 + $0x2ec] sm:$0xf]
    %v213 = vld [vmem:[%s1 + $0x2f0] sm:$0xf]
    %v214 = vld [vmem:[%s1 + $0x2f4] sm:$0xf]
    %v215 = vld [vmem:[%s1 + $0x2f8] sm:$0xf]
    %v216 = vld [vmem:[%s1 + $0x2fc] sm:$0xf]
    %v217 = vld [vmem:[%s1 + $0x300] sm:$0xf]
    %v218 = vld [vmem:[%s1 + $0x304] sm:$0xf]
    %v219 = vld [vmem:[%s1 + $0x308] sm:$0xf]
    %v220 = vld [vmem:[%s1 + $0x30c] sm:$0xf]
    %v221 = vld [vmem:[%s1 + $0x310] sm:$0xf]
    %v222 = vld [vmem:[%s1 + $0x314] sm:$0xf]
    %v223 = vld [vmem:[%s1 + $0x318] sm:$0xf]
    %v224 = vld [vmem:[%s1 + $0x31c] sm:$0xf]
    %v225 = vld [vmem:[%s1 + $0x320] sm:$0xf]
    %v226 = vld [vmem:[%s1 + $0x324] sm:$0xf]
    %v227 = vld [vmem:[%s1 + $0x328] sm:$0xf]
    %v228 = vld [vmem:[%s1 + $0x32c] sm:$0xf]
    %v229 = vld [vmem:[%s1 + $0x330] sm:$0xf]
    %v230 = vld [vmem:[%s1 + $0x334] sm:$0xf]
    %v231 = vld [vmem:[%s1 + $0x338] sm:$0xf]
    %v232 = vld [vmem:[%s1 + $0x33c] sm:$0xf]
    %v233 = vld [vmem:[%s1 + $0x340] sm:$0xf]
    %v234 = vld [vmem:[%s1 + $0x344] sm:$0xf]
    %v235 = vld [vmem:[%s1 + $0x348] sm:$0xf]
    %v236 = vld [vmem:[%s1 + $0x34c] sm:$0xf]
    %v237 = vld [vmem:[%s1 + $0x350] sm:$0xf]
    %v238 = vld [vmem:[%s1 + $0x354] sm:$0xf]
    %v239 = vld [vmem:[%s1 + $0x358] sm:$0xf]
    %v240 = vld [vmem:[%s1 + $0x35c] sm:$0xf]
    %v241 = vld [vmem:[%s1 + $0x360] sm:$0xf]
    %v242 = vld [vmem:[%s1 + $0x364] sm:$0xf]
    %v243 = vld [vmem:[%s1 + $0x368] sm:$0xf]
    %v244 = vld [vmem:[%s1 + $0x36c] sm:$0xf]
    %v245 = vld [vmem:[%s1 + $0x370] sm:$0xf]
    %v246 = vld [vmem:[%s1 + $0x374] sm:$0xf]
    %v247 = vld [vmem:[%s1 + $0x378] sm:$0xf]
    %v248 = vld [vmem:[%s1 + $0x37c] sm:$0xf]
    %v249 = vld [vmem:[%s1 + $0x380] sm:$0xf]
    %v250 = vld [vmem:[%s1 + $0x384] sm:$0xf]
    %v251 = vld [vmem:[%s1 + $0x388] sm:$0xf]
    %v252 = vld [vmem:[%s1 + $0x38c] sm:$0xf]
    %v253 = vld [vmem:[%s1 + $0x390] sm:$0xf]
    %v254 = vld [vmem:[%s1 + $0x394] sm:$0xf]
    %v255 = vld [vmem:[%s1 + $0x398] sm:$0xf]
    %v256 = vld [vmem:[%s1 + $0x39c] sm:$0xf]
    %v257 = vld [vmem:[%s1 + $0x3a0] sm:$0xf]
    %v258 = vld [vmem:[%s1 + $0x3a4] sm:$0xf]
    %v259 = vld [vmem:[%s1 + $0x3a8] sm:$0xf]
    %v260 = vld [vmem:[%s1 + $0x3ac] sm:$0xf]
    %v261 = vld [vmem:[%s1 + $0x3b0] sm:$0xf]
    %v262 = vld [vmem:[%s1 + $0x3b4] sm:$0xf]
    %v263 = vld [vmem:[%s1 + $0x3b8] sm:$0xf]
    %v264 = vld [vmem:[%s1 + $0x3bc] sm:$0xf]
    %v265 = vld [vmem:[%s1 + $0x3c0] sm:$0xf]
    %v266 = vld [vmem:[%s1 + $0x3c4] sm:$0xf]
    %v267 = vld [vmem:[%s1 + $0x3c8] sm:$0xf]
    %v268 = vld [vmem:[%s1 + $0x3cc] sm:$0xf]
    %v269 = vld [vmem:[%s1 + $0x3d0] sm:$0xf]
    %v270 = vld [vmem:[%s1 + $0x3d4] sm:$0xf]
    %v271 = vld [vmem:[%s1 + $0x3d8] sm:$0xf]
    %v272 = vld [vmem:[%s1 + $0x3dc] sm:$0xf]
    %v273 = vld [vmem:[%s1 + $0x3e0] sm:$0xf]
    %v274 = vld [vmem:[%s1 + $0x3e4] sm:$0xf]
    %v275 = vld [vmem:[%s1 + $0x3e8] sm:$0xf]
    %v276 = vld [vmem:[%s1 + $0x3ec] sm:$0xf]
    %v277 = vld [vmem:[%s1 + $0x3f0] sm:$0xf]
    %v278 = vld [vmem:[%s1 + $0x3f4] sm:$0xf]
    %v279 = vld [vmem:[%s1 + $0x3f8] sm:$0xf]
    %v280 = vld [vmem:[%s1 + $0x3fc] sm:$0xf]
    %v281 = vld [vmem:[%s1 + $0x400] sm:$0xf]
    %v282 = vld [vmem:[%s1 + $0x404] sm:$0xf]
    %v283 = vld [vmem:[%s1 + $0x408] sm:$0xf]
    %v284 = vld [vmem:[%s1 + $0x40c] sm:$0xf]
    %v285 = vld [vmem:[%s1 + $0x410] sm:$0xf]
    %v286 = vld [vmem:[%s1 + $0x414] sm:$0xf]
    %v287 = vld [vmem:[%s1 + $0x418] sm:$0xf]
    %v288 = vld [vmem:[%s1 + $0x41c] sm:$0xf]
    %v289 = vld [vmem:[%s1 + $0x420] sm:$0xf]
    %v290 = vld [vmem:[%s1 + $0x424] sm:$0xf]
    %v291 = vld [vmem:[%s1 + $0x428] sm:$0xf]
    %v292 = vld [vmem:[%s1 + $0x42c] sm:$0xf]
    %v293 = vld [vmem:[%s1 + $0x430] sm:$0xf]
    %v294 = vld [vmem:[%s1 + $0x434] sm:$0xf]
    %v295 = vld [vmem:[%s1 + $0x438] sm:$0xf]
    %v296 = vld [vmem:[%s1 + $0x43c] sm:$0xf]
    %v297 = vld [vmem:[%s1 + $0x440] sm:$0xf]
    %v298 = vld [vmem:[%s1 + $0x444] sm:$0xf]
    %v299 = vld [vmem:[%s1 + $0x448] sm:$0xf]
    %v300 = vld [vmem:[%s1 + $0x44c] sm:$0xf]
    %v301 = vld [vmem:[%s1 + $0x450] sm:$0xf]
    %v302 = vld [vmem:[%s1 + $0x454] sm:$0xf]
    %v303 = vld [vmem:[%s1 + $0x458] sm:$0xf]
    %v304 = vld [vmem:[%s1 + $0x45c] sm:$0xf]
    %v305 = vld [vmem:[%s1 + $0x460] sm:$0xf]
    %v306 = vld [vmem:[%s1 + $0x464] sm:$0xf]
    %v307 = vld [vmem:[%s1 + $0x468] sm:$0xf]
    %v308 = vld [vmem:[%s1 + $0x46c] sm:$0xf]
    %v309 = vld [vmem:[%s1 + $0x470] sm:$0xf]
    %v310 = vld [vmem:[%s1 + $0x474] sm:$0xf]
    %v311 = vld [vmem:[%s1 + $0x478] sm:$0xf]
    %v312 = vld [vmem:[%s1 + $0x47c] sm:$0xf]
    %v313 = vld [vmem:[%s1 + $0x480] sm:$0xf]
    %v314 = vld [vmem:[%s1 + $0x484] sm:$0xf]
    %v315 = vld [vmem:[%s1 + $0x488] sm:$0xf]
    %v316 = vld [vmem:[%s1 + $0x48c] sm:$0xf]
    %v317 = vld [vmem:[%s1 + $0x490] sm:$0xf]
    %v318 = vld [vmem:[%s1 + $0x494] sm:$0xf]
    %v319 = vld [vmem:[%s1 + $0x498] sm:$0xf]
    %v320 = vld [vmem:[%s1 + $0x49c] sm:$0xf]
    %v321 = vld [vmem:[%s1 + $0x4a0] sm:$0xf]
    %v322 = vld [vmem:[%s1 + $0x4a4] sm:$0xf]
    %v323 = vld [vmem:[%s1 + $0x4a8] sm:$0xf]
    %v324 = vld [vmem:[%s1 + $0x4ac] sm:$0xf]
    %v325 = vld [vmem:[%s1 + $0x4b0] sm:$0xf]
    %v326 = vld [vmem:[%s1 + $0x4b4] sm:$0xf]
    %v327 = vld [vmem:[%s1 + $0x4b8] sm:$0xf]
    %v328 = vld [vmem:[%s1 + $0x4bc] sm:$0xf]
    %v329 = vld [vmem:[%s1 + $0x4c0] sm:$0xf]
    %v330 = vld [vmem:[%s1 + $0x4c4] sm:$0xf]
    %v331 = vld [vmem:[%s1 + $0x4c8] sm:$0xf]
    %v332 = vld [vmem:[%s1 + $0x4cc] sm:$0xf]
    %v333 = vld [vmem:[%s1 + $0x4d0] sm:$0xf]
    %v334 = vld [vmem:[%s1 + $0x4d4] sm:$0xf]
    %v335 = vld [vmem:[%s1 + $0x4d8] sm:$0xf]
    %v336 = vld [vmem:[%s1 + $0x4dc] sm:$0xf]
    %v337 = vld [vmem:[%s1 + $0x4e0] sm:$0xf]
    %v338 = vld [vmem:[%s1 + $0x4e4] sm:$0xf]
    %v339 = vld [vmem:[%s1 + $0x4e8] sm:$0xf]
    %v340 = vld [vmem:[%s1 + $0x4ec] sm:$0xf]
    %v341 = vld [vmem:[%s1 + $0x4f0] sm:$0xf]
    %v342 = vld [vmem:[%s1 + $0x4f4] sm:$0xf]
    %v343 = vld [vmem:[%s1 + $0x4f8] sm:$0xf]
    %v344 = vld [vmem:[%s1 + $0x4fc] sm:$0xf]
    %v345 = vld [vmem:[%s2] sm:$0x1]
    %v346 = vlaneseq
    %v347 = vshrl.u32 %v346, 7
    %v348 = vsub.s32 0, %v347
    %v349 = vrot.slane %v345, %v348
    %v353 = vcombine.high %v22, %v22
    %v355 = vunpack.c.l.s4 1966171168
    %v356 = vunpack.c.0.s8 %v355
    %v357 = vlaneseq
    %v358 = vshrl.u32 %v357, 7
    %v359 = vsub.s32 %v356, %v358
    %v360 = vrot.slane %v22, %v359
    %v362 = vunpack.c.l.s4 1966171168
    %v363 = vunpack.c.0.s8 %v362
    %v364 = vlaneseq
    %v365 = vshrl.u32 %v364, 7
    %v366 = vsub.s32 %v363, %v365
    %v367 = vrot.slane %v353, %v366
    %v368 = vcombine.high %v360, %v360
    %v369 = vcombine.high %v367, %v367
    %v371 = vunpack.c.l.s4 1966171168
    %v372 = vunpack.c.0.s8 %v371
    %v373 = vlaneseq
    %v374 = vshrl.u32 %v373, 7
    %v375 = vsub.s32 %v372, %v374
    %v376 = vrot.slane %v360, %v375
    %v378 = vunpack.c.l.s4 1966171168
    %v379 = vunpack.c.0.s8 %v378
    %v380 = vlaneseq
    %v381 = vshrl.u32 %v380, 7
    %v382 = vsub.s32 %v379, %v381
    %v383 = vrot.slane %v367, %v382
    %v385 = vunpack.c.l.s4 1966171168
    %v386 = vunpack.c.0.s8 %v385
    %v387 = vlaneseq
    %v388 = vshrl.u32 %v387, 7
    %v389 = vsub.s32 %v386, %v388
    %v390 = vrot.slane %v368, %v389
    %v392 = vunpack.c.l.s4 1966171168
    %v393 = vunpack.c.0.s8 %v392
    %v394 = vlaneseq
    %v395 = vshrl.u32 %v394, 7
    %v396 = vsub.s32 %v393, %v395
    %v397 = vrot.slane %v369, %v396
    %v398 = vcombine.high %v376, %v376
    %v399 = vcombine.high %v383, %v383
    %v400 = vcombine.high %v390, %v390
    %v401 = vcombine.high %v397, %v397
    %v402 = vcombine.high %v23, %v23
    %v404 = vunpack.c.l.s4 1966171168
    %v405 = vunpack.c.0.s8 %v404
    %v406 = vlaneseq
    %v407 = vshrl.u32 %v406, 7
    %v408 = vsub.s32 %v405, %v407
    %v409 = vrot.slane %v23, %v408
    %v411 = vunpack.c.l.s4 1966171168
    %v412 = vunpack.c.0.s8 %v411
    %v413 = vlaneseq
    %v414 = vshrl.u32 %v413, 7
    %v415 = vsub.s32 %v412, %v414
    %v416 = vrot.slane %v402, %v415
    %v417 = vcombine.high %v409, %v409
    %v418 = vcombine.high %v416, %v416
    %v420 = vunpack.c.l.s4 1966171168
    %v421 = vunpack.c.0.s8 %v420
    %v422 = vlaneseq
    %v423 = vshrl.u32 %v422, 7
    %v424 = vsub.s32 %v421, %v423
    %v425 = vrot.slane %v409, %v424
    %v427 = vunpack.c.l.s4 1966171168
    %v428 = vunpack.c.0.s8 %v427
    %v429 = vlaneseq
    %v430 = vshrl.u32 %v429, 7
    %v431 = vsub.s32 %v428, %v430
    %v432 = vrot.slane %v416, %v431
    %v434 = vunpack.c.l.s4 1966171168
    %v435 = vunpack.c.0.s8 %v434
    %v436 = vlaneseq
    %v437 = vshrl.u32 %v436, 7
    %v438 = vsub.s32 %v435, %v437
    %v439 = vrot.slane %v417, %v438
    %v441 = vunpack.c.l.s4 1966171168
    %v442 = vunpack.c.0.s8 %v441
    %v443 = vlaneseq
    %v444 = vshrl.u32 %v443, 7
    %v445 = vsub.s32 %v442, %v444
    %v446 = vrot.slane %v418, %v445
    %v447 = vcombine.high %v425, %v425
    %v448 = vcombine.high %v432, %v432
    %v449 = vcombine.high %v439, %v439
    %v450 = vcombine.high %v446, %v446
    %v452 = vunpack.c.l.s4 1966171168
    %v453 = vunpack.c.0.s8 %v452
    %v454 = vlaneseq
    %v455 = vshrl.u32 %v454, 7
    %v456 = vsub.s32 %v453, %v455
    %v457 = vrot.slane %v24, %v456
    %v458 = vcombine.high %v457, %v457
    %v460 = vunpack.c.l.s4 1966171168
    %v461 = vunpack.c.0.s8 %v460
    %v462 = vlaneseq
    %v463 = vshrl.u32 %v462, 7
    %v464 = vsub.s32 %v461, %v463
    %v465 = vrot.slane %v457, %v464
    %v467 = vunpack.c.l.s4 1966171168
    %v468 = vunpack.c.0.s8 %v467
    %v469 = vlaneseq
    %v470 = vshrl.u32 %v469, 7
    %v471 = vsub.s32 %v468, %v470
    %v472 = vrot.slane %v458, %v471
    %v473 = vcombine.high %v465, %v465
    %v474 = vcombine.high %v472, %v472
    %v815 = vunpack.c.l.b16 %v25
    %v816 = vunpack.c.l.b16 %v26
    %v817 = vunpack.c.l.b16 %v27
    %v818 = vunpack.c.l.b16 %v28
    %v819 = vunpack.c.l.b16 %v29
    %v820 = vunpack.c.l.b16 %v30
    %v821 = vunpack.c.l.b16 %v31
    %v822 = vunpack.c.l.b16 %v32
    %v823 = vunpack.c.l.b16 %v33
    %v824 = vunpack.c.l.b16 %v34
    %v825 = vunpack.c.l.b16 %v35
    %v826 = vunpack.c.l.b16 %v36
    %v827 = vunpack.c.l.b16 %v37
    %v828 = vunpack.c.l.b16 %v38
    %v829 = vunpack.c.l.b16 %v39
    %v830 = vunpack.c.l.b16 %v40
    %v831 = vunpack.c.l.b16 %v41
    %v832 = vunpack.c.l.b16 %v42
    %v833 = vunpack.c.l.b16 %v43
    %v834 = vunpack.c.l.b16 %v44
    %v835 = vunpack.c.l.b16 %v45
    %v836 = vunpack.c.l.b16 %v46
    %v837 = vunpack.c.l.b16 %v47
    %v838 = vunpack.c.l.b16 %v48
    %v839 = vunpack.c.l.b16 %v49
    %v840 = vunpack.c.l.b16 %v50
    %v841 = vunpack.c.l.b16 %v51
    %v842 = vunpack.c.l.b16 %v52
    %v843 = vunpack.c.l.b16 %v53
    %v844 = vunpack.c.l.b16 %v54
    %v845 = vunpack.c.l.b16 %v55
    %v846 = vunpack.c.l.b16 %v56
    %v847 = vunpack.c.l.b16 %v57
    %v848 = vunpack.c.l.b16 %v58
    %v849 = vunpack.c.l.b16 %v59
    %v850 = vunpack.c.l.b16 %v60
    %v851 = vunpack.c.l.b16 %v61
    %v852 = vunpack.c.l.b16 %v62
    %v853 = vunpack.c.l.b16 %v63
    %v854 = vunpack.c.l.b16 %v64
    %v855 = vunpack.c.l.b16 %v65
    %v856 = vunpack.c.l.b16 %v66
    %v857 = vunpack.c.l.b16 %v67
    %v858 = vunpack.c.l.b16 %v68
    %v859 = vunpack.c.l.b16 %v69
    %v860 = vunpack.c.l.b16 %v70
    %v861 = vunpack.c.l.b16 %v71
    %v862 = vunpack.c.l.b16 %v72
    %v863 = vunpack.c.l.b16 %v73
    %v864 = vunpack.c.l.b16 %v74
    %v865 = vunpack.c.l.b16 %v75
    %v866 = vunpack.c.l.b16 %v76
    %v867 = vunpack.c.l.b16 %v77
    %v868 = vunpack.c.l.b16 %v78
    %v869 = vunpack.c.l.b16 %v79
    %v870 = vunpack.c.l.b16 %v80
    %v871 = vunpack.c.l.b16 %v81
    %v872 = vunpack.c.l.b16 %v82
    %v873 = vunpack.c.l.b16 %v83
    %v874 = vunpack.c.l.b16 %v84
    %v875 = vunpack.c.l.b16 %v85
    %v876 = vunpack.c.l.b16 %v86
    %v877 = vunpack.c.l.b16 %v87
    %v878 = vunpack.c.l.b16 %v88
    %v879 = vunpack.c.l.b16 %v89
    %v880 = vunpack.c.l.b16 %v90
    %v881 = vunpack.c.l.b16 %v91
    %v882 = vunpack.c.l.b16 %v92
    %v883 = vunpack.c.l.b16 %v93
    %v884 = vunpack.c.l.b16 %v94
    %v885 = vunpack.c.l.b16 %v95
    %v886 = vunpack.c.l.b16 %v96
    %v887 = vunpack.c.l.b16 %v97
    %v888 = vunpack.c.l.b16 %v98
    %v889 = vunpack.c.l.b16 %v99
    %v890 = vunpack.c.l.b16 %v100
    %v891 = vunpack.c.l.b16 %v101
    %v892 = vunpack.c.l.b16 %v102
    %v893 = vunpack.c.l.b16 %v103
    %v894 = vunpack.c.l.b16 %v104
    %v895 = vunpack.c.l.b16 %v105
    %v896 = vunpack.c.l.b16 %v106
    %v897 = vunpack.c.l.b16 %v107
    %v898 = vunpack.c.l.b16 %v108
    %v899 = vunpack.c.l.b16 %v109
    %v900 = vunpack.c.l.b16 %v110
    %v901 = vunpack.c.l.b16 %v111
    %v902 = vunpack.c.l.b16 %v112
    %v903 = vunpack.c.l.b16 %v113
    %v904 = vunpack.c.l.b16 %v114
    %v905 = vunpack.c.l.b16 %v115
    %v906 = vunpack.c.l.b16 %v116
    %v907 = vunpack.c.l.b16 %v117
    %v908 = vunpack.c.l.b16 %v118
    %v909 = vunpack.c.l.b16 %v119
    %v910 = vunpack.c.l.b16 %v120
    %v911 = vunpack.c.l.b16 %v121
    %v912 = vunpack.c.l.b16 %v122
    %v913 = vunpack.c.l.b16 %v123
    %v914 = vunpack.c.l.b16 %v124
    %v915 = vunpack.c.l.b16 %v125
    %v916 = vunpack.c.l.b16 %v126
    %v917 = vunpack.c.l.b16 %v127
    %v918 = vunpack.c.l.b16 %v128
    %v919 = vunpack.c.l.b16 %v129
    %v920 = vunpack.c.l.b16 %v130
    %v921 = vunpack.c.l.b16 %v131
    %v922 = vunpack.c.l.b16 %v132
    %v923 = vunpack.c.l.b16 %v133
    %v924 = vunpack.c.l.b16 %v134
    %v925 = vunpack.c.l.b16 %v135
    %v926 = vunpack.c.l.b16 %v136
    %v927 = vunpack.c.l.b16 %v137
    %v928 = vunpack.c.l.b16 %v138
    %v929 = vunpack.c.l.b16 %v139
    %v930 = vunpack.c.l.b16 %v140
    %v931 = vunpack.c.l.b16 %v141
    %v932 = vunpack.c.l.b16 %v142
    %v933 = vunpack.c.l.b16 %v143
    %v934 = vunpack.c.l.b16 %v144
    %v935 = vunpack.c.l.b16 %v145
    %v936 = vunpack.c.l.b16 %v146
    %v937 = vunpack.c.l.b16 %v147
    %v938 = vunpack.c.l.b16 %v148
    %v939 = vunpack.c.l.b16 %v149
    %v940 = vunpack.c.l.b16 %v150
    %v941 = vunpack.c.l.b16 %v151
    %v942 = vunpack.c.l.b16 %v152
    %v943 = vunpack.c.l.b16 %v153
    %v944 = vunpack.c.l.b16 %v154
    %v945 = vunpack.c.l.b16 %v155
    %v946 = vunpack.c.l.b16 %v156
    %v947 = vunpack.c.l.b16 %v157
    %v948 = vunpack.c.l.b16 %v158
    %v949 = vunpack.c.l.b16 %v159
    %v950 = vunpack.c.l.b16 %v160
    %v951 = vunpack.c.l.b16 %v161
    %v952 = vunpack.c.l.b16 %v162
    %v953 = vunpack.c.l.b16 %v163
    %v954 = vunpack.c.l.b16 %v164
    %v955 = vunpack.c.l.b16 %v165
    %v956 = vunpack.c.l.b16 %v166
    %v957 = vunpack.c.l.b16 %v167
    %v958 = vunpack.c.l.b16 %v168
    %v959 = vunpack.c.l.b16 %v169
    %v960 = vunpack.c.l.b16 %v170
    %v961 = vunpack.c.l.b16 %v171
    %v962 = vunpack.c.l.b16 %v172
    %v963 = vunpack.c.l.b16 %v173
    %v964 = vunpack.c.l.b16 %v174
    %v965 = vunpack.c.l.b16 %v175
    %v966 = vunpack.c.l.b16 %v176
    %v967 = vunpack.c.l.b16 %v177
    %v968 = vunpack.c.l.b16 %v178
    %v969 = vunpack.c.l.b16 %v179
    %v970 = vunpack.c.l.b16 %v180
    %v971 = vunpack.c.l.b16 %v181
    %v972 = vunpack.c.l.b16 %v182
    %v973 = vunpack.c.l.b16 %v183
    %v974 = vunpack.c.l.b16 %v184
    %v975 = vunpack.c.l.b16 %v185
    %v976 = vunpack.c.l.b16 %v186
    %v977 = vunpack.c.l.b16 %v187
    %v978 = vunpack.c.l.b16 %v188
    %v979 = vunpack.c.l.b16 %v189
    %v980 = vunpack.c.l.b16 %v190
    %v981 = vunpack.c.l.b16 %v191
    %v982 = vunpack.c.l.b16 %v192
    %v983 = vunpack.c.l.b16 %v193
    %v984 = vunpack.c.l.b16 %v194
    %v985 = vunpack.c.l.b16 %v195
    %v986 = vunpack.c.l.b16 %v196
    %v987 = vunpack.c.l.b16 %v197
    %v988 = vunpack.c.l.b16 %v198
    %v989 = vunpack.c.l.b16 %v199
    %v990 = vunpack.c.l.b16 %v200
    %v991 = vunpack.c.l.b16 %v201
    %v992 = vunpack.c.l.b16 %v202
    %v993 = vunpack.c.l.b16 %v203
    %v994 = vunpack.c.l.b16 %v204
    %v995 = vunpack.c.l.b16 %v205
    %v996 = vunpack.c.l.b16 %v206
    %v997 = vunpack.c.l.b16 %v207
    %v998 = vunpack.c.l.b16 %v208
    %v999 = vunpack.c.l.b16 %v209
    %v1000 = vunpack.c.l.b16 %v210
    %v1001 = vunpack.c.l.b16 %v211
    %v1002 = vunpack.c.l.b16 %v212
    %v1003 = vunpack.c.l.b16 %v213
    %v1004 = vunpack.c.l.b16 %v214
    %v1005 = vunpack.c.l.b16 %v215
    %v1006 = vunpack.c.l.b16 %v216
    %v1007 = vunpack.c.l.b16 %v217
    %v1008 = vunpack.c.l.b16 %v218
    %v1009 = vunpack.c.l.b16 %v219
    %v1010 = vunpack.c.l.b16 %v220
    %v1011 = vunpack.c.l.b16 %v221
    %v1012 = vunpack.c.l.b16 %v222
    %v1013 = vunpack.c.l.b16 %v223
    %v1014 = vunpack.c.l.b16 %v224
    %v1015 = vunpack.c.l.b16 %v225
    %v1016 = vunpack.c.l.b16 %v226
    %v1017 = vunpack.c.l.b16 %v227
    %v1018 = vunpack.c.l.b16 %v228
    %v1019 = vunpack.c.l.b16 %v229
    %v1020 = vunpack.c.l.b16 %v230
    %v1021 = vunpack.c.l.b16 %v231
    %v1022 = vunpack.c.l.b16 %v232
    %v1023 = vunpack.c.l.b16 %v233
    %v1024 = vunpack.c.l.b16 %v234
    %v1025 = vunpack.c.l.b16 %v235
    %v1026 = vunpack.c.l.b16 %v236
    %v1027 = vunpack.c.l.b16 %v237
    %v1028 = vunpack.c.l.b16 %v238
    %v1029 = vunpack.c.l.b16 %v239
    %v1030 = vunpack.c.l.b16 %v240
    %v1031 = vunpack.c.l.b16 %v241
    %v1032 = vunpack.c.l.b16 %v242
    %v1033 = vunpack.c.l.b16 %v243
    %v1034 = vunpack.c.l.b16 %v244
    %v1035 = vunpack.c.l.b16 %v245
    %v1036 = vunpack.c.l.b16 %v246
    %v1037 = vunpack.c.l.b16 %v247
    %v1038 = vunpack.c.l.b16 %v248
    %v1039 = vunpack.c.l.b16 %v249
    %v1040 = vunpack.c.l.b16 %v250
    %v1041 = vunpack.c.l.b16 %v251
    %v1042 = vunpack.c.l.b16 %v252
    %v1043 = vunpack.c.l.b16 %v253
    %v1044 = vunpack.c.l.b16 %v254
    %v1045 = vunpack.c.l.b16 %v255
    %v1046 = vunpack.c.l.b16 %v256
    %v1047 = vunpack.c.l.b16 %v257
    %v1048 = vunpack.c.l.b16 %v258
    %v1049 = vunpack.c.l.b16 %v259
    %v1050 = vunpack.c.l.b16 %v260
    %v1051 = vunpack.c.l.b16 %v261
    %v1052 = vunpack.c.l.b16 %v262
    %v1053 = vunpack.c.l.b16 %v263
    %v1054 = vunpack.c.l.b16 %v264
    %v1055 = vunpack.c.l.b16 %v265
    %v1056 = vunpack.c.l.b16 %v266
    %v1057 = vunpack.c.l.b16 %v267
    %v1058 = vunpack.c.l.b16 %v268
    %v1059 = vunpack.c.l.b16 %v269
    %v1060 = vunpack.c.l.b16 %v270
    %v1061 = vunpack.c.l.b16 %v271
    %v1062 = vunpack.c.l.b16 %v272
    %v1063 = vunpack.c.l.b16 %v273
    %v1064 = vunpack.c.l.b16 %v274
    %v1065 = vunpack.c.l.b16 %v275
    %v1066 = vunpack.c.l.b16 %v276
    %v1067 = vunpack.c.l.b16 %v277
    %v1068 = vunpack.c.l.b16 %v278
    %v1069 = vunpack.c.l.b16 %v279
    %v1070 = vunpack.c.l.b16 %v280
    %v1071 = vunpack.c.l.b16 %v281
    %v1072 = vunpack.c.l.b16 %v282
    %v1073 = vunpack.c.l.b16 %v283
    %v1074 = vunpack.c.l.b16 %v284
    %v1075 = vunpack.c.l.b16 %v285
    %v1076 = vunpack.c.l.b16 %v286
    %v1077 = vunpack.c.l.b16 %v287
    %v1078 = vunpack.c.l.b16 %v288
    %v1079 = vunpack.c.l.b16 %v289
    %v1080 = vunpack.c.l.b16 %v290
    %v1081 = vunpack.c.l.b16 %v291
    %v1082 = vunpack.c.l.b16 %v292
    %v1083 = vunpack.c.l.b16 %v293
    %v1084 = vunpack.c.l.b16 %v294
    %v1085 = vunpack.c.l.b16 %v295
    %v1086 = vunpack.c.l.b16 %v296
    %v1087 = vunpack.c.l.b16 %v297
    %v1088 = vunpack.c.l.b16 %v298
    %v1089 = vunpack.c.l.b16 %v299
    %v1090 = vunpack.c.l.b16 %v300
    %v1091 = vunpack.c.l.b16 %v301
    %v1092 = vunpack.c.l.b16 %v302
    %v1093 = vunpack.c.l.b16 %v303
    %v1094 = vunpack.c.l.b16 %v304
    %v1095 = vunpack.c.l.b16 %v305
    %v1096 = vunpack.c.l.b16 %v306
    %v1097 = vunpack.c.l.b16 %v307
    %v1098 = vunpack.c.l.b16 %v308
    %v1099 = vunpack.c.l.b16 %v309
    %v1100 = vunpack.c.l.b16 %v310
    %v1101 = vunpack.c.l.b16 %v311
    %v1102 = vunpack.c.l.b16 %v312
    %v1103 = vunpack.c.l.b16 %v313
    %v1104 = vunpack.c.l.b16 %v314
    %v1105 = vunpack.c.l.b16 %v315
    %v1106 = vunpack.c.l.b16 %v316
    %v1107 = vunpack.c.l.b16 %v317
    %v1108 = vunpack.c.l.b16 %v318
    %v1109 = vunpack.c.l.b16 %v319
    %v1110 = vunpack.c.l.b16 %v320
    %v1111 = vunpack.c.l.b16 %v321
    %v1112 = vunpack.c.l.b16 %v322
    %v1113 = vunpack.c.l.b16 %v323
    %v1114 = vunpack.c.l.b16 %v324
    %v1115 = vunpack.c.l.b16 %v325
    %v1116 = vunpack.c.l.b16 %v326
    %v1117 = vunpack.c.l.b16 %v327
    %v1118 = vunpack.c.l.b16 %v328
    %v1119 = vunpack.c.l.b16 %v329
    %v1120 = vunpack.c.l.b16 %v330
    %v1121 = vunpack.c.l.b16 %v331
    %v1122 = vunpack.c.l.b16 %v332
    %v1123 = vunpack.c.l.b16 %v333
    %v1124 = vunpack.c.l.b16 %v334
    %v1125 = vunpack.c.l.b16 %v335
    %v1126 = vunpack.c.l.b16 %v336
    %v1127 = vunpack.c.l.b16 %v337
    %v1128 = vunpack.c.l.b16 %v338
    %v1129 = vunpack.c.l.b16 %v339
    %v1130 = vunpack.c.l.b16 %v340
    %v1131 = vunpack.c.l.b16 %v341
    %v1132 = vunpack.c.l.b16 %v342
    %v1133 = vunpack.c.l.b16 %v343
    %v1134 = vunpack.c.l.b16 %v344
    %v1135 = vpack.c.b16 %v816, %v815
    %v1136 = vpack.c.b16 %v818, %v817
    %v1137 = vpack.c.b16 %v820, %v819
    %v1138 = vpack.c.b16 %v822, %v821
    %v1139 = vpack.c.b16 %v824, %v823
    %v1140 = vpack.c.b16 %v826, %v825
    %v1141 = vpack.c.b16 %v828, %v827
    %v1142 = vpack.c.b16 %v830, %v829
    %v1143 = vpack.c.b16 %v832, %v831
    %v1144 = vpack.c.b16 %v834, %v833
    %v1145 = vpack.c.b16 %v836, %v835
    %v1146 = vpack.c.b16 %v838, %v837
    %v1147 = vpack.c.b16 %v840, %v839
    %v1148 = vpack.c.b16 %v842, %v841
    %v1149 = vpack.c.b16 %v844, %v843
    %v1150 = vpack.c.b16 %v846, %v845
    %v1151 = vpack.c.b16 %v848, %v847
    %v1152 = vpack.c.b16 %v850, %v849
    %v1153 = vpack.c.b16 %v852, %v851
    %v1154 = vpack.c.b16 %v854, %v853
    %v1155 = vpack.c.b16 %v856, %v855
    %v1156 = vpack.c.b16 %v858, %v857
    %v1157 = vpack.c.b16 %v860, %v859
    %v1158 = vpack.c.b16 %v862, %v861
    %v1159 = vpack.c.b16 %v864, %v863
    %v1160 = vpack.c.b16 %v866, %v865
    %v1161 = vpack.c.b16 %v868, %v867
    %v1162 = vpack.c.b16 %v870, %v869
    %v1163 = vpack.c.b16 %v872, %v871
    %v1164 = vpack.c.b16 %v874, %v873
    %v1165 = vpack.c.b16 %v876, %v875
    %v1166 = vpack.c.b16 %v878, %v877
    %v1167 = vpack.c.b16 %v880, %v879
    %v1168 = vpack.c.b16 %v882, %v881
    %v1169 = vpack.c.b16 %v884, %v883
    %v1170 = vpack.c.b16 %v886, %v885
    %v1171 = vpack.c.b16 %v888, %v887
    %v1172 = vpack.c.b16 %v890, %v889
    %v1173 = vpack.c.b16 %v892, %v891
    %v1174 = vpack.c.b16 %v894, %v893
    %v1175 = vpack.c.b16 %v896, %v895
    %v1176 = vpack.c.b16 %v898, %v897
    %v1177 = vpack.c.b16 %v900, %v899
    %v1178 = vpack.c.b16 %v902, %v901
    %v1179 = vpack.c.b16 %v904, %v903
    %v1180 = vpack.c.b16 %v906, %v905
    %v1181 = vpack.c.b16 %v908, %v907
    %v1182 = vpack.c.b16 %v910, %v909
    %v1183 = vpack.c.b16 %v912, %v911
    %v1184 = vpack.c.b16 %v914, %v913
    %v1185 = vpack.c.b16 %v916, %v915
    %v1186 = vpack.c.b16 %v918, %v917
    %v1187 = vpack.c.b16 %v920, %v919
    %v1188 = vpack.c.b16 %v922, %v921
    %v1189 = vpack.c.b16 %v924, %v923
    %v1190 = vpack.c.b16 %v926, %v925
    %v1191 = vpack.c.b16 %v928, %v927
    %v1192 = vpack.c.b16 %v930, %v929
    %v1193 = vpack.c.b16 %v932, %v931
    %v1194 = vpack.c.b16 %v934, %v933
    %v1195 = vpack.c.b16 %v936, %v935
    %v1196 = vpack.c.b16 %v938, %v937
    %v1197 = vpack.c.b16 %v940, %v939
    %v1198 = vpack.c.b16 %v942, %v941
    %v1199 = vpack.c.b16 %v944, %v943
    %v1200 = vpack.c.b16 %v946, %v945
    %v1201 = vpack.c.b16 %v948, %v947
    %v1202 = vpack.c.b16 %v950, %v949
    %v1203 = vpack.c.b16 %v952, %v951
    %v1204 = vpack.c.b16 %v954, %v953
    %v1205 = vpack.c.b16 %v956, %v955
    %v1206 = vpack.c.b16 %v958, %v957
    %v1207 = vpack.c.b16 %v960, %v959
    %v1208 = vpack.c.b16 %v962, %v961
    %v1209 = vpack.c.b16 %v964, %v963
    %v1210 = vpack.c.b16 %v966, %v965
    %v1211 = vpack.c.b16 %v968, %v967
    %v1212 = vpack.c.b16 %v970, %v969
    %v1213 = vpack.c.b16 %v972, %v971
    %v1214 = vpack.c.b16 %v974, %v973
    %v1215 = vpack.c.b16 %v976, %v975
    %v1216 = vpack.c.b16 %v978, %v977
    %v1217 = vpack.c.b16 %v980, %v979
    %v1218 = vpack.c.b16 %v982, %v981
    %v1219 = vpack.c.b16 %v984, %v983
    %v1220 = vpack.c.b16 %v986, %v985
    %v1221 = vpack.c.b16 %v988, %v987
    %v1222 = vpack.c.b16 %v990, %v989
    %v1223 = vpack.c.b16 %v992, %v991
    %v1224 = vpack.c.b16 %v994, %v993
    %v1225 = vpack.c.b16 %v996, %v995
    %v1226 = vpack.c.b16 %v998, %v997
    %v1227 = vpack.c.b16 %v1000, %v999
    %v1228 = vpack.c.b16 %v1002, %v1001
    %v1229 = vpack.c.b16 %v1004, %v1003
    %v1230 = vpack.c.b16 %v1006, %v1005
    %v1231 = vpack.c.b16 %v1008, %v1007
    %v1232 = vpack.c.b16 %v1010, %v1009
    %v1233 = vpack.c.b16 %v1012, %v1011
    %v1234 = vpack.c.b16 %v1014, %v1013
    %v1235 = vpack.c.b16 %v1016, %v1015
    %v1236 = vpack.c.b16 %v1018, %v1017
    %v1237 = vpack.c.b16 %v1020, %v1019
    %v1238 = vpack.c.b16 %v1022, %v1021
    %v1239 = vpack.c.b16 %v1024, %v1023
    %v1240 = vpack.c.b16 %v1026, %v1025
    %v1241 = vpack.c.b16 %v1028, %v1027
    %v1242 = vpack.c.b16 %v1030, %v1029
    %v1243 = vpack.c.b16 %v1032, %v1031
    %v1244 = vpack.c.b16 %v1034, %v1033
    %v1245 = vpack.c.b16 %v1036, %v1035
    %v1246 = vpack.c.b16 %v1038, %v1037
    %v1247 = vpack.c.b16 %v1040, %v1039
    %v1248 = vpack.c.b16 %v1042, %v1041
    %v1249 = vpack.c.b16 %v1044, %v1043
    %v1250 = vpack.c.b16 %v1046, %v1045
    %v1251 = vpack.c.b16 %v1048, %v1047
    %v1252 = vpack.c.b16 %v1050, %v1049
    %v1253 = vpack.c.b16 %v1052, %v1051
    %v1254 = vpack.c.b16 %v1054, %v1053
    %v1255 = vpack.c.b16 %v1056, %v1055
    %v1256 = vpack.c.b16 %v1058, %v1057
    %v1257 = vpack.c.b16 %v1060, %v1059
    %v1258 = vpack.c.b16 %v1062, %v1061
    %v1259 = vpack.c.b16 %v1064, %v1063
    %v1260 = vpack.c.b16 %v1066, %v1065
    %v1261 = vpack.c.b16 %v1068, %v1067
    %v1262 = vpack.c.b16 %v1070, %v1069
    %v1263 = vpack.c.b16 %v1072, %v1071
    %v1264 = vpack.c.b16 %v1074, %v1073
    %v1265 = vpack.c.b16 %v1076, %v1075
    %v1266 = vpack.c.b16 %v1078, %v1077
    %v1267 = vpack.c.b16 %v1080, %v1079
    %v1268 = vpack.c.b16 %v1082, %v1081
    %v1269 = vpack.c.b16 %v1084, %v1083
    %v1270 = vpack.c.b16 %v1086, %v1085
    %v1271 = vpack.c.b16 %v1088, %v1087
    %v1272 = vpack.c.b16 %v1090, %v1089
    %v1273 = vpack.c.b16 %v1092, %v1091
    %v1274 = vpack.c.b16 %v1094, %v1093
    %v1275 = vpack.c.b16 %v1096, %v1095
    %v1276 = vpack.c.b16 %v1098, %v1097
    %v1277 = vpack.c.b16 %v1100, %v1099
    %v1278 = vpack.c.b16 %v1102, %v1101
    %v1279 = vpack.c.b16 %v1104, %v1103
    %v1280 = vpack.c.b16 %v1106, %v1105
    %v1281 = vpack.c.b16 %v1108, %v1107
    %v1282 = vpack.c.b16 %v1110, %v1109
    %v1283 = vpack.c.b16 %v1112, %v1111
    %v1284 = vpack.c.b16 %v1114, %v1113
    %v1285 = vpack.c.b16 %v1116, %v1115
    %v1286 = vpack.c.b16 %v1118, %v1117
    %v1287 = vpack.c.b16 %v1120, %v1119
    %v1288 = vpack.c.b16 %v1122, %v1121
    %v1289 = vpack.c.b16 %v1124, %v1123
    %v1290 = vpack.c.b16 %v1126, %v1125
    %v1291 = vpack.c.b16 %v1128, %v1127
    %v1292 = vpack.c.b16 %v1130, %v1129
    %v1293 = vpack.c.b16 %v1132, %v1131
    %v1294 = vpack.c.b16 %v1134, %v1133
    %1455 = vmatprep.subr.bf16.mxu0 0
    %1456 = vmatpush1.bf16.msra.mxu0 %v1135
    %1457 = vmatprep.subr.bf16.mxu0 0
    %1458 = vmatpush1.bf16.msra.mxu0 %v1136
    %1459 = vmatprep.subr.bf16.mxu0 0
    %1460 = vmatpush1.bf16.msra.mxu0 %v1137
    %1461 = vmatprep.subr.bf16.mxu0 0
    %1462 = vmatpush1.bf16.msra.mxu0 %v1138
    %1463 = vmatprep.subr.bf16.mxu0 0
    %1464 = vmatpush1.bf16.msra.mxu0 %v1139
    %1465 = vmatprep.subr.bf16.mxu0 0
    %1466 = vmatpush1.bf16.msra.mxu0 %v1140
    %1467 = vmatprep.subr.bf16.mxu0 0
    %1468 = vmatpush1.bf16.msra.mxu0 %v1141
    %1469 = vmatprep.subr.bf16.mxu0 0
    %1470 = vmatpush1.bf16.msra.mxu0 %v1142
    %1471 = vmatprep.subr.bf16.mxu0 0
    %1472 = vmatpush1.bf16.msra.mxu0 %v1143
    %1473 = vmatprep.subr.bf16.mxu0 0
    %1474 = vmatpush1.bf16.msra.mxu0 %v1144
    %1475 = vmatprep.subr.bf16.mxu0 0
    %1476 = vmatpush1.bf16.msra.mxu0 %v1145
    %1477 = vmatprep.subr.bf16.mxu0 0
    %1478 = vmatpush1.bf16.msra.mxu0 %v1146
    %1479 = vmatprep.subr.bf16.mxu0 0
    %1480 = vmatpush1.bf16.msra.mxu0 %v1147
    %1481 = vmatprep.subr.bf16.mxu0 0
    %1482 = vmatpush1.bf16.msra.mxu0 %v1148
    %1483 = vmatprep.subr.bf16.mxu0 0
    %1484 = vmatpush1.bf16.msra.mxu0 %v1149
    %1485 = vmatprep.subr.bf16.mxu0 0
    %1486 = vmatpush1.bf16.msra.mxu0 %v1150
    %1487 = vmatprep.mubr.bf16.mxu0 %v390
    %1488 = vmatmul.mubr.bf16.gmra.mrb[0].mxu0 %v376
    %v1489 = vpop.f32.mrb[0].mxu0
    %v1490 = vadd.f32 %v349, %v1489
    %v1491 = vpop.f32.mrb[0].mxu0
    %v1492 = vpop.f32.mrb[0].mxu0
    %v1493 = vpop.f32.mrb[0].mxu0
    %1494 = vdwg.mxu0
    %1495 = vmatprep.subr.bf16.mxu0 0
    %1496 = vmatpush1.bf16.msra.mxu0 %v1151
    %1497 = vmatprep.subr.bf16.mxu0 0
    %1498 = vmatpush1.bf16.msra.mxu0 %v1152
    %1499 = vmatprep.subr.bf16.mxu0 0
    %1500 = vmatpush1.bf16.msra.mxu0 %v1153
    %1501 = vmatprep.subr.bf16.mxu0 0
    %1502 = vmatpush1.bf16.msra.mxu0 %v1154
    %1503 = vmatprep.subr.bf16.mxu0 0
    %1504 = vmatpush1.bf16.msra.mxu0 %v1155
    %1505 = vmatprep.subr.bf16.mxu0 0
    %1506 = vmatpush1.bf16.msra.mxu0 %v1156
    %1507 = vmatprep.subr.bf16.mxu0 0
    %1508 = vmatpush1.bf16.msra.mxu0 %v1157
    %1509 = vmatprep.subr.bf16.mxu0 0
    %1510 = vmatpush1.bf16.msra.mxu0 %v1158
    %1511 = vmatprep.subr.bf16.mxu0 0
    %1512 = vmatpush1.bf16.msra.mxu0 %v1159
    %1513 = vmatprep.subr.bf16.mxu0 0
    %1514 = vmatpush1.bf16.msra.mxu0 %v1160
    %1515 = vmatprep.subr.bf16.mxu0 0
    %1516 = vmatpush1.bf16.msra.mxu0 %v1161
    %1517 = vmatprep.subr.bf16.mxu0 0
    %1518 = vmatpush1.bf16.msra.mxu0 %v1162
    %1519 = vmatprep.subr.bf16.mxu0 0
    %1520 = vmatpush1.bf16.msra.mxu0 %v1163
    %1521 = vmatprep.subr.bf16.mxu0 0
    %1522 = vmatpush1.bf16.msra.mxu0 %v1164
    %1523 = vmatprep.subr.bf16.mxu0 0
    %1524 = vmatpush1.bf16.msra.mxu0 %v1165
    %1525 = vmatprep.subr.bf16.mxu0 0
    %1526 = vmatpush1.bf16.msra.mxu0 %v1166
    %1527 = vmatprep.mubr.bf16.mxu0 %v400
    %1528 = vmatmul.mubr.bf16.gmra.mrb[0].mxu0 %v398
    %v1529 = vpop.f32.mrb[0].mxu0
    %v1530 = vadd.f32 %v1490, %v1529
    %v1531 = vpop.f32.mrb[0].mxu0
    %v1532 = vpop.f32.mrb[0].mxu0
    %v1533 = vpop.f32.mrb[0].mxu0
    %1534 = vdwg.mxu0
    %1535 = vmatprep.subr.bf16.mxu0 0
    %1536 = vmatpush1.bf16.msra.mxu0 %v1167
    %1537 = vmatprep.subr.bf16.mxu0 0
    %1538 = vmatpush1.bf16.msra.mxu0 %v1168
    %1539 = vmatprep.subr.bf16.mxu0 0
    %1540 = vmatpush1.bf16.msra.mxu0 %v1169
    %1541 = vmatprep.subr.bf16.mxu0 0
    %1542 = vmatpush1.bf16.msra.mxu0 %v1170
    %1543 = vmatprep.subr.bf16.mxu0 0
    %1544 = vmatpush1.bf16.msra.mxu0 %v1171
    %1545 = vmatprep.subr.bf16.mxu0 0
    %1546 = vmatpush1.bf16.msra.mxu0 %v1172
    %1547 = vmatprep.subr.bf16.mxu0 0
    %1548 = vmatpush1.bf16.msra.mxu0 %v1173
    %1549 = vmatprep.subr.bf16.mxu0 0
    %1550 = vmatpush1.bf16.msra.mxu0 %v1174
    %1551 = vmatprep.subr.bf16.mxu0 0
    %1552 = vmatpush1.bf16.msra.mxu0 %v1175
    %1553 = vmatprep.subr.bf16.mxu0 0
    %1554 = vmatpush1.bf16.msra.mxu0 %v1176
    %1555 = vmatprep.subr.bf16.mxu0 0
    %1556 = vmatpush1.bf16.msra.mxu0 %v1177
    %1557 = vmatprep.subr.bf16.mxu0 0
    %1558 = vmatpush1.bf16.msra.mxu0 %v1178
    %1559 = vmatprep.subr.bf16.mxu0 0
    %1560 = vmatpush1.bf16.msra.mxu0 %v1179
    %1561 = vmatprep.subr.bf16.mxu0 0
    %1562 = vmatpush1.bf16.msra.mxu0 %v1180
    %1563 = vmatprep.subr.bf16.mxu0 0
    %1564 = vmatpush1.bf16.msra.mxu0 %v1181
    %1565 = vmatprep.subr.bf16.mxu0 0
    %1566 = vmatpush1.bf16.msra.mxu0 %v1182
    %1567 = vmatprep.mubr.bf16.mxu0 %v397
    %1568 = vmatmul.mubr.bf16.gmra.mrb[0].mxu0 %v383
    %v1569 = vpop.f32.mrb[0].mxu0
    %v1570 = vadd.f32 %v1530, %v1569
    %v1571 = vpop.f32.mrb[0].mxu0
    %v1572 = vpop.f32.mrb[0].mxu0
    %v1573 = vpop.f32.mrb[0].mxu0
    %1574 = vdwg.mxu0
    %1575 = vmatprep.subr.bf16.mxu0 0
    %1576 = vmatpush1.bf16.msra.mxu0 %v1183
    %1577 = vmatprep.subr.bf16.mxu0 0
    %1578 = vmatpush1.bf16.msra.mxu0 %v1184
    %1579 = vmatprep.subr.bf16.mxu0 0
    %1580 = vmatpush1.bf16.msra.mxu0 %v1185
    %1581 = vmatprep.subr.bf16.mxu0 0
    %1582 = vmatpush1.bf16.msra.mxu0 %v1186
    %1583 = vmatprep.subr.bf16.mxu0 0
    %1584 = vmatpush1.bf16.msra.mxu0 %v1187
    %1585 = vmatprep.subr.bf16.mxu0 0
    %1586 = vmatpush1.bf16.msra.mxu0 %v1188
    %1587 = vmatprep.subr.bf16.mxu0 0
    %1588 = vmatpush1.bf16.msra.mxu0 %v1189
    %1589 = vmatprep.subr.bf16.mxu0 0
    %1590 = vmatpush1.bf16.msra.mxu0 %v1190
    %1591 = vmatprep.subr.bf16.mxu0 0
    %1592 = vmatpush1.bf16.msra.mxu0 %v1191
    %1593 = vmatprep.subr.bf16.mxu0 0
    %1594 = vmatpush1.bf16.msra.mxu0 %v1192
    %1595 = vmatprep.subr.bf16.mxu0 0
    %1596 = vmatpush1.bf16.msra.mxu0 %v1193
    %1597 = vmatprep.subr.bf16.mxu0 0
    %1598 = vmatpush1.bf16.msra.mxu0 %v1194
    %1599 = vmatprep.subr.bf16.mxu0 0
    %1600 = vmatpush1.bf16.msra.mxu0 %v1195
    %1601 = vmatprep.subr.bf16.mxu0 0
    %1602 = vmatpush1.bf16.msra.mxu0 %v1196
    %1603 = vmatprep.subr.bf16.mxu0 0
    %1604 = vmatpush1.bf16.msra.mxu0 %v1197
    %1605 = vmatprep.subr.bf16.mxu0 0
    %1606 = vmatpush1.bf16.msra.mxu0 %v1198
    %1607 = vmatprep.mubr.bf16.mxu0 %v401
    %1608 = vmatmul.mubr.bf16.gmra.mrb[0].mxu0 %v399
    %v1609 = vpop.f32.mrb[0].mxu0
    %v1610 = vadd.f32 %v1570, %v1609
    %v1611 = vpop.f32.mrb[0].mxu0
    %v1612 = vpop.f32.mrb[0].mxu0
    %v1613 = vpop.f32.mrb[0].mxu0
    %1614 = vdwg.mxu0
    %1615 = vmatprep.subr.bf16.mxu0 0
    %1616 = vmatpush1.bf16.msra.mxu0 %v1199
    %1617 = vmatprep.subr.bf16.mxu0 0
    %1618 = vmatpush1.bf16.msra.mxu0 %v1200
    %1619 = vmatprep.subr.bf16.mxu0 0
    %1620 = vmatpush1.bf16.msra.mxu0 %v1201
    %1621 = vmatprep.subr.bf16.mxu0 0
    %1622 = vmatpush1.bf16.msra.mxu0 %v1202
    %1623 = vmatprep.subr.bf16.mxu0 0
    %1624 = vmatpush1.bf16.msra.mxu0 %v1203
    %1625 = vmatprep.subr.bf16.mxu0 0
    %1626 = vmatpush1.bf16.msra.mxu0 %v1204
    %1627 = vmatprep.subr.bf16.mxu0 0
    %1628 = vmatpush1.bf16.msra.mxu0 %v1205
    %1629 = vmatprep.subr.bf16.mxu0 0
    %1630 = vmatpush1.bf16.msra.mxu0 %v1206
    %1631 = vmatprep.subr.bf16.mxu0 0
    %1632 = vmatpush1.bf16.msra.mxu0 %v1207
    %1633 = vmatprep.subr.bf16.mxu0 0
    %1634 = vmatpush1.bf16.msra.mxu0 %v1208
    %1635 = vmatprep.subr.bf16.mxu0 0
    %1636 = vmatpush1.bf16.msra.mxu0 %v1209
    %1637 = vmatprep.subr.bf16.mxu0 0
    %1638 = vmatpush1.bf16.msra.mxu0 %v1210
    %1639 = vmatprep.subr.bf16.mxu0 0
    %1640 = vmatpush1.bf16.msra.mxu0 %v1211
    %1641 = vmatprep.subr.bf16.mxu0 0
    %1642 = vmatpush1.bf16.msra.mxu0 %v1212
    %1643 = vmatprep.subr.bf16.mxu0 0
    %1644 = vmatpush1.bf16.msra.mxu0 %v1213
    %1645 = vmatprep.subr.bf16.mxu0 0
    %1646 = vmatpush1.bf16.msra.mxu0 %v1214
    %1647 = vmatprep.mubr.bf16.mxu0 %v439
    %1648 = vmatmul.mubr.bf16.gmra.mrb[0].mxu0 %v425
    %v1649 = vpop.f32.mrb[0].mxu0
    %v1650 = vadd.f32 %v1610, %v1649
    %v1651 = vpop.f32.mrb[0].mxu0
    %v1652 = vpop.f32.mrb[0].mxu0
    %v1653 = vpop.f32.mrb[0].mxu0
    %1654 = vdwg.mxu0
    %1655 = vmatprep.subr.bf16.mxu0 0
    %1656 = vmatpush1.bf16.msra.mxu0 %v1215
    %1657 = vmatprep.subr.bf16.mxu0 0
    %1658 = vmatpush1.bf16.msra.mxu0 %v1216
    %1659 = vmatprep.subr.bf16.mxu0 0
    %1660 = vmatpush1.bf16.msra.mxu0 %v1217
    %1661 = vmatprep.subr.bf16.mxu0 0
    %1662 = vmatpush1.bf16.msra.mxu0 %v1218
    %1663 = vmatprep.subr.bf16.mxu0 0
    %1664 = vmatpush1.bf16.msra.mxu0 %v1219
    %1665 = vmatprep.subr.bf16.mxu0 0
    %1666 = vmatpush1.bf16.msra.mxu0 %v1220
    %1667 = vmatprep.subr.bf16.mxu0 0
    %1668 = vmatpush1.bf16.msra.mxu0 %v1221
    %1669 = vmatprep.subr.bf16.mxu0 0
    %1670 = vmatpush1.bf16.msra.mxu0 %v1222
    %1671 = vmatprep.subr.bf16.mxu0 0
    %1672 = vmatpush1.bf16.msra.mxu0 %v1223
    %1673 = vmatprep.subr.bf16.mxu0 0
    %1674 = vmatpush1.bf16.msra.mxu0 %v1224
    %1675 = vmatprep.subr.bf16.mxu0 0
    %1676 = vmatpush1.bf16.msra.mxu0 %v1225
    %1677 = vmatprep.subr.bf16.mxu0 0
    %1678 = vmatpush1.bf16.msra.mxu0 %v1226
    %1679 = vmatprep.subr.bf16.mxu0 0
    %1680 = vmatpush1.bf16.msra.mxu0 %v1227
    %1681 = vmatprep.subr.bf16.mxu0 0
    %1682 = vmatpush1.bf16.msra.mxu0 %v1228
    %1683 = vmatprep.subr.bf16.mxu0 0
    %1684 = vmatpush1.bf16.msra.mxu0 %v1229
    %1685 = vmatprep.subr.bf16.mxu0 0
    %1686 = vmatpush1.bf16.msra.mxu0 %v1230
    %1687 = vmatprep.mubr.bf16.mxu0 %v449
    %1688 = vmatmul.mubr.bf16.gmra.mrb[0].mxu0 %v447
    %v1689 = vpop.f32.mrb[0].mxu0
    %v1690 = vadd.f32 %v1650, %v1689
    %v1691 = vpop.f32.mrb[0].mxu0
    %v1692 = vpop.f32.mrb[0].mxu0
    %v1693 = vpop.f32.mrb[0].mxu0
    %1694 = vdwg.mxu0
    %1695 = vmatprep.subr.bf16.mxu0 0
    %1696 = vmatpush1.bf16.msra.mxu0 %v1231
    %1697 = vmatprep.subr.bf16.mxu0 0
    %1698 = vmatpush1.bf16.msra.mxu0 %v1232
    %1699 = vmatprep.subr.bf16.mxu0 0
    %1700 = vmatpush1.bf16.msra.mxu0 %v1233
    %1701 = vmatprep.subr.bf16.mxu0 0
    %1702 = vmatpush1.bf16.msra.mxu0 %v1234
    %1703 = vmatprep.subr.bf16.mxu0 0
    %1704 = vmatpush1.bf16.msra.mxu0 %v1235
    %1705 = vmatprep.subr.bf16.mxu0 0
    %1706 = vmatpush1.bf16.msra.mxu0 %v1236
    %1707 = vmatprep.subr.bf16.mxu0 0
    %1708 = vmatpush1.bf16.msra.mxu0 %v1237
    %1709 = vmatprep.subr.bf16.mxu0 0
    %1710 = vmatpush1.bf16.msra.mxu0 %v1238
    %1711 = vmatprep.subr.bf16.mxu0 0
    %1712 = vmatpush1.bf16.msra.mxu0 %v1239
    %1713 = vmatprep.subr.bf16.mxu0 0
    %1714 = vmatpush1.bf16.msra.mxu0 %v1240
    %1715 = vmatprep.subr.bf16.mxu0 0
    %1716 = vmatpush1.bf16.msra.mxu0 %v1241
    %1717 = vmatprep.subr.bf16.mxu0 0
    %1718 = vmatpush1.bf16.msra.mxu0 %v1242
    %1719 = vmatprep.subr.bf16.mxu0 0
    %1720 = vmatpush1.bf16.msra.mxu0 %v1243
    %1721 = vmatprep.subr.bf16.mxu0 0
    %1722 = vmatpush1.bf16.msra.mxu0 %v1244
    %1723 = vmatprep.subr.bf16.mxu0 0
    %1724 = vmatpush1.bf16.msra.mxu0 %v1245
    %1725 = vmatprep.subr.bf16.mxu0 0
    %1726 = vmatpush1.bf16.msra.mxu0 %v1246
    %1727 = vmatprep.mubr.bf16.mxu0 %v446
    %1728 = vmatmul.mubr.bf16.gmra.mrb[0].mxu0 %v432
    %v1729 = vpop.f32.mrb[0].mxu0
    %v1730 = vadd.f32 %v1690, %v1729
    %v1731 = vpop.f32.mrb[0].mxu0
    %v1732 = vpop.f32.mrb[0].mxu0
    %v1733 = vpop.f32.mrb[0].mxu0
    %1734 = vdwg.mxu0
    %1735 = vmatprep.subr.bf16.mxu0 0
    %1736 = vmatpush1.bf16.msra.mxu0 %v1247
    %1737 = vmatprep.subr.bf16.mxu0 0
    %1738 = vmatpush1.bf16.msra.mxu0 %v1248
    %1739 = vmatprep.subr.bf16.mxu0 0
    %1740 = vmatpush1.bf16.msra.mxu0 %v1249
    %1741 = vmatprep.subr.bf16.mxu0 0
    %1742 = vmatpush1.bf16.msra.mxu0 %v1250
    %1743 = vmatprep.subr.bf16.mxu0 0
    %1744 = vmatpush1.bf16.msra.mxu0 %v1251
    %1745 = vmatprep.subr.bf16.mxu0 0
    %1746 = vmatpush1.bf16.msra.mxu0 %v1252
    %1747 = vmatprep.subr.bf16.mxu0 0
    %1748 = vmatpush1.bf16.msra.mxu0 %v1253
    %1749 = vmatprep.subr.bf16.mxu0 0
    %1750 = vmatpush1.bf16.msra.mxu0 %v1254
    %1751 = vmatprep.subr.bf16.mxu0 0
    %1752 = vmatpush1.bf16.msra.mxu0 %v1255
    %1753 = vmatprep.subr.bf16.mxu0 0
    %1754 = vmatpush1.bf16.msra.mxu0 %v1256
    %1755 = vmatprep.subr.bf16.mxu0 0
    %1756 = vmatpush1.bf16.msra.mxu0 %v1257
    %1757 = vmatprep.subr.bf16.mxu0 0
    %1758 = vmatpush1.bf16.msra.mxu0 %v1258
    %1759 = vmatprep.subr.bf16.mxu0 0
    %1760 = vmatpush1.bf16.msra.mxu0 %v1259
    %1761 = vmatprep.subr.bf16.mxu0 0
    %1762 = vmatpush1.bf16.msra.mxu0 %v1260
    %1763 = vmatprep.subr.bf16.mxu0 0
    %1764 = vmatpush1.bf16.msra.mxu0 %v1261
    %1765 = vmatprep.subr.bf16.mxu0 0
    %1766 = vmatpush1.bf16.msra.mxu0 %v1262
    %1767 = vmatprep.mubr.bf16.mxu0 %v450
    %1768 = vmatmul.mubr.bf16.gmra.mrb[0].mxu0 %v448
    %v1769 = vpop.f32.mrb[0].mxu0
    %v1770 = vadd.f32 %v1730, %v1769
    %v1771 = vpop.f32.mrb[0].mxu0
    %v1772 = vpop.f32.mrb[0].mxu0
    %v1773 = vpop.f32.mrb[0].mxu0
    %1774 = vdwg.mxu0
    %1775 = vmatprep.subr.bf16.mxu0 0
    %1776 = vmatpush1.bf16.msra.mxu0 %v1263
    %1777 = vmatprep.subr.bf16.mxu0 0
    %1778 = vmatpush1.bf16.msra.mxu0 %v1264
    %1779 = vmatprep.subr.bf16.mxu0 0
    %1780 = vmatpush1.bf16.msra.mxu0 %v1265
    %1781 = vmatprep.subr.bf16.mxu0 0
    %1782 = vmatpush1.bf16.msra.mxu0 %v1266
    %1783 = vmatprep.subr.bf16.mxu0 0
    %1784 = vmatpush1.bf16.msra.mxu0 %v1267
    %1785 = vmatprep.subr.bf16.mxu0 0
    %1786 = vmatpush1.bf16.msra.mxu0 %v1268
    %1787 = vmatprep.subr.bf16.mxu0 0
    %1788 = vmatpush1.bf16.msra.mxu0 %v1269
    %1789 = vmatprep.subr.bf16.mxu0 0
    %1790 = vmatpush1.bf16.msra.mxu0 %v1270
    %1791 = vmatprep.subr.bf16.mxu0 0
    %1792 = vmatpush1.bf16.msra.mxu0 %v1271
    %1793 = vmatprep.subr.bf16.mxu0 0
    %1794 = vmatpush1.bf16.msra.mxu0 %v1272
    %1795 = vmatprep.subr.bf16.mxu0 0
    %1796 = vmatpush1.bf16.msra.mxu0 %v1273
    %1797 = vmatprep.subr.bf16.mxu0 0
    %1798 = vmatpush1.bf16.msra.mxu0 %v1274
    %1799 = vmatprep.subr.bf16.mxu0 0
    %1800 = vmatpush1.bf16.msra.mxu0 %v1275
    %1801 = vmatprep.subr.bf16.mxu0 0
    %1802 = vmatpush1.bf16.msra.mxu0 %v1276
    %1803 = vmatprep.subr.bf16.mxu0 0
    %1804 = vmatpush1.bf16.msra.mxu0 %v1277
    %1805 = vmatprep.subr.bf16.mxu0 0
    %1806 = vmatpush1.bf16.msra.mxu0 %v1278
    %1807 = vmatprep.mubr.bf16.mxu0 %v472
    %1808 = vmatmul.mubr.bf16.gmra.mrb[0].mxu0 %v465
    %v1809 = vpop.f32.mrb[0].mxu0
    %v1810 = vadd.f32 %v1770, %v1809
    %v1811 = vpop.f32.mrb[0].mxu0
    %v1812 = vpop.f32.mrb[0].mxu0
    %v1813 = vpop.f32.mrb[0].mxu0
    %1814 = vdwg.mxu0
    %1815 = vmatprep.subr.bf16.mxu0 0
    %1816 = vmatpush1.bf16.msra.mxu0 %v1279
    %1817 = vmatprep.subr.bf16.mxu0 0
    %1818 = vmatpush1.bf16.msra.mxu0 %v1280
    %1819 = vmatprep.subr.bf16.mxu0 0
    %1820 = vmatpush1.bf16.msra.mxu0 %v1281
    %1821 = vmatprep.subr.bf16.mxu0 0
    %1822 = vmatpush1.bf16.msra.mxu0 %v1282
    %1823 = vmatprep.subr.bf16.mxu0 0
    %1824 = vmatpush1.bf16.msra.mxu0 %v1283
    %1825 = vmatprep.subr.bf16.mxu0 0
    %1826 = vmatpush1.bf16.msra.mxu0 %v1284
    %1827 = vmatprep.subr.bf16.mxu0 0
    %1828 = vmatpush1.bf16.msra.mxu0 %v1285
    %1829 = vmatprep.subr.bf16.mxu0 0
    %1830 = vmatpush1.bf16.msra.mxu0 %v1286
    %1831 = vmatprep.subr.bf16.mxu0 0
    %1832 = vmatpush1.bf16.msra.mxu0 %v1287
    %1833 = vmatprep.subr.bf16.mxu0 0
    %1834 = vmatpush1.bf16.msra.mxu0 %v1288
    %1835 = vmatprep.subr.bf16.mxu0 0
    %1836 = vmatpush1.bf16.msra.mxu0 %v1289
    %1837 = vmatprep.subr.bf16.mxu0 0
    %1838 = vmatpush1.bf16.msra.mxu0 %v1290
    %1839 = vmatprep.subr.bf16.mxu0 0
    %1840 = vmatpush1.bf16.msra.mxu0 %v1291
    %1841 = vmatprep.subr.bf16.mxu0 0
    %1842 = vmatpush1.bf16.msra.mxu0 %v1292
    %1843 = vmatprep.subr.bf16.mxu0 0
    %1844 = vmatpush1.bf16.msra.mxu0 %v1293
    %1845 = vmatprep.subr.bf16.mxu0 0
    %1846 = vmatpush1.bf16.msra.mxu0 %v1294
    %1847 = vmatprep.mubr.bf16.mxu0 %v474
    %1848 = vmatmul.mubr.bf16.gmra.mrb[0].mxu0 %v473
    %v1849 = vpop.f32.mrb[0].mxu0
    %v1850 = vadd.f32 %v1810, %v1849
    %v1851 = vpop.f32.mrb[0].mxu0
    %v1852 = vpop.f32.mrb[0].mxu0
    %v1853 = vpop.f32.mrb[0].mxu0
    %1854 = vdwg.mxu0
    %v1855 = vmax.f32 %v1850, 0.0
    %v1856 = vld [vmem:[%s2 + $0x1] sm:$0x1]
    %v1857 = vlaneseq
    %v1858 = vshrl.u32 %v1857, 7
    %v1859 = vsub.s32 0, %v1858
    %v1860 = vrot.slane %v1856, %v1859
    %v1861 = vmul.f32 %v1855, %v1860
    %v1862 = vld [vmem:[%s2 + $0x2] sm:$0x1]
    %v1863 = vlaneseq
    %v1864 = vshrl.u32 %v1863, 7
    %v1865 = vsub.s32 0, %v1864
    %v1866 = vrot.slane %v1862, %v1865
    %v1867 = vadd.f32 %v1861, %v1866
    %v1868 = vpack.c.bf16 %v1867, %v1867
    %v1869 = vld [vmem:[%s3] sm:$0xf]
    %v1870 = vld [vmem:[%s3 + $0x4] sm:$0xf]
    %v1871 = vld [vmem:[%s3 + $0x8] sm:$0xf]
    %v1872 = vld [vmem:[%s3 + $0xc] sm:$0xf]
    %v1873 = vld [vmem:[%s3 + $0x10] sm:$0xf]
    %v1874 = vld [vmem:[%s3 + $0x14] sm:$0xf]
    %v1875 = vld [vmem:[%s3 + $0x18] sm:$0xf]
    %v1876 = vld [vmem:[%s3 + $0x1c] sm:$0xf]
    %v1877 = vld [vmem:[%s4] sm:$0x1]
    %v1879 = vlaneseq
    %v1880 = vshrl.u32 %v1879, 7
    %v1881 = vsub.s32 0, %v1880
    %v1882 = vrot.slane %v1877, %v1881
    %v1892 = vunpack.c.l.b16 %v1869
    %v1893 = vunpack.c.l.b16 %v1870
    %v1894 = vunpack.c.l.b16 %v1871
    %v1895 = vunpack.c.l.b16 %v1872
    %v1896 = vunpack.c.l.b16 %v1873
    %v1897 = vunpack.c.l.b16 %v1874
    %v1898 = vunpack.c.l.b16 %v1875
    %v1899 = vunpack.c.l.b16 %v1876
    %v1900 = vpack.c.b16 %v1893, %v1892
    %v1901 = vpack.c.b16 %v1895, %v1894
    %v1902 = vpack.c.b16 %v1897, %v1896
    %v1903 = vpack.c.b16 %v1899, %v1898
    %vm1908 = vcmask 523264
    %v1910 = vsel %vm1908, %v1868, 0
    %1912 = vmatprep.subr.bf16.mxu0 0
    %1913 = vmatpush1.bf16.msra.mxu0 %v1900
    %1914 = vmatprep.subr.bf16.mxu0 0
    %1915 = vmatpush1.bf16.msra.mxu0 %v1901
    %1916 = vmatprep.subr.bf16.mxu0 0
    %1917 = vmatpush1.bf16.msra.mxu0 %v1902
    %1918 = vmatprep.subr.bf16.mxu0 0
    %1919 = vmatpush1.bf16.msra.mxu0 %v1903
    %1920 = vmatprep.subr.bf16.mxu0 0
    %1921 = vmatpush1.bf16.msra.mxu0 0
    %1922 = vmatprep.subr.bf16.mxu0 0
    %1923 = vmatpush1.bf16.msra.mxu0 0
    %1924 = vmatprep.subr.bf16.mxu0 0
    %1925 = vmatpush1.bf16.msra.mxu0 0
    %1926 = vmatprep.subr.bf16.mxu0 0
    %1927 = vmatpush1.bf16.msra.mxu0 0
    %1928 = vmatprep.subr.bf16.mxu0 0
    %1929 = vmatpush1.bf16.msra.mxu0 0
    %1930 = vmatprep.subr.bf16.mxu0 0
    %1931 = vmatpush1.bf16.msra.mxu0 0
    %1932 = vmatprep.subr.bf16.mxu0 0
    %1933 = vmatpush1.bf16.msra.mxu0 0
    %1934 = vmatprep.subr.bf16.mxu0 0
    %1935 = vmatpush1.bf16.msra.mxu0 0
    %1936 = vmatprep.subr.bf16.mxu0 0
    %1937 = vmatpush1.bf16.msra.mxu0 0
    %1938 = vmatprep.subr.bf16.mxu0 0
    %1939 = vmatpush1.bf16.msra.mxu0 0
    %1940 = vmatprep.subr.bf16.mxu0 0
    %1941 = vmatpush1.bf16.msra.mxu0 0
    %1942 = vmatprep.subr.bf16.mxu0 0
    %1943 = vmatpush1.bf16.msra.mxu0 0
    %1944 = vmatprep.mubr.bf16.mxu0 0
    %1945 = vmatmul.mubr.bf16.gmra.mrb[0].mxu0 %v1910
    %v1946 = vpop.f32.mrb[0].mxu0
    %v1947 = vadd.f32 %v1882, %v1946
    %v1948 = vpop.f32.mrb[0].mxu0
    %v1949 = vpop.f32.mrb[0].mxu0
    %v1950 = vpop.f32.mrb[0].mxu0
    %1951 = vdwg.mxu0
    %vm1952 = vcmask 74752
    %v1953 = vsel %vm1952, %v1947, -inf
    %1954 = vmax.xlane.f32.xlu0 %v1953
    %v1955 = vpop.xlane.xlu0 %1954
    %v1956 = vsub.f32 %v1947, %v1955
    %v1957 = vmul.f32 %v1956, 1.442695
    %v1958 = vpow.pop %v1957
    %v1959 = vsel %vm1952, %v1958, 0.0
    %1960 = vadd.xlane.f32.xlu0 %v1959
    %v1961 = vpop.xlane.xlu0 %1960
    %v1962 = vlog2.pop %v1961
    %v1963 = vmul.f32 %v1962, 0.6931472
    %v1964 = vsub.f32 %v1956, %v1963
    %1965 = vst.msk [vmem:[#allocation2] sm:$0x3] %vm1952, %v1964
    // Predicated region
    $region22: #{_lambda_.9} parent=1 // pred_check
      _
    $region23: #{_lambda_.9} parent=1 // pred_check_branch
      %1967 = sbr.rel (0) target = $region25
    $region24: #{_lambda_.9} parent=1 // pred_region
      %s1969 = ssub.s32 32, 32
      %1970 = vsyncadd [#allocation3], %s1969
      %s1972 = sshll.u32 [#allocation2], 4
      %s1973 = int_to_ptr.vmem [resolvable:$true] %s1972
      %1975 = dma.vmem_to_hbm [thread:$0]  %s1973, 32, %s5, [#allocation3]
    $region25: #{_lambda_.9} parent=1 // pred_fallthru
      _
    // Predicated region
    $region26: #{_lambda_.9} parent=1 // pred_check
      _
    $region27: #{_lambda_.9} parent=1 // pred_check_branch
      %1977 = sbr.rel (0) target = $region29
    $region28: #{_lambda_.9} parent=1 // pred_region
      %1978 = dma.done [#allocation3], 32
    $region29: #{_lambda_.9} parent=1 // pred_fallthru
      _
    %1979 = vsyncpa [#allocation3], 1

</llo_original>
